<compile_context>
chip_gen: v6e
topology: v6e:2x2x1
jax: 0.10.0
libtpu: 0.0.40
codegen_flags: <defaults>
</compile_context>

<pallas_src>
import functools

import jax
import jax.numpy as jnp
from jax.experimental import pallas as pl
from jax.experimental.pallas import tpu as pltpu


def _round_up(x, m):
    return ((x + m - 1) // m) * m


def _pick_time_chunk(T, max_chunk=64):
    """Largest divisor of T that is <= max_chunk (gates buffer time-chunk)."""
    for c in range(min(T, max_chunk), 0, -1):
        if T % c == 0:
            return c
    return 1


# ----------------------------------------------------------------------------
# Fused kernel: all LSTM layers + final Linear, everything resident in VMEM.
# One grid program per batch block (parallel axis -> v7x dual-TC sharding).
# ----------------------------------------------------------------------------
def _fused_lstm_kernel(x_ref, wih_ref, whh_ref, b_ref, fcw_ref, fcb_ref,
                       out_ref, seq_sc, gates_sc, h_sc, c_sc):
    # x_ref    : (T*Bb, Ep)   bf16   time-major, row = t*Bb + b
    # wih_ref  : (L, Ep, 4Ep) bf16   gate blocks lane-aligned at k*Ep
    # whh_ref  : (L, Ep, 4Ep) bf16
    # b_ref    : (L, 1, 4Ep)  f32    (b_ih + b_hh)
    # fcw_ref  : (Ep, Op)     bf16
    # fcb_ref  : (1, Op)      f32
    # out_ref  : (Bb, Op)     f32
    # seq_sc   : (T*Bb, Ep)   bf16   layer-to-layer sequence buffer
    # gates_sc : (Tc*Bb, 4Ep) f32    time-chunked input projection
    # h_sc     : (Bb, Ep)     bf16   hidden carry
    # c_sc     : (Bb, Ep)     f32    cell carry
    TB, Ep = seq_sc.shape
    Bb = h_sc.shape[0]
    T = TB // Bb
    Tc = gates_sc.shape[0] // Bb
    n_chunks = T // Tc
    L = wih_ref.shape[0]

    # TODO(synk): for very large L/E, double-buffer per-layer weights from HBM
    # (memory_space=pl.ANY + make_async_copy) instead of keeping all L resident.
    for layer in range(L):                       # static loop over layers
        w_ih = wih_ref[layer]                    # (Ep, 4Ep) bf16
        w_hh = whh_ref[layer]                    # (Ep, 4Ep) bf16
        bias = b_ref[layer]                      # (1, 4Ep)  f32

        h_sc[...] = jnp.zeros_like(h_sc)
        c_sc[...] = jnp.zeros_like(c_sc)

        last_layer = layer == L - 1
        src = x_ref if layer == 0 else seq_sc    # (T*Bb, Ep) bf16

        for chunk in range(n_chunks):            # static loop over time chunks
            row0 = chunk * Tc * Bb               # static

            # Input projection for the whole chunk: one big MXU matmul.
            gates_sc[...] = (
                jnp.dot(src[pl.ds(row0, Tc * Bb), :], w_ih,
                        preferred_element_type=jnp.float32)
                + bias
            )

            def step(t, carry, w_hh=w_hh, row0=row0, last_layer=last_layer):
                row = pl.multiple_of(t * Bb, 8)          # sublane-aligned
                g = gates_sc[pl.ds(row, Bb), :] + jnp.dot(
                    h_sc[...], w_hh, preferred_element_type=jnp.float32)

                # Gate blocks start at lane offsets 0, Ep, 2Ep, 3Ep (Ep % 128 == 0),
                # so every extraction below is a lane-dense VPU/EUP op.
                i_g = jax.nn.sigmoid(g[:, 0 * Ep:1 * Ep])
                f_g = jax.nn.sigmoid(g[:, 1 * Ep:2 * Ep])
                g_g = jnp.tanh(g[:, 2 * Ep:3 * Ep])
                o_g = jax.nn.sigmoid(g[:, 3 * Ep:4 * Ep])

                c_new = f_g * c_sc[...] + i_g * g_g               # f32
                h_new = (o_g * jnp.tanh(c_new)).astype(jnp.bfloat16)
                c_sc[...] = c_new
                h_sc[...] = h_new
                if not last_layer:
                    out_row = pl.multiple_of(row0 + t * Bb, 8)
                    seq_sc[pl.ds(out_row, Bb), :] = h_new         # next layer input
                return carry

            jax.lax.fori_loop(0, Tc, step, 0, unroll=min(8, Tc))

    # Final Linear on hidden[-1] of the last layer; dropout is identity in eval mode.
    out_ref[...] = (
        jnp.dot(h_sc[...], fcw_ref[...], preferred_element_type=jnp.float32)
        + fcb_ref[...]
    ).astype(out_ref.dtype)


# ----------------------------------------------------------------------------
# One-time parameter preparation: pad hidden dim to 128 lanes, lane-align the
# four gate blocks, combine biases, cast matmul operands to bf16.
# ----------------------------------------------------------------------------
def prepare_params(params):
    emb = params["embedding"]                    # (V, E) f32
    V, E = emb.shape
    Ep = _round_up(E, 128)
    Gp = 4 * Ep
    L = params["w_ih"].shape[0]

    emb_p = jnp.zeros((V, Ep), jnp.bfloat16).at[:, :E].set(emb.astype(jnp.bfloat16))

    def pad_gate_w(w):                           # (L, E, 4E) f32 -> (L, Ep, Gp) bf16
        out = jnp.zeros((L, Ep, Gp), jnp.bfloat16)
        for k in range(4):
            out = out.at[:, :E, k * Ep:k * Ep + E].set(
                w[:, :, k * E:(k + 1) * E].astype(jnp.bfloat16))
        return out

    def pad_gate_b(b):                           # (L, 1, 4E) f32 -> (L, 1, Gp) f32
        out = jnp.zeros((L, 1, Gp), jnp.float32)
        for k in range(4):
            out = out.at[:, :, k * Ep:k * Ep + E].set(b[:, :, k * E:(k + 1) * E])
        return out

    fc_w, fc_b = params["fc_w"], params["fc_b"]  # (E, O), (1, O)
    O = fc_w.shape[1]
    Op = _round_up(O, 128)
    fc_w_p = jnp.zeros((Ep, Op), jnp.bfloat16).at[:E, :O].set(fc_w.astype(jnp.bfloat16))
    fc_b_p = jnp.zeros((1, Op), jnp.float32).at[:, :O].set(fc_b)

    return {
        "embedding": emb_p,
        "w_ih": pad_gate_w(params["w_ih"]),
        "w_hh": pad_gate_w(params["w_hh"]),
        "bias": pad_gate_b(params["bias"]),
        "fc_w": fc_w_p,
        "fc_b": fc_b_p,
    }


# ----------------------------------------------------------------------------
# Full model forward (kernel params produced by prepare_params).
# ----------------------------------------------------------------------------
def lstm_model_forward(token_ids, kp, out_dim):
    B, T = token_ids.shape
    emb_tab = kp["embedding"]                    # (V, Ep) bf16
    Ep = emb_tab.shape[1]
    L, _, Gp = kp["w_ih"].shape
    Op = kp["fc_w"].shape[1]

    # Pad batch to a sublane multiple and split into blocks for the parallel grid
    # axis (megacore / v7x dual-TensorCore sharding).
    Bp = _round_up(B, 8)
    NB = 2 if (Bp >= 16 and Bp % 16 == 0) else 1
    Bb = Bp // NB

    ids = token_ids
    if Bp != B:
        ids = jnp.pad(ids, ((0, Bp - B), (0, 0)))
    # (Bp, T) -> (NB, T, Bb): batch-block outermost, then time-major.
    ids_r = jnp.transpose(ids.reshape(NB, Bb, T), (0, 2, 1))

    # Embedding gather directly in bf16 kernel layout (no f32 intermediate, no
    # separate activation pad copy).
    # TODO(synk): the gather itself stays in XLA; fusing it into the kernel would
    # need scalar-prefetched token ids + a row-gather DMA.
    x = jnp.take(emb_tab, ids_r, axis=0).reshape(NB, T * Bb, Ep)

    Tc = _pick_time_chunk(T)

    # VMEM budget estimate (double-buffered pipeline blocks + scratch) with headroom.
    est = (
        2 * (T * Bb * Ep * 2)                    # x block
        + 2 * 2 * (L * Ep * Gp * 2)              # w_ih + w_hh
        + 2 * (L * Gp * 4)                       # bias
        + 2 * (Ep * Op * 2 + Op * 4)             # fc weights
        + 2 * (Bb * Op * 4)                      # out block
        + T * Bb * Ep * 2                        # seq_sc (bf16)
        + Tc * Bb * Gp * 4                       # gates_sc (f32, time-chunked)
        + Bb * Ep * (2 + 4)                      # h (bf16), c (f32)
    )
    vmem_limit = int(min(112 * 2**20, max(32 * 2**20, 3 * est)))

    out = pl.pallas_call(
        _fused_lstm_kernel,
        out_shape=jax.ShapeDtypeStruct((NB, Bb, Op), jnp.float32),
        grid=(NB,),
        in_specs=[
            pl.BlockSpec((None, T * Bb, Ep), lambda i: (i, 0, 0)),   # per-block x
            pl.BlockSpec((L, Ep, Gp), lambda i: (0, 0, 0)),          # w_ih (all layers)
            pl.BlockSpec((L, Ep, Gp), lambda i: (0, 0, 0)),          # w_hh
            pl.BlockSpec((L, 1, Gp), lambda i: (0, 0, 0)),           # bias
            pl.BlockSpec((Ep, Op), lambda i: (0, 0)),                # fc_w
            pl.BlockSpec((1, Op), lambda i: (0, 0)),                 # fc_b
        ],
        out_specs=pl.BlockSpec((None, Bb, Op), lambda i: (i, 0, 0)),
        scratch_shapes=[
            pltpu.VMEM((T * Bb, Ep), jnp.bfloat16),   # layer-to-layer sequence
            pltpu.VMEM((Tc * Bb, Gp), jnp.float32),   # chunked input-projection gates
            pltpu.VMEM((Bb, Ep), jnp.bfloat16),       # h carry
            pltpu.VMEM((Bb, Ep), jnp.float32),        # c carry
        ],
        compiler_params=pltpu.CompilerParams(
            dimension_semantics=("parallel",),
            vmem_limit_bytes=vmem_limit),
    )(x, kp["w_ih"], kp["w_hh"], kp["bias"], kp["fc_w"], kp["fc_b"])

    return out.reshape(NB * Bb, Op)[:B, :out_dim]


def init_params(key, vocab_size, embedding_dim, output_dim, n_layers):
    E = embedding_dim
    scale = 1.0 / float(E) ** 0.5
    keys = jax.random.split(key, 1 + 4 * n_layers + 2)
    it = iter(keys)

    params = {
        "embedding": jax.random.normal(next(it), (vocab_size, E), jnp.float32)
    }

    w_ih, w_hh, bias = [], [], []
    for _ in range(n_layers):
        w_ih.append(jax.random.uniform(next(it), (E, 4 * E), jnp.float32, -scale, scale))
        w_hh.append(jax.random.uniform(next(it), (E, 4 * E), jnp.float32, -scale, scale))
        b_ih = jax.random.uniform(next(it), (1, 4 * E), jnp.float32, -scale, scale)
        b_hh = jax.random.uniform(next(it), (1, 4 * E), jnp.float32, -scale, scale)
        bias.append(b_ih + b_hh)
    params["w_ih"] = jnp.stack(w_ih)      # (L, E, 4E)
    params["w_hh"] = jnp.stack(w_hh)      # (L, E, 4E)
    params["bias"] = jnp.stack(bias)      # (L, 1, 4E)

    params["fc_w"] = jax.random.uniform(
        next(it), (E, output_dim), jnp.float32, -scale, scale)
    params["fc_b"] = jax.random.uniform(
        next(it), (1, output_dim), jnp.float32, -scale, scale)
    return params


if __name__ == "__main__":
    vocab_size = 50
    embedding_dim = 32
    output_dim = 4
    n_layers = 2
    batch = 2
    seq_len = 8

    key = jax.random.PRNGKey(0)
    k_param, k_data = jax.random.split(key)

    params = init_params(k_param, vocab_size, embedding_dim, output_dim, n_layers)
    kparams = prepare_params(params)                      # one-time pad/cast to bf16
    token_ids = jax.random.randint(k_data, (batch, seq_len), 0, vocab_size, jnp.int32)

    fwd = jax.jit(functools.partial(lstm_model_forward, out_dim=output_dim))
    out = fwd(token_ids, kparams)
    out = jax.block_until_ready(out)
    assert out.shape == (batch, output_dim), out.shape
    assert bool(jnp.all(jnp.isfinite(out)))
    print("KERNEL_OK")
</pallas_src>

<mosaic_0001>
module attributes {stable_mosaic.version = 11 : i64} {
  func.func @_fused_lstm_kernel(%arg0: i32, %arg1: memref<1x64x128xbf16, #tpu.memory_space<vmem>>, %arg2: memref<2x128x512xbf16, #tpu.memory_space<vmem>>, %arg3: memref<2x128x512xbf16, #tpu.memory_space<vmem>>, %arg4: memref<2x1x512xf32, #tpu.memory_space<vmem>>, %arg5: memref<128x128xbf16, #tpu.memory_space<vmem>>, %arg6: memref<1x128xf32, #tpu.memory_space<vmem>>, %arg7: memref<1x8x128xf32, #tpu.memory_space<vmem>>, %arg8: memref<64x128xbf16, #tpu.memory_space<vmem>>, %arg9: memref<64x512xf32, #tpu.memory_space<vmem>>, %arg10: memref<8x128xbf16, #tpu.memory_space<vmem>>, %arg11: memref<8x128xf32, #tpu.memory_space<vmem>>) attributes {dimension_semantics = [#tpu.dimension_semantics<parallel>], iteration_bounds = array<i64: 1>, scalar_prefetch = 0 : i64, scratch_operands = 4 : i64, tpu.core_type = #tpu.core_type<tc>, window_params = [{transform_indices = @transform_0, window_bounds = array<i64: 1, 64, 128>}, {pipeline_mode = #tpu.pipeline_mode<synchronous>, transform_indices = @transform_1, window_bounds = array<i64: 2, 128, 512>}, {pipeline_mode = #tpu.pipeline_mode<synchronous>, transform_indices = @transform_2, window_bounds = array<i64: 2, 128, 512>}, {pipeline_mode = #tpu.pipeline_mode<synchronous>, transform_indices = @transform_3, window_bounds = array<i64: 2, 1, 512>}, {pipeline_mode = #tpu.pipeline_mode<synchronous>, transform_indices = @transform_4, window_bounds = array<i64: 128, 128>}, {pipeline_mode = #tpu.pipeline_mode<synchronous>, transform_indices = @transform_5, window_bounds = array<i64: 1, 128>}, {transform_indices = @transform_6, window_bounds = array<i64: 1, 8, 128>}]} {
    %c0 = arith.constant 0 : index
    %c0_0 = arith.constant 0 : index
    %c0_1 = arith.constant 0 : index
    %0 = vector.load %arg2[%c0, %c0_0, %c0_1] : memref<2x128x512xbf16, #tpu.memory_space<vmem>>, vector<1x128x512xbf16>
    %1 = vector.shape_cast %0 : vector<1x128x512xbf16> to vector<128x512xbf16>
    %c0_2 = arith.constant 0 : index
    %c0_3 = arith.constant 0 : index
    %c0_4 = arith.constant 0 : index
    %2 = vector.load %arg3[%c0_2, %c0_3, %c0_4] : memref<2x128x512xbf16, #tpu.memory_space<vmem>>, vector<1x128x512xbf16>
    %3 = vector.shape_cast %2 : vector<1x128x512xbf16> to vector<128x512xbf16>
    %c0_5 = arith.constant 0 : index
    %c0_6 = arith.constant 0 : index
    %c0_7 = arith.constant 0 : index
    %4 = vector.load %arg4[%c0_5, %c0_6, %c0_7] : memref<2x1x512xf32, #tpu.memory_space<vmem>>, vector<1x1x512xf32>
    %5 = vector.shape_cast %4 : vector<1x1x512xf32> to vector<1x512xf32>
    %cst = arith.constant 0.000000e+00 : bf16
    %6 = vector.broadcast %cst : bf16 to vector<8x128xbf16>
    %c0_8 = arith.constant 0 : index
    %c0_9 = arith.constant 0 : index
    %7 = vector.load %arg10[%c0_8, %c0_9] : memref<8x128xbf16, #tpu.memory_space<vmem>>, vector<8x128xbf16>
    tpu.vector_store %arg10[%c0_8, %c0_9], %6 {strides = array<i32>} : memref<8x128xbf16, #tpu.memory_space<vmem>>, vector<8x128xbf16>,
    %cst_10 = arith.constant 0.000000e+00 : f32
    %8 = vector.broadcast %cst_10 : f32 to vector<8x128xf32>
    %c0_11 = arith.constant 0 : index
    %c0_12 = arith.constant 0 : index
    %9 = vector.load %arg11[%c0_11, %c0_12] : memref<8x128xf32, #tpu.memory_space<vmem>>, vector<8x128xf32>
    tpu.vector_store %arg11[%c0_11, %c0_12], %8 {strides = array<i32>} : memref<8x128xf32, #tpu.memory_space<vmem>>, vector<8x128xf32>,
    %c0_13 = arith.constant 0 : index
    %c0_14 = arith.constant 0 : index
    %c0_15 = arith.constant 0 : index
    %10 = vector.load %arg1[%c0_13, %c0_14, %c0_15] : memref<1x64x128xbf16, #tpu.memory_space<vmem>>, vector<1x64x128xbf16>
    %11 = vector.shape_cast %10 : vector<1x64x128xbf16> to vector<64x128xbf16>
    %cst_16 = arith.constant dense<0.000000e+00> : vector<64x512xf32>
    %12 = tpu.matmul %11, %1, %cst_16 {dimension_numbers = #tpu.dot_dimension_numbers<[1], [0], [0], [1], [0, 0, 1, 1], [], []>} : vector<64x128xbf16>, vector<128x512xbf16>, vector<64x512xf32> -> vector<64x512xf32>
    %13 = vector.broadcast %5 : vector<1x512xf32> to vector<64x512xf32>
    %14 = arith.addf %12, %13 : vector<64x512xf32>
    %c0_17 = arith.constant 0 : index
    %c0_18 = arith.constant 0 : index
    %15 = vector.load %arg9[%c0_17, %c0_18] : memref<64x512xf32, #tpu.memory_space<vmem>>, vector<64x512xf32>
    tpu.vector_store %arg9[%c0_17, %c0_18], %14 {strides = array<i32>} : memref<64x512xf32, #tpu.memory_space<vmem>>, vector<64x512xf32>,
    %c0_i32 = arith.constant 0 : i32
    %c8_i32 = arith.constant 8 : i32
    %16 = arith.muli %c0_i32, %c8_i32 : i32
    %17 = tpu.assume_multiple %16, 8 : i32
    %18 = arith.index_cast %17 : i32 to index
    %c0_19 = arith.constant 0 : index
    %19 = vector.load %arg9[%18, %c0_19] : memref<64x512xf32, #tpu.memory_space<vmem>>, vector<8x512xf32>
    %c0_20 = arith.constant 0 : index
    %c0_21 = arith.constant 0 : index
    %20 = vector.load %arg10[%c0_20, %c0_21] : memref<8x128xbf16, #tpu.memory_space<vmem>>, vector<8x128xbf16>
    %cst_22 = arith.constant dense<0.000000e+00> : vector<8x512xf32>
    %21 = tpu.matmul %20, %3, %cst_22 {dimension_numbers = #tpu.dot_dimension_numbers<[1], [0], [0], [1], [0, 0, 1, 1], [], []>} : vector<8x128xbf16>, vector<128x512xbf16>, vector<8x512xf32> -> vector<8x512xf32>
    %22 = arith.addf %19, %21 : vector<8x512xf32>
    %23 = vector.extract_strided_slice %22 {offsets = [0, 0], sizes = [8, 128], strides = [1, 1]} : vector<8x512xf32> to vector<8x128xf32>
    %24 = arith.negf %23 : vector<8x128xf32>
    %25 = math.exp %24 : vector<8x128xf32>
    %cst_23 = arith.constant 1.000000e+00 : f32
    %26 = vector.broadcast %cst_23 : f32 to vector<8x128xf32>
    %27 = arith.addf %26, %25 : vector<8x128xf32>
    %28 = arith.divf %26, %27 : vector<8x128xf32>
    %29 = vector.extract_strided_slice %22 {offsets = [0, 128], sizes = [8, 128], strides = [1, 1]} : vector<8x512xf32> to vector<8x128xf32>
    %30 = arith.negf %29 : vector<8x128xf32>
    %31 = math.exp %30 : vector<8x128xf32>
    %cst_24 = arith.constant 1.000000e+00 : f32
    %32 = vector.broadcast %cst_24 : f32 to vector<8x128xf32>
    %33 = arith.addf %32, %31 : vector<8x128xf32>
    %34 = arith.divf %32, %33 : vector<8x128xf32>
    %35 = vector.extract_strided_slice %22 {offsets = [0, 256], sizes = [8, 128], strides = [1, 1]} : vector<8x512xf32> to vector<8x128xf32>
    %36 = math.tanh %35 : vector<8x128xf32>
    %37 = vector.extract_strided_slice %22 {offsets = [0, 384], sizes = [8, 128], strides = [1, 1]} : vector<8x512xf32> to vector<8x128xf32>
    %38 = arith.negf %37 : vector<8x128xf32>
    %39 = math.exp %38 : vector<8x128xf32>
    %cst_25 = arith.constant 1.000000e+00 : f32
    %40 = vector.broadcast %cst_25 : f32 to vector<8x128xf32>
    %41 = arith.addf %40, %39 : vector<8x128xf32>
    %42 = arith.divf %40, %41 : vector<8x128xf32>
    %c0_26 = arith.constant 0 : index
    %c0_27 = arith.constant 0 : index
    %43 = vector.load %arg11[%c0_26, %c0_27] : memref<8x128xf32, #tpu.memory_space<vmem>>, vector<8x128xf32>
    %44 = arith.mulf %34, %43 : vector<8x128xf32>
    %45 = arith.mulf %28, %36 : vector<8x128xf32>
    %46 = arith.addf %44, %45 : vector<8x128xf32>
    %47 = math.tanh %46 : vector<8x128xf32>
    %48 = arith.mulf %42, %47 : vector<8x128xf32>
    %49 = arith.truncf %48 : vector<8x128xf32> to vector<8x128xbf16>
    %c0_28 = arith.constant 0 : index
    %c0_29 = arith.constant 0 : index
    %50 = vector.load %arg11[%c0_28, %c0_29] : memref<8x128xf32, #tpu.memory_space<vmem>>, vector<8x128xf32>
    tpu.vector_store %arg11[%c0_28, %c0_29], %46 {strides = array<i32>} : memref<8x128xf32, #tpu.memory_space<vmem>>, vector<8x128xf32>,
    %c0_30 = arith.constant 0 : index
    %c0_31 = arith.constant 0 : index
    %51 = vector.load %arg10[%c0_30, %c0_31] : memref<8x128xbf16, #tpu.memory_space<vmem>>, vector<8x128xbf16>
    tpu.vector_store %arg10[%c0_30, %c0_31], %49 {strides = array<i32>} : memref<8x128xbf16, #tpu.memory_space<vmem>>, vector<8x128xbf16>,
    %c8_i32_32 = arith.constant 8 : i32
    %52 = arith.muli %c0_i32, %c8_i32_32 : i32
    %c0_i32_33 = arith.constant 0 : i32
    %53 = arith.addi %c0_i32_33, %52 : i32
    %54 = tpu.assume_multiple %53, 8 : i32
    %55 = arith.index_cast %54 : i32 to index
    %c0_34 = arith.constant 0 : index
    %56 = vector.load %arg8[%55, %c0_34] : memref<64x128xbf16, #tpu.memory_space<vmem>>, vector<8x128xbf16>
    tpu.vector_store %arg8[%55, %c0_34], %49 {strides = array<i32>} : memref<64x128xbf16, #tpu.memory_space<vmem>>, vector<8x128xbf16>,
    %c1_i32 = arith.constant 1 : i32
    %c8_i32_35 = arith.constant 8 : i32
    %57 = arith.muli %c1_i32, %c8_i32_35 : i32
    %58 = tpu.assume_multiple %57, 8 : i32
    %59 = arith.index_cast %58 : i32 to index
    %c0_36 = arith.constant 0 : index
    %60 = vector.load %arg9[%59, %c0_36] : memref<64x512xf32, #tpu.memory_space<vmem>>, vector<8x512xf32>
    %c0_37 = arith.constant 0 : index
    %c0_38 = arith.constant 0 : index
    %61 = vector.load %arg10[%c0_37, %c0_38] : memref<8x128xbf16, #tpu.memory_space<vmem>>, vector<8x128xbf16>
    %cst_39 = arith.constant dense<0.000000e+00> : vector<8x512xf32>
    %62 = tpu.matmul %61, %3, %cst_39 {dimension_numbers = #tpu.dot_dimension_numbers<[1], [0], [0], [1], [0, 0, 1, 1], [], []>} : vector<8x128xbf16>, vector<128x512xbf16>, vector<8x512xf32> -> vector<8x512xf32>
    %63 = arith.addf %60, %62 : vector<8x512xf32>
    %64 = vector.extract_strided_slice %63 {offsets = [0, 0], sizes = [8, 128], strides = [1, 1]} : vector<8x512xf32> to vector<8x128xf32>
    %65 = arith.negf %64 : vector<8x128xf32>
    %66 = math.exp %65 : vector<8x128xf32>
    %cst_40 = arith.constant 1.000000e+00 : f32
    %67 = vector.broadcast %cst_40 : f32 to vector<8x128xf32>
    %68 = arith.addf %67, %66 : vector<8x128xf32>
    %69 = arith.divf %67, %68 : vector<8x128xf32>
    %70 = vector.extract_strided_slice %63 {offsets = [0, 128], sizes = [8, 128], strides = [1, 1]} : vector<8x512xf32> to vector<8x128xf32>
    %71 = arith.negf %70 : vector<8x128xf32>
    %72 = math.exp %71 : vector<8x128xf32>
    %cst_41 = arith.constant 1.000000e+00 : f32
    %73 = vector.broadcast %cst_41 : f32 to vector<8x128xf32>
    %74 = arith.addf %73, %72 : vector<8x128xf32>
    %75 = arith.divf %73, %74 : vector<8x128xf32>
    %76 = vector.extract_strided_slice %63 {offsets = [0, 256], sizes = [8, 128], strides = [1, 1]} : vector<8x512xf32> to vector<8x128xf32>
    %77 = math.tanh %76 : vector<8x128xf32>
    %78 = vector.extract_strided_slice %63 {offsets = [0, 384], sizes = [8, 128], strides = [1, 1]} : vector<8x512xf32> to vector<8x128xf32>
    %79 = arith.negf %78 : vector<8x128xf32>
    %80 = math.exp %79 : vector<8x128xf32>
    %cst_42 = arith.constant 1.000000e+00 : f32
    %81 = vector.broadcast %cst_42 : f32 to vector<8x128xf32>
    %82 = arith.addf %81, %80 : vector<8x128xf32>
    %83 = arith.divf %81, %82 : vector<8x128xf32>
    %c0_43 = arith.constant 0 : index
    %c0_44 = arith.constant 0 : index
    %84 = vector.load %arg11[%c0_43, %c0_44] : memref<8x128xf32, #tpu.memory_space<vmem>>, vector<8x128xf32>
    %85 = arith.mulf %75, %84 : vector<8x128xf32>
    %86 = arith.mulf %69, %77 : vector<8x128xf32>
    %87 = arith.addf %85, %86 : vector<8x128xf32>
    %88 = math.tanh %87 : vector<8x128xf32>
    %89 = arith.mulf %83, %88 : vector<8x128xf32>
    %90 = arith.truncf %89 : vector<8x128xf32> to vector<8x128xbf16>
    %c0_45 = arith.constant 0 : index
    %c0_46 = arith.constant 0 : index
    %91 = vector.load %arg11[%c0_45, %c0_46] : memref<8x128xf32, #tpu.memory_space<vmem>>, vector<8x128xf32>
    tpu.vector_store %arg11[%c0_45, %c0_46], %87 {strides = array<i32>} : memref<8x128xf32, #tpu.memory_space<vmem>>, vector<8x128xf32>,
    %c0_47 = arith.constant 0 : index
    %c0_48 = arith.constant 0 : index
    %92 = vector.load %arg10[%c0_47, %c0_48] : memref<8x128xbf16, #tpu.memory_space<vmem>>, vector<8x128xbf16>
    tpu.vector_store %arg10[%c0_47, %c0_48], %90 {strides = array<i32>} : memref<8x128xbf16, #tpu.memory_space<vmem>>, vector<8x128xbf16>,
    %c8_i32_49 = arith.constant 8 : i32
    %93 = arith.muli %c1_i32, %c8_i32_49 : i32
    %c0_i32_50 = arith.constant 0 : i32
    %94 = arith.addi %c0_i32_50, %93 : i32
    %95 = tpu.assume_multiple %94, 8 : i32
    %96 = arith.index_cast %95 : i32 to index
    %c0_51 = arith.constant 0 : index
    %97 = vector.load %arg8[%96, %c0_51] : memref<64x128xbf16, #tpu.memory_space<vmem>>, vector<8x128xbf16>
    tpu.vector_store %arg8[%96, %c0_51], %90 {strides = array<i32>} : memref<64x128xbf16, #tpu.memory_space<vmem>>, vector<8x128xbf16>,
    %c2_i32 = arith.constant 2 : i32
    %c8_i32_52 = arith.constant 8 : i32
    %98 = arith.muli %c2_i32, %c8_i32_52 : i32
    %99 = tpu.assume_multiple %98, 8 : i32
    %100 = arith.index_cast %99 : i32 to index
    %c0_53 = arith.constant 0 : index
    %101 = vector.load %arg9[%100, %c0_53] : memref<64x512xf32, #tpu.memory_space<vmem>>, vector<8x512xf32>
    %c0_54 = arith.constant 0 : index
    %c0_55 = arith.constant 0 : index
    %102 = vector.load %arg10[%c0_54, %c0_55] : memref<8x128xbf16, #tpu.memory_space<vmem>>, vector<8x128xbf16>
    %cst_56 = arith.constant dense<0.000000e+00> : vector<8x512xf32>
    %103 = tpu.matmul %102, %3, %cst_56 {dimension_numbers = #tpu.dot_dimension_numbers<[1], [0], [0], [1], [0, 0, 1, 1], [], []>} : vector<8x128xbf16>, vector<128x512xbf16>, vector<8x512xf32> -> vector<8x512xf32>
    %104 = arith.addf %101, %103 : vector<8x512xf32>
    %105 = vector.extract_strided_slice %104 {offsets = [0, 0], sizes = [8, 128], strides = [1, 1]} : vector<8x512xf32> to vector<8x128xf32>
    %106 = arith.negf %105 : vector<8x128xf32>
    %107 = math.exp %106 : vector<8x128xf32>
    %cst_57 = arith.constant 1.000000e+00 : f32
    %108 = vector.broadcast %cst_57 : f32 to vector<8x128xf32>
    %109 = arith.addf %108, %107 : vector<8x128xf32>
    %110 = arith.divf %108, %109 : vector<8x128xf32>
    %111 = vector.extract_strided_slice %104 {offsets = [0, 128], sizes = [8, 128], strides = [1, 1]} : vector<8x512xf32> to vector<8x128xf32>
    %112 = arith.negf %111 : vector<8x128xf32>
    %113 = math.exp %112 : vector<8x128xf32>
    %cst_58 = arith.constant 1.000000e+00 : f32
    %114 = vector.broadcast %cst_58 : f32 to vector<8x128xf32>
    %115 = arith.addf %114, %113 : vector<8x128xf32>
    %116 = arith.divf %114, %115 : vector<8x128xf32>
    %117 = vector.extract_strided_slice %104 {offsets = [0, 256], sizes = [8, 128], strides = [1, 1]} : vector<8x512xf32> to vector<8x128xf32>
    %118 = math.tanh %117 : vector<8x128xf32>
    %119 = vector.extract_strided_slice %104 {offsets = [0, 384], sizes = [8, 128], strides = [1, 1]} : vector<8x512xf32> to vector<8x128xf32>
    %120 = arith.negf %119 : vector<8x128xf32>
    %121 = math.exp %120 : vector<8x128xf32>
    %cst_59 = arith.constant 1.000000e+00 : f32
    %122 = vector.broadcast %cst_59 : f32 to vector<8x128xf32>
    %123 = arith.addf %122, %121 : vector<8x128xf32>
    %124 = arith.divf %122, %123 : vector<8x128xf32>
    %c0_60 = arith.constant 0 : index
    %c0_61 = arith.constant 0 : index
    %125 = vector.load %arg11[%c0_60, %c0_61] : memref<8x128xf32, #tpu.memory_space<vmem>>, vector<8x128xf32>
    %126 = arith.mulf %116, %125 : vector<8x128xf32>
    %127 = arith.mulf %110, %118 : vector<8x128xf32>
    %128 = arith.addf %126, %127 : vector<8x128xf32>
    %129 = math.tanh %128 : vector<8x128xf32>
    %130 = arith.mulf %124, %129 : vector<8x128xf32>
    %131 = arith.truncf %130 : vector<8x128xf32> to vector<8x128xbf16>
    %c0_62 = arith.constant 0 : index
    %c0_63 = arith.constant 0 : index
    %132 = vector.load %arg11[%c0_62, %c0_63] : memref<8x128xf32, #tpu.memory_space<vmem>>, vector<8x128xf32>
    tpu.vector_store %arg11[%c0_62, %c0_63], %128 {strides = array<i32>} : memref<8x128xf32, #tpu.memory_space<vmem>>, vector<8x128xf32>,
    %c0_64 = arith.constant 0 : index
    %c0_65 = arith.constant 0 : index
    %133 = vector.load %arg10[%c0_64, %c0_65] : memref<8x128xbf16, #tpu.memory_space<vmem>>, vector<8x128xbf16>
    tpu.vector_store %arg10[%c0_64, %c0_65], %131 {strides = array<i32>} : memref<8x128xbf16, #tpu.memory_space<vmem>>, vector<8x128xbf16>,
    %c8_i32_66 = arith.constant 8 : i32
    %134 = arith.muli %c2_i32, %c8_i32_66 : i32
    %c0_i32_67 = arith.constant 0 : i32
    %135 = arith.addi %c0_i32_67, %134 : i32
    %136 = tpu.assume_multiple %135, 8 : i32
    %137 = arith.index_cast %136 : i32 to index
    %c0_68 = arith.constant 0 : index
    %138 = vector.load %arg8[%137, %c0_68] : memref<64x128xbf16, #tpu.memory_space<vmem>>, vector<8x128xbf16>
    tpu.vector_store %arg8[%137, %c0_68], %131 {strides = array<i32>} : memref<64x128xbf16, #tpu.memory_space<vmem>>, vector<8x128xbf16>,
    %c3_i32 = arith.constant 3 : i32
    %c8_i32_69 = arith.constant 8 : i32
    %139 = arith.muli %c3_i32, %c8_i32_69 : i32
    %140 = tpu.assume_multiple %139, 8 : i32
    %141 = arith.index_cast %140 : i32 to index
    %c0_70 = arith.constant 0 : index
    %142 = vector.load %arg9[%141, %c0_70] : memref<64x512xf32, #tpu.memory_space<vmem>>, vector<8x512xf32>
    %c0_71 = arith.constant 0 : index
    %c0_72 = arith.constant 0 : index
    %143 = vector.load %arg10[%c0_71, %c0_72] : memref<8x128xbf16, #tpu.memory_space<vmem>>, vector<8x128xbf16>
    %cst_73 = arith.constant dense<0.000000e+00> : vector<8x512xf32>
    %144 = tpu.matmul %143, %3, %cst_73 {dimension_numbers = #tpu.dot_dimension_numbers<[1], [0], [0], [1], [0, 0, 1, 1], [], []>} : vector<8x128xbf16>, vector<128x512xbf16>, vector<8x512xf32> -> vector<8x512xf32>
    %145 = arith.addf %142, %144 : vector<8x512xf32>
    %146 = vector.extract_strided_slice %145 {offsets = [0, 0], sizes = [8, 128], strides = [1, 1]} : vector<8x512xf32> to vector<8x128xf32>
    %147 = arith.negf %146 : vector<8x128xf32>
    %148 = math.exp %147 : vector<8x128xf32>
    %cst_74 = arith.constant 1.000000e+00 : f32
    %149 = vector.broadcast %cst_74 : f32 to vector<8x128xf32>
    %150 = arith.addf %149, %148 : vector<8x128xf32>
    %151 = arith.divf %149, %150 : vector<8x128xf32>
    %152 = vector.extract_strided_slice %145 {offsets = [0, 128], sizes = [8, 128], strides = [1, 1]} : vector<8x512xf32> to vector<8x128xf32>
    %153 = arith.negf %152 : vector<8x128xf32>
    %154 = math.exp %153 : vector<8x128xf32>
    %cst_75 = arith.constant 1.000000e+00 : f32
    %155 = vector.broadcast %cst_75 : f32 to vector<8x128xf32>
    %156 = arith.addf %155, %154 : vector<8x128xf32>
    %157 = arith.divf %155, %156 : vector<8x128xf32>
    %158 = vector.extract_strided_slice %145 {offsets = [0, 256], sizes = [8, 128], strides = [1, 1]} : vector<8x512xf32> to vector<8x128xf32>
    %159 = math.tanh %158 : vector<8x128xf32>
    %160 = vector.extract_strided_slice %145 {offsets = [0, 384], sizes = [8, 128], strides = [1, 1]} : vector<8x512xf32> to vector<8x128xf32>
    %161 = arith.negf %160 : vector<8x128xf32>
    %162 = math.exp %161 : vector<8x128xf32>
    %cst_76 = arith.constant 1.000000e+00 : f32
    %163 = vector.broadcast %cst_76 : f32 to vector<8x128xf32>
    %164 = arith.addf %163, %162 : vector<8x128xf32>
    %165 = arith.divf %163, %164 : vector<8x128xf32>
    %c0_77 = arith.constant 0 : index
    %c0_78 = arith.constant 0 : index
    %166 = vector.load %arg11[%c0_77, %c0_78] : memref<8x128xf32, #tpu.memory_space<vmem>>, vector<8x128xf32>
    %167 = arith.mulf %157, %166 : vector<8x128xf32>
    %168 = arith.mulf %151, %159 : vector<8x128xf32>
    %169 = arith.addf %167, %168 : vector<8x128xf32>
    %170 = math.tanh %169 : vector<8x128xf32>
    %171 = arith.mulf %165, %170 : vector<8x128xf32>
    %172 = arith.truncf %171 : vector<8x128xf32> to vector<8x128xbf16>
    %c0_79 = arith.constant 0 : index
    %c0_80 = arith.constant 0 : index
    %173 = vector.load %arg11[%c0_79, %c0_80] : memref<8x128xf32, #tpu.memory_space<vmem>>, vector<8x128xf32>
    tpu.vector_store %arg11[%c0_79, %c0_80], %169 {strides = array<i32>} : memref<8x128xf32, #tpu.memory_space<vmem>>, vector<8x128xf32>,
    %c0_81 = arith.constant 0 : index
    %c0_82 = arith.constant 0 : index
    %174 = vector.load %arg10[%c0_81, %c0_82] : memref<8x128xbf16, #tpu.memory_space<vmem>>, vector<8x128xbf16>
    tpu.vector_store %arg10[%c0_81, %c0_82], %172 {strides = array<i32>} : memref<8x128xbf16, #tpu.memory_space<vmem>>, vector<8x128xbf16>,
    %c8_i32_83 = arith.constant 8 : i32
    %175 = arith.muli %c3_i32, %c8_i32_83 : i32
    %c0_i32_84 = arith.constant 0 : i32
    %176 = arith.addi %c0_i32_84, %175 : i32
    %177 = tpu.assume_multiple %176, 8 : i32
    %178 = arith.index_cast %177 : i32 to index
    %c0_85 = arith.constant 0 : index
    %179 = vector.load %arg8[%178, %c0_85] : memref<64x128xbf16, #tpu.memory_space<vmem>>, vector<8x128xbf16>
    tpu.vector_store %arg8[%178, %c0_85], %172 {strides = array<i32>} : memref<64x128xbf16, #tpu.memory_space<vmem>>, vector<8x128xbf16>,
    %c4_i32 = arith.constant 4 : i32
    %c8_i32_86 = arith.constant 8 : i32
    %180 = arith.muli %c4_i32, %c8_i32_86 : i32
    %181 = tpu.assume_multiple %180, 8 : i32
    %182 = arith.index_cast %181 : i32 to index
    %c0_87 = arith.constant 0 : index
    %183 = vector.load %arg9[%182, %c0_87] : memref<64x512xf32, #tpu.memory_space<vmem>>, vector<8x512xf32>
    %c0_88 = arith.constant 0 : index
    %c0_89 = arith.constant 0 : index
    %184 = vector.load %arg10[%c0_88, %c0_89] : memref<8x128xbf16, #tpu.memory_space<vmem>>, vector<8x128xbf16>
    %cst_90 = arith.constant dense<0.000000e+00> : vector<8x512xf32>
    %185 = tpu.matmul %184, %3, %cst_90 {dimension_numbers = #tpu.dot_dimension_numbers<[1], [0], [0], [1], [0, 0, 1, 1], [], []>} : vector<8x128xbf16>, vector<128x512xbf16>, vector<8x512xf32> -> vector<8x512xf32>
    %186 = arith.addf %183, %185 : vector<8x512xf32>
    %187 = vector.extract_strided_slice %186 {offsets = [0, 0], sizes = [8, 128], strides = [1, 1]} : vector<8x512xf32> to vector<8x128xf32>
    %188 = arith.negf %187 : vector<8x128xf32>
    %189 = math.exp %188 : vector<8x128xf32>
    %cst_91 = arith.constant 1.000000e+00 : f32
    %190 = vector.broadcast %cst_91 : f32 to vector<8x128xf32>
    %191 = arith.addf %190, %189 : vector<8x128xf32>
    %192 = arith.divf %190, %191 : vector<8x128xf32>
    %193 = vector.extract_strided_slice %186 {offsets = [0, 128], sizes = [8, 128], strides = [1, 1]} : vector<8x512xf32> to vector<8x128xf32>
    %194 = arith.negf %193 : vector<8x128xf32>
    %195 = math.exp %194 : vector<8x128xf32>
    %cst_92 = arith.constant 1.000000e+00 : f32
    %196 = vector.broadcast %cst_92 : f32 to vector<8x128xf32>
    %197 = arith.addf %196, %195 : vector<8x128xf32>
    %198 = arith.divf %196, %197 : vector<8x128xf32>
    %199 = vector.extract_strided_slice %186 {offsets = [0, 256], sizes = [8, 128], strides = [1, 1]} : vector<8x512xf32> to vector<8x128xf32>
    %200 = math.tanh %199 : vector<8x128xf32>
    %201 = vector.extract_strided_slice %186 {offsets = [0, 384], sizes = [8, 128], strides = [1, 1]} : vector<8x512xf32> to vector<8x128xf32>
    %202 = arith.negf %201 : vector<8x128xf32>
    %203 = math.exp %202 : vector<8x128xf32>
    %cst_93 = arith.constant 1.000000e+00 : f32
    %204 = vector.broadcast %cst_93 : f32 to vector<8x128xf32>
    %205 = arith.addf %204, %203 : vector<8x128xf32>
    %206 = arith.divf %204, %205 : vector<8x128xf32>
    %c0_94 = arith.constant 0 : index
    %c0_95 = arith.constant 0 : index
    %207 = vector.load %arg11[%c0_94, %c0_95] : memref<8x128xf32, #tpu.memory_space<vmem>>, vector<8x128xf32>
    %208 = arith.mulf %198, %207 : vector<8x128xf32>
    %209 = arith.mulf %192, %200 : vector<8x128xf32>
    %210 = arith.addf %208, %209 : vector<8x128xf32>
    %211 = math.tanh %210 : vector<8x128xf32>
    %212 = arith.mulf %206, %211 : vector<8x128xf32>
    %213 = arith.truncf %212 : vector<8x128xf32> to vector<8x128xbf16>
    %c0_96 = arith.constant 0 : index
    %c0_97 = arith.constant 0 : index
    %214 = vector.load %arg11[%c0_96, %c0_97] : memref<8x128xf32, #tpu.memory_space<vmem>>, vector<8x128xf32>
    tpu.vector_store %arg11[%c0_96, %c0_97], %210 {strides = array<i32>} : memref<8x128xf32, #tpu.memory_space<vmem>>, vector<8x128xf32>,
    %c0_98 = arith.constant 0 : index
    %c0_99 = arith.constant 0 : index
    %215 = vector.load %arg10[%c0_98, %c0_99] : memref<8x128xbf16, #tpu.memory_space<vmem>>, vector<8x128xbf16>
    tpu.vector_store %arg10[%c0_98, %c0_99], %213 {strides = array<i32>} : memref<8x128xbf16, #tpu.memory_space<vmem>>, vector<8x128xbf16>,
    %c8_i32_100 = arith.constant 8 : i32
    %216 = arith.muli %c4_i32, %c8_i32_100 : i32
    %c0_i32_101 = arith.constant 0 : i32
    %217 = arith.addi %c0_i32_101, %216 : i32
    %218 = tpu.assume_multiple %217, 8 : i32
    %219 = arith.index_cast %218 : i32 to index
    %c0_102 = arith.constant 0 : index
    %220 = vector.load %arg8[%219, %c0_102] : memref<64x128xbf16, #tpu.memory_space<vmem>>, vector<8x128xbf16>
    tpu.vector_store %arg8[%219, %c0_102], %213 {strides = array<i32>} : memref<64x128xbf16, #tpu.memory_space<vmem>>, vector<8x128xbf16>,
    %c5_i32 = arith.constant 5 : i32
    %c8_i32_103 = arith.constant 8 : i32
    %221 = arith.muli %c5_i32, %c8_i32_103 : i32
    %222 = tpu.assume_multiple %221, 8 : i32
    %223 = arith.index_cast %222 : i32 to index
    %c0_104 = arith.constant 0 : index
    %224 = vector.load %arg9[%223, %c0_104] : memref<64x512xf32, #tpu.memory_space<vmem>>, vector<8x512xf32>
    %c0_105 = arith.constant 0 : index
    %c0_106 = arith.constant 0 : index
    %225 = vector.load %arg10[%c0_105, %c0_106] : memref<8x128xbf16, #tpu.memory_space<vmem>>, vector<8x128xbf16>
    %cst_107 = arith.constant dense<0.000000e+00> : vector<8x512xf32>
    %226 = tpu.matmul %225, %3, %cst_107 {dimension_numbers = #tpu.dot_dimension_numbers<[1], [0], [0], [1], [0, 0, 1, 1], [], []>} : vector<8x128xbf16>, vector<128x512xbf16>, vector<8x512xf32> -> vector<8x512xf32>
    %227 = arith.addf %224, %226 : vector<8x512xf32>
    %228 = vector.extract_strided_slice %227 {offsets = [0, 0], sizes = [8, 128], strides = [1, 1]} : vector<8x512xf32> to vector<8x128xf32>
    %229 = arith.negf %228 : vector<8x128xf32>
    %230 = math.exp %229 : vector<8x128xf32>
    %cst_108 = arith.constant 1.000000e+00 : f32
    %231 = vector.broadcast %cst_108 : f32 to vector<8x128xf32>
    %232 = arith.addf %231, %230 : vector<8x128xf32>
    %233 = arith.divf %231, %232 : vector<8x128xf32>
    %234 = vector.extract_strided_slice %227 {offsets = [0, 128], sizes = [8, 128], strides = [1, 1]} : vector<8x512xf32> to vector<8x128xf32>
    %235 = arith.negf %234 : vector<8x128xf32>
    %236 = math.exp %235 : vector<8x128xf32>
    %cst_109 = arith.constant 1.000000e+00 : f32
    %237 = vector.broadcast %cst_109 : f32 to vector<8x128xf32>
    %238 = arith.addf %237, %236 : vector<8x128xf32>
    %239 = arith.divf %237, %238 : vector<8x128xf32>
    %240 = vector.extract_strided_slice %227 {offsets = [0, 256], sizes = [8, 128], strides = [1, 1]} : vector<8x512xf32> to vector<8x128xf32>
    %241 = math.tanh %240 : vector<8x128xf32>
    %242 = vector.extract_strided_slice %227 {offsets = [0, 384], sizes = [8, 128], strides = [1, 1]} : vector<8x512xf32> to vector<8x128xf32>
    %243 = arith.negf %242 : vector<8x128xf32>
    %244 = math.exp %243 : vector<8x128xf32>
    %cst_110 = arith.constant 1.000000e+00 : f32
    %245 = vector.broadcast %cst_110 : f32 to vector<8x128xf32>
    %246 = arith.addf %245, %244 : vector<8x128xf32>
    %247 = arith.divf %245, %246 : vector<8x128xf32>
    %c0_111 = arith.constant 0 : index
    %c0_112 = arith.constant 0 : index
    %248 = vector.load %arg11[%c0_111, %c0_112] : memref<8x128xf32, #tpu.memory_space<vmem>>, vector<8x128xf32>
    %249 = arith.mulf %239, %248 : vector<8x128xf32>
    %250 = arith.mulf %233, %241 : vector<8x128xf32>
    %251 = arith.addf %249, %250 : vector<8x128xf32>
    %252 = math.tanh %251 : vector<8x128xf32>
    %253 = arith.mulf %247, %252 : vector<8x128xf32>
    %254 = arith.truncf %253 : vector<8x128xf32> to vector<8x128xbf16>
    %c0_113 = arith.constant 0 : index
    %c0_114 = arith.constant 0 : index
    %255 = vector.load %arg11[%c0_113, %c0_114] : memref<8x128xf32, #tpu.memory_space<vmem>>, vector<8x128xf32>
    tpu.vector_store %arg11[%c0_113, %c0_114], %251 {strides = array<i32>} : memref<8x128xf32, #tpu.memory_space<vmem>>, vector<8x128xf32>,
    %c0_115 = arith.constant 0 : index
    %c0_116 = arith.constant 0 : index
    %256 = vector.load %arg10[%c0_115, %c0_116] : memref<8x128xbf16, #tpu.memory_space<vmem>>, vector<8x128xbf16>
    tpu.vector_store %arg10[%c0_115, %c0_116], %254 {strides = array<i32>} : memref<8x128xbf16, #tpu.memory_space<vmem>>, vector<8x128xbf16>,
    %c8_i32_117 = arith.constant 8 : i32
    %257 = arith.muli %c5_i32, %c8_i32_117 : i32
    %c0_i32_118 = arith.constant 0 : i32
    %258 = arith.addi %c0_i32_118, %257 : i32
    %259 = tpu.assume_multiple %258, 8 : i32
    %260 = arith.index_cast %259 : i32 to index
    %c0_119 = arith.constant 0 : index
    %261 = vector.load %arg8[%260, %c0_119] : memref<64x128xbf16, #tpu.memory_space<vmem>>, vector<8x128xbf16>
    tpu.vector_store %arg8[%260, %c0_119], %254 {strides = array<i32>} : memref<64x128xbf16, #tpu.memory_space<vmem>>, vector<8x128xbf16>,
    %c6_i32 = arith.constant 6 : i32
    %c8_i32_120 = arith.constant 8 : i32
    %262 = arith.muli %c6_i32, %c8_i32_120 : i32
    %263 = tpu.assume_multiple %262, 8 : i32
    %264 = arith.index_cast %263 : i32 to index
    %c0_121 = arith.constant 0 : index
    %265 = vector.load %arg9[%264, %c0_121] : memref<64x512xf32, #tpu.memory_space<vmem>>, vector<8x512xf32>
    %c0_122 = arith.constant 0 : index
    %c0_123 = arith.constant 0 : index
    %266 = vector.load %arg10[%c0_122, %c0_123] : memref<8x128xbf16, #tpu.memory_space<vmem>>, vector<8x128xbf16>
    %cst_124 = arith.constant dense<0.000000e+00> : vector<8x512xf32>
    %267 = tpu.matmul %266, %3, %cst_124 {dimension_numbers = #tpu.dot_dimension_numbers<[1], [0], [0], [1], [0, 0, 1, 1], [], []>} : vector<8x128xbf16>, vector<128x512xbf16>, vector<8x512xf32> -> vector<8x512xf32>
    %268 = arith.addf %265, %267 : vector<8x512xf32>
    %269 = vector.extract_strided_slice %268 {offsets = [0, 0], sizes = [8, 128], strides = [1, 1]} : vector<8x512xf32> to vector<8x128xf32>
    %270 = arith.negf %269 : vector<8x128xf32>
    %271 = math.exp %270 : vector<8x128xf32>
    %cst_125 = arith.constant 1.000000e+00 : f32
    %272 = vector.broadcast %cst_125 : f32 to vector<8x128xf32>
    %273 = arith.addf %272, %271 : vector<8x128xf32>
    %274 = arith.divf %272, %273 : vector<8x128xf32>
    %275 = vector.extract_strided_slice %268 {offsets = [0, 128], sizes = [8, 128], strides = [1, 1]} : vector<8x512xf32> to vector<8x128xf32>
    %276 = arith.negf %275 : vector<8x128xf32>
    %277 = math.exp %276 : vector<8x128xf32>
    %cst_126 = arith.constant 1.000000e+00 : f32
    %278 = vector.broadcast %cst_126 : f32 to vector<8x128xf32>
    %279 = arith.addf %278, %277 : vector<8x128xf32>
    %280 = arith.divf %278, %279 : vector<8x128xf32>
    %281 = vector.extract_strided_slice %268 {offsets = [0, 256], sizes = [8, 128], strides = [1, 1]} : vector<8x512xf32> to vector<8x128xf32>
    %282 = math.tanh %281 : vector<8x128xf32>
    %283 = vector.extract_strided_slice %268 {offsets = [0, 384], sizes = [8, 128], strides = [1, 1]} : vector<8x512xf32> to vector<8x128xf32>
    %284 = arith.negf %283 : vector<8x128xf32>
    %285 = math.exp %284 : vector<8x128xf32>
    %cst_127 = arith.constant 1.000000e+00 : f32
    %286 = vector.broadcast %cst_127 : f32 to vector<8x128xf32>
    %287 = arith.addf %286, %285 : vector<8x128xf32>
    %288 = arith.divf %286, %287 : vector<8x128xf32>
    %c0_128 = arith.constant 0 : index
    %c0_129 = arith.constant 0 : index
    %289 = vector.load %arg11[%c0_128, %c0_129] : memref<8x128xf32, #tpu.memory_space<vmem>>, vector<8x128xf32>
    %290 = arith.mulf %280, %289 : vector<8x128xf32>
    %291 = arith.mulf %274, %282 : vector<8x128xf32>
    %292 = arith.addf %290, %291 : vector<8x128xf32>
    %293 = math.tanh %292 : vector<8x128xf32>
    %294 = arith.mulf %288, %293 : vector<8x128xf32>
    %295 = arith.truncf %294 : vector<8x128xf32> to vector<8x128xbf16>
    %c0_130 = arith.constant 0 : index
    %c0_131 = arith.constant 0 : index
    %296 = vector.load %arg11[%c0_130, %c0_131] : memref<8x128xf32, #tpu.memory_space<vmem>>, vector<8x128xf32>
    tpu.vector_store %arg11[%c0_130, %c0_131], %292 {strides = array<i32>} : memref<8x128xf32, #tpu.memory_space<vmem>>, vector<8x128xf32>,
    %c0_132 = arith.constant 0 : index
    %c0_133 = arith.constant 0 : index
    %297 = vector.load %arg10[%c0_132, %c0_133] : memref<8x128xbf16, #tpu.memory_space<vmem>>, vector<8x128xbf16>
    tpu.vector_store %arg10[%c0_132, %c0_133], %295 {strides = array<i32>} : memref<8x128xbf16, #tpu.memory_space<vmem>>, vector<8x128xbf16>,
    %c8_i32_134 = arith.constant 8 : i32
    %298 = arith.muli %c6_i32, %c8_i32_134 : i32
    %c0_i32_135 = arith.constant 0 : i32
    %299 = arith.addi %c0_i32_135, %298 : i32
    %300 = tpu.assume_multiple %299, 8 : i32
    %301 = arith.index_cast %300 : i32 to index
    %c0_136 = arith.constant 0 : index
    %302 = vector.load %arg8[%301, %c0_136] : memref<64x128xbf16, #tpu.memory_space<vmem>>, vector<8x128xbf16>
    tpu.vector_store %arg8[%301, %c0_136], %295 {strides = array<i32>} : memref<64x128xbf16, #tpu.memory_space<vmem>>, vector<8x128xbf16>,
    %c7_i32 = arith.constant 7 : i32
    %c8_i32_137 = arith.constant 8 : i32
    %303 = arith.muli %c7_i32, %c8_i32_137 : i32
    %304 = tpu.assume_multiple %303, 8 : i32
    %305 = arith.index_cast %304 : i32 to index
    %c0_138 = arith.constant 0 : index
    %306 = vector.load %arg9[%305, %c0_138] : memref<64x512xf32, #tpu.memory_space<vmem>>, vector<8x512xf32>
    %c0_139 = arith.constant 0 : index
    %c0_140 = arith.constant 0 : index
    %307 = vector.load %arg10[%c0_139, %c0_140] : memref<8x128xbf16, #tpu.memory_space<vmem>>, vector<8x128xbf16>
    %cst_141 = arith.constant dense<0.000000e+00> : vector<8x512xf32>
    %308 = tpu.matmul %307, %3, %cst_141 {dimension_numbers = #tpu.dot_dimension_numbers<[1], [0], [0], [1], [0, 0, 1, 1], [], []>} : vector<8x128xbf16>, vector<128x512xbf16>, vector<8x512xf32> -> vector<8x512xf32>
    %309 = arith.addf %306, %308 : vector<8x512xf32>
    %310 = vector.extract_strided_slice %309 {offsets = [0, 0], sizes = [8, 128], strides = [1, 1]} : vector<8x512xf32> to vector<8x128xf32>
    %311 = arith.negf %310 : vector<8x128xf32>
    %312 = math.exp %311 : vector<8x128xf32>
    %cst_142 = arith.constant 1.000000e+00 : f32
    %313 = vector.broadcast %cst_142 : f32 to vector<8x128xf32>
    %314 = arith.addf %313, %312 : vector<8x128xf32>
    %315 = arith.divf %313, %314 : vector<8x128xf32>
    %316 = vector.extract_strided_slice %309 {offsets = [0, 128], sizes = [8, 128], strides = [1, 1]} : vector<8x512xf32> to vector<8x128xf32>
    %317 = arith.negf %316 : vector<8x128xf32>
    %318 = math.exp %317 : vector<8x128xf32>
    %cst_143 = arith.constant 1.000000e+00 : f32
    %319 = vector.broadcast %cst_143 : f32 to vector<8x128xf32>
    %320 = arith.addf %319, %318 : vector<8x128xf32>
    %321 = arith.divf %319, %320 : vector<8x128xf32>
    %322 = vector.extract_strided_slice %309 {offsets = [0, 256], sizes = [8, 128], strides = [1, 1]} : vector<8x512xf32> to vector<8x128xf32>
    %323 = math.tanh %322 : vector<8x128xf32>
    %324 = vector.extract_strided_slice %309 {offsets = [0, 384], sizes = [8, 128], strides = [1, 1]} : vector<8x512xf32> to vector<8x128xf32>
    %325 = arith.negf %324 : vector<8x128xf32>
    %326 = math.exp %325 : vector<8x128xf32>
    %cst_144 = arith.constant 1.000000e+00 : f32
    %327 = vector.broadcast %cst_144 : f32 to vector<8x128xf32>
    %328 = arith.addf %327, %326 : vector<8x128xf32>
    %329 = arith.divf %327, %328 : vector<8x128xf32>
    %c0_145 = arith.constant 0 : index
    %c0_146 = arith.constant 0 : index
    %330 = vector.load %arg11[%c0_145, %c0_146] : memref<8x128xf32, #tpu.memory_space<vmem>>, vector<8x128xf32>
    %331 = arith.mulf %321, %330 : vector<8x128xf32>
    %332 = arith.mulf %315, %323 : vector<8x128xf32>
    %333 = arith.addf %331, %332 : vector<8x128xf32>
    %334 = math.tanh %333 : vector<8x128xf32>
    %335 = arith.mulf %329, %334 : vector<8x128xf32>
    %336 = arith.truncf %335 : vector<8x128xf32> to vector<8x128xbf16>
    %c0_147 = arith.constant 0 : index
    %c0_148 = arith.constant 0 : index
    %337 = vector.load %arg11[%c0_147, %c0_148] : memref<8x128xf32, #tpu.memory_space<vmem>>, vector<8x128xf32>
    tpu.vector_store %arg11[%c0_147, %c0_148], %333 {strides = array<i32>} : memref<8x128xf32, #tpu.memory_space<vmem>>, vector<8x128xf32>,
    %c0_149 = arith.constant 0 : index
    %c0_150 = arith.constant 0 : index
    %338 = vector.load %arg10[%c0_149, %c0_150] : memref<8x128xbf16, #tpu.memory_space<vmem>>, vector<8x128xbf16>
    tpu.vector_store %arg10[%c0_149, %c0_150], %336 {strides = array<i32>} : memref<8x128xbf16, #tpu.memory_space<vmem>>, vector<8x128xbf16>,
    %c8_i32_151 = arith.constant 8 : i32
    %339 = arith.muli %c7_i32, %c8_i32_151 : i32
    %c0_i32_152 = arith.constant 0 : i32
    %340 = arith.addi %c0_i32_152, %339 : i32
    %341 = tpu.assume_multiple %340, 8 : i32
    %342 = arith.index_cast %341 : i32 to index
    %c0_153 = arith.constant 0 : index
    %343 = vector.load %arg8[%342, %c0_153] : memref<64x128xbf16, #tpu.memory_space<vmem>>, vector<8x128xbf16>
    tpu.vector_store %arg8[%342, %c0_153], %336 {strides = array<i32>} : memref<64x128xbf16, #tpu.memory_space<vmem>>, vector<8x128xbf16>,
    %c8_i32_154 = arith.constant 8 : i32
    %c1 = arith.constant 1 : index
    %c0_155 = arith.constant 0 : index
    %c0_156 = arith.constant 0 : index
    %344 = vector.load %arg2[%c1, %c0_155, %c0_156] : memref<2x128x512xbf16, #tpu.memory_space<vmem>>, vector<1x128x512xbf16>
    %345 = vector.shape_cast %344 : vector<1x128x512xbf16> to vector<128x512xbf16>
    %c1_157 = arith.constant 1 : index
    %c0_158 = arith.constant 0 : index
    %c0_159 = arith.constant 0 : index
    %346 = vector.load %arg3[%c1_157, %c0_158, %c0_159] : memref<2x128x512xbf16, #tpu.memory_space<vmem>>, vector<1x128x512xbf16>
    %347 = vector.shape_cast %346 : vector<1x128x512xbf16> to vector<128x512xbf16>
    %c1_160 = arith.constant 1 : index
    %c0_161 = arith.constant 0 : index
    %c0_162 = arith.constant 0 : index
    %348 = vector.load %arg4[%c1_160, %c0_161, %c0_162] : memref<2x1x512xf32, #tpu.memory_space<vmem>>, vector<1x1x512xf32>
    %349 = vector.shape_cast %348 : vector<1x1x512xf32> to vector<1x512xf32>
    %cst_163 = arith.constant 0.000000e+00 : bf16
    %350 = vector.broadcast %cst_163 : bf16 to vector<8x128xbf16>
    %c0_164 = arith.constant 0 : index
    %c0_165 = arith.constant 0 : index
    %351 = vector.load %arg10[%c0_164, %c0_165] : memref<8x128xbf16, #tpu.memory_space<vmem>>, vector<8x128xbf16>
    tpu.vector_store %arg10[%c0_164, %c0_165], %350 {strides = array<i32>} : memref<8x128xbf16, #tpu.memory_space<vmem>>, vector<8x128xbf16>,
    %cst_166 = arith.constant 0.000000e+00 : f32
    %352 = vector.broadcast %cst_166 : f32 to vector<8x128xf32>
    %c0_167 = arith.constant 0 : index
    %c0_168 = arith.constant 0 : index
    %353 = vector.load %arg11[%c0_167, %c0_168] : memref<8x128xf32, #tpu.memory_space<vmem>>, vector<8x128xf32>
    tpu.vector_store %arg11[%c0_167, %c0_168], %352 {strides = array<i32>} : memref<8x128xf32, #tpu.memory_space<vmem>>, vector<8x128xf32>,
    %c0_169 = arith.constant 0 : index
    %c0_170 = arith.constant 0 : index
    %354 = vector.load %arg8[%c0_169, %c0_170] : memref<64x128xbf16, #tpu.memory_space<vmem>>, vector<64x128xbf16>
    %cst_171 = arith.constant dense<0.000000e+00> : vector<64x512xf32>
    %355 = tpu.matmul %354, %345, %cst_171 {dimension_numbers = #tpu.dot_dimension_numbers<[1], [0], [0], [1], [0, 0, 1, 1], [], []>} : vector<64x128xbf16>, vector<128x512xbf16>, vector<64x512xf32> -> vector<64x512xf32>
    %356 = vector.broadcast %349 : vector<1x512xf32> to vector<64x512xf32>
    %357 = arith.addf %355, %356 : vector<64x512xf32>
    %c0_172 = arith.constant 0 : index
    %c0_173 = arith.constant 0 : index
    %358 = vector.load %arg9[%c0_172, %c0_173] : memref<64x512xf32, #tpu.memory_space<vmem>>, vector<64x512xf32>
    tpu.vector_store %arg9[%c0_172, %c0_173], %357 {strides = array<i32>} : memref<64x512xf32, #tpu.memory_space<vmem>>, vector<64x512xf32>,
    %c0_i32_174 = arith.constant 0 : i32
    %c8_i32_175 = arith.constant 8 : i32
    %359 = arith.muli %c0_i32_174, %c8_i32_175 : i32
    %360 = tpu.assume_multiple %359, 8 : i32
    %361 = arith.index_cast %360 : i32 to index
    %c0_176 = arith.constant 0 : index
    %362 = vector.load %arg9[%361, %c0_176] : memref<64x512xf32, #tpu.memory_space<vmem>>, vector<8x512xf32>
    %c0_177 = arith.constant 0 : index
    %c0_178 = arith.constant 0 : index
    %363 = vector.load %arg10[%c0_177, %c0_178] : memref<8x128xbf16, #tpu.memory_space<vmem>>, vector<8x128xbf16>
    %cst_179 = arith.constant dense<0.000000e+00> : vector<8x512xf32>
    %364 = tpu.matmul %363, %347, %cst_179 {dimension_numbers = #tpu.dot_dimension_numbers<[1], [0], [0], [1], [0, 0, 1, 1], [], []>} : vector<8x128xbf16>, vector<128x512xbf16>, vector<8x512xf32> -> vector<8x512xf32>
    %365 = arith.addf %362, %364 : vector<8x512xf32>
    %366 = vector.extract_strided_slice %365 {offsets = [0, 0], sizes = [8, 128], strides = [1, 1]} : vector<8x512xf32> to vector<8x128xf32>
    %367 = arith.negf %366 : vector<8x128xf32>
    %368 = math.exp %367 : vector<8x128xf32>
    %cst_180 = arith.constant 1.000000e+00 : f32
    %369 = vector.broadcast %cst_180 : f32 to vector<8x128xf32>
    %370 = arith.addf %369, %368 : vector<8x128xf32>
    %371 = arith.divf %369, %370 : vector<8x128xf32>
    %372 = vector.extract_strided_slice %365 {offsets = [0, 128], sizes = [8, 128], strides = [1, 1]} : vector<8x512xf32> to vector<8x128xf32>
    %373 = arith.negf %372 : vector<8x128xf32>
    %374 = math.exp %373 : vector<8x128xf32>
    %cst_181 = arith.constant 1.000000e+00 : f32
    %375 = vector.broadcast %cst_181 : f32 to vector<8x128xf32>
    %376 = arith.addf %375, %374 : vector<8x128xf32>
    %377 = arith.divf %375, %376 : vector<8x128xf32>
    %378 = vector.extract_strided_slice %365 {offsets = [0, 256], sizes = [8, 128], strides = [1, 1]} : vector<8x512xf32> to vector<8x128xf32>
    %379 = math.tanh %378 : vector<8x128xf32>
    %380 = vector.extract_strided_slice %365 {offsets = [0, 384], sizes = [8, 128], strides = [1, 1]} : vector<8x512xf32> to vector<8x128xf32>
    %381 = arith.negf %380 : vector<8x128xf32>
    %382 = math.exp %381 : vector<8x128xf32>
    %cst_182 = arith.constant 1.000000e+00 : f32
    %383 = vector.broadcast %cst_182 : f32 to vector<8x128xf32>
    %384 = arith.addf %383, %382 : vector<8x128xf32>
    %385 = arith.divf %383, %384 : vector<8x128xf32>
    %c0_183 = arith.constant 0 : index
    %c0_184 = arith.constant 0 : index
    %386 = vector.load %arg11[%c0_183, %c0_184] : memref<8x128xf32, #tpu.memory_space<vmem>>, vector<8x128xf32>
    %387 = arith.mulf %377, %386 : vector<8x128xf32>
    %388 = arith.mulf %371, %379 : vector<8x128xf32>
    %389 = arith.addf %387, %388 : vector<8x128xf32>
    %390 = math.tanh %389 : vector<8x128xf32>
    %391 = arith.mulf %385, %390 : vector<8x128xf32>
    %392 = arith.truncf %391 : vector<8x128xf32> to vector<8x128xbf16>
    %c0_185 = arith.constant 0 : index
    %c0_186 = arith.constant 0 : index
    %393 = vector.load %arg11[%c0_185, %c0_186] : memref<8x128xf32, #tpu.memory_space<vmem>>, vector<8x128xf32>
    tpu.vector_store %arg11[%c0_185, %c0_186], %389 {strides = array<i32>} : memref<8x128xf32, #tpu.memory_space<vmem>>, vector<8x128xf32>,
    %c0_187 = arith.constant 0 : index
    %c0_188 = arith.constant 0 : index
    %394 = vector.load %arg10[%c0_187, %c0_188] : memref<8x128xbf16, #tpu.memory_space<vmem>>, vector<8x128xbf16>
    tpu.vector_store %arg10[%c0_187, %c0_188], %392 {strides = array<i32>} : memref<8x128xbf16, #tpu.memory_space<vmem>>, vector<8x128xbf16>,
    %c1_i32_189 = arith.constant 1 : i32
    %c8_i32_190 = arith.constant 8 : i32
    %395 = arith.muli %c1_i32_189, %c8_i32_190 : i32
    %396 = tpu.assume_multiple %395, 8 : i32
    %397 = arith.index_cast %396 : i32 to index
    %c0_191 = arith.constant 0 : index
    %398 = vector.load %arg9[%397, %c0_191] : memref<64x512xf32, #tpu.memory_space<vmem>>, vector<8x512xf32>
    %c0_192 = arith.constant 0 : index
    %c0_193 = arith.constant 0 : index
    %399 = vector.load %arg10[%c0_192, %c0_193] : memref<8x128xbf16, #tpu.memory_space<vmem>>, vector<8x128xbf16>
    %cst_194 = arith.constant dense<0.000000e+00> : vector<8x512xf32>
    %400 = tpu.matmul %399, %347, %cst_194 {dimension_numbers = #tpu.dot_dimension_numbers<[1], [0], [0], [1], [0, 0, 1, 1], [], []>} : vector<8x128xbf16>, vector<128x512xbf16>, vector<8x512xf32> -> vector<8x512xf32>
    %401 = arith.addf %398, %400 : vector<8x512xf32>
    %402 = vector.extract_strided_slice %401 {offsets = [0, 0], sizes = [8, 128], strides = [1, 1]} : vector<8x512xf32> to vector<8x128xf32>
    %403 = arith.negf %402 : vector<8x128xf32>
    %404 = math.exp %403 : vector<8x128xf32>
    %cst_195 = arith.constant 1.000000e+00 : f32
    %405 = vector.broadcast %cst_195 : f32 to vector<8x128xf32>
    %406 = arith.addf %405, %404 : vector<8x128xf32>
    %407 = arith.divf %405, %406 : vector<8x128xf32>
    %408 = vector.extract_strided_slice %401 {offsets = [0, 128], sizes = [8, 128], strides = [1, 1]} : vector<8x512xf32> to vector<8x128xf32>
    %409 = arith.negf %408 : vector<8x128xf32>
    %410 = math.exp %409 : vector<8x128xf32>
    %cst_196 = arith.constant 1.000000e+00 : f32
    %411 = vector.broadcast %cst_196 : f32 to vector<8x128xf32>
    %412 = arith.addf %411, %410 : vector<8x128xf32>
    %413 = arith.divf %411, %412 : vector<8x128xf32>
    %414 = vector.extract_strided_slice %401 {offsets = [0, 256], sizes = [8, 128], strides = [1, 1]} : vector<8x512xf32> to vector<8x128xf32>
    %415 = math.tanh %414 : vector<8x128xf32>
    %416 = vector.extract_strided_slice %401 {offsets = [0, 384], sizes = [8, 128], strides = [1, 1]} : vector<8x512xf32> to vector<8x128xf32>
    %417 = arith.negf %416 : vector<8x128xf32>
    %418 = math.exp %417 : vector<8x128xf32>
    %cst_197 = arith.constant 1.000000e+00 : f32
    %419 = vector.broadcast %cst_197 : f32 to vector<8x128xf32>
    %420 = arith.addf %419, %418 : vector<8x128xf32>
    %421 = arith.divf %419, %420 : vector<8x128xf32>
    %c0_198 = arith.constant 0 : index
    %c0_199 = arith.constant 0 : index
    %422 = vector.load %arg11[%c0_198, %c0_199] : memref<8x128xf32, #tpu.memory_space<vmem>>, vector<8x128xf32>
    %423 = arith.mulf %413, %422 : vector<8x128xf32>
    %424 = arith.mulf %407, %415 : vector<8x128xf32>
    %425 = arith.addf %423, %424 : vector<8x128xf32>
    %426 = math.tanh %425 : vector<8x128xf32>
    %427 = arith.mulf %421, %426 : vector<8x128xf32>
    %428 = arith.truncf %427 : vector<8x128xf32> to vector<8x128xbf16>
    %c0_200 = arith.constant 0 : index
    %c0_201 = arith.constant 0 : index
    %429 = vector.load %arg11[%c0_200, %c0_201] : memref<8x128xf32, #tpu.memory_space<vmem>>, vector<8x128xf32>
    tpu.vector_store %arg11[%c0_200, %c0_201], %425 {strides = array<i32>} : memref<8x128xf32, #tpu.memory_space<vmem>>, vector<8x128xf32>,
    %c0_202 = arith.constant 0 : index
    %c0_203 = arith.constant 0 : index
    %430 = vector.load %arg10[%c0_202, %c0_203] : memref<8x128xbf16, #tpu.memory_space<vmem>>, vector<8x128xbf16>
    tpu.vector_store %arg10[%c0_202, %c0_203], %428 {strides = array<i32>} : memref<8x128xbf16, #tpu.memory_space<vmem>>, vector<8x128xbf16>,
    %c2_i32_204 = arith.constant 2 : i32
    %c8_i32_205 = arith.constant 8 : i32
    %431 = arith.muli %c2_i32_204, %c8_i32_205 : i32
    %432 = tpu.assume_multiple %431, 8 : i32
    %433 = arith.index_cast %432 : i32 to index
    %c0_206 = arith.constant 0 : index
    %434 = vector.load %arg9[%433, %c0_206] : memref<64x512xf32, #tpu.memory_space<vmem>>, vector<8x512xf32>
    %c0_207 = arith.constant 0 : index
    %c0_208 = arith.constant 0 : index
    %435 = vector.load %arg10[%c0_207, %c0_208] : memref<8x128xbf16, #tpu.memory_space<vmem>>, vector<8x128xbf16>
    %cst_209 = arith.constant dense<0.000000e+00> : vector<8x512xf32>
    %436 = tpu.matmul %435, %347, %cst_209 {dimension_numbers = #tpu.dot_dimension_numbers<[1], [0], [0], [1], [0, 0, 1, 1], [], []>} : vector<8x128xbf16>, vector<128x512xbf16>, vector<8x512xf32> -> vector<8x512xf32>
    %437 = arith.addf %434, %436 : vector<8x512xf32>
    %438 = vector.extract_strided_slice %437 {offsets = [0, 0], sizes = [8, 128], strides = [1, 1]} : vector<8x512xf32> to vector<8x128xf32>
    %439 = arith.negf %438 : vector<8x128xf32>
    %440 = math.exp %439 : vector<8x128xf32>
    %cst_210 = arith.constant 1.000000e+00 : f32
    %441 = vector.broadcast %cst_210 : f32 to vector<8x128xf32>
    %442 = arith.addf %441, %440 : vector<8x128xf32>
    %443 = arith.divf %441, %442 : vector<8x128xf32>
    %444 = vector.extract_strided_slice %437 {offsets = [0, 128], sizes = [8, 128], strides = [1, 1]} : vector<8x512xf32> to vector<8x128xf32>
    %445 = arith.negf %444 : vector<8x128xf32>
    %446 = math.exp %445 : vector<8x128xf32>
    %cst_211 = arith.constant 1.000000e+00 : f32
    %447 = vector.broadcast %cst_211 : f32 to vector<8x128xf32>
    %448 = arith.addf %447, %446 : vector<8x128xf32>
    %449 = arith.divf %447, %448 : vector<8x128xf32>
    %450 = vector.extract_strided_slice %437 {offsets = [0, 256], sizes = [8, 128], strides = [1, 1]} : vector<8x512xf32> to vector<8x128xf32>
    %451 = math.tanh %450 : vector<8x128xf32>
    %452 = vector.extract_strided_slice %437 {offsets = [0, 384], sizes = [8, 128], strides = [1, 1]} : vector<8x512xf32> to vector<8x128xf32>
    %453 = arith.negf %452 : vector<8x128xf32>
    %454 = math.exp %453 : vector<8x128xf32>
    %cst_212 = arith.constant 1.000000e+00 : f32
    %455 = vector.broadcast %cst_212 : f32 to vector<8x128xf32>
    %456 = arith.addf %455, %454 : vector<8x128xf32>
    %457 = arith.divf %455, %456 : vector<8x128xf32>
    %c0_213 = arith.constant 0 : index
    %c0_214 = arith.constant 0 : index
    %458 = vector.load %arg11[%c0_213, %c0_214] : memref<8x128xf32, #tpu.memory_space<vmem>>, vector<8x128xf32>
    %459 = arith.mulf %449, %458 : vector<8x128xf32>
    %460 = arith.mulf %443, %451 : vector<8x128xf32>
    %461 = arith.addf %459, %460 : vector<8x128xf32>
    %462 = math.tanh %461 : vector<8x128xf32>
    %463 = arith.mulf %457, %462 : vector<8x128xf32>
    %464 = arith.truncf %463 : vector<8x128xf32> to vector<8x128xbf16>
    %c0_215 = arith.constant 0 : index
    %c0_216 = arith.constant 0 : index
    %465 = vector.load %arg11[%c0_215, %c0_216] : memref<8x128xf32, #tpu.memory_space<vmem>>, vector<8x128xf32>
    tpu.vector_store %arg11[%c0_215, %c0_216], %461 {strides = array<i32>} : memref<8x128xf32, #tpu.memory_space<vmem>>, vector<8x128xf32>,
    %c0_217 = arith.constant 0 : index
    %c0_218 = arith.constant 0 : index
    %466 = vector.load %arg10[%c0_217, %c0_218] : memref<8x128xbf16, #tpu.memory_space<vmem>>, vector<8x128xbf16>
    tpu.vector_store %arg10[%c0_217, %c0_218], %464 {strides = array<i32>} : memref<8x128xbf16, #tpu.memory_space<vmem>>, vector<8x128xbf16>,
    %c3_i32_219 = arith.constant 3 : i32
    %c8_i32_220 = arith.constant 8 : i32
    %467 = arith.muli %c3_i32_219, %c8_i32_220 : i32
    %468 = tpu.assume_multiple %467, 8 : i32
    %469 = arith.index_cast %468 : i32 to index
    %c0_221 = arith.constant 0 : index
    %470 = vector.load %arg9[%469, %c0_221] : memref<64x512xf32, #tpu.memory_space<vmem>>, vector<8x512xf32>
    %c0_222 = arith.constant 0 : index
    %c0_223 = arith.constant 0 : index
    %471 = vector.load %arg10[%c0_222, %c0_223] : memref<8x128xbf16, #tpu.memory_space<vmem>>, vector<8x128xbf16>
    %cst_224 = arith.constant dense<0.000000e+00> : vector<8x512xf32>
    %472 = tpu.matmul %471, %347, %cst_224 {dimension_numbers = #tpu.dot_dimension_numbers<[1], [0], [0], [1], [0, 0, 1, 1], [], []>} : vector<8x128xbf16>, vector<128x512xbf16>, vector<8x512xf32> -> vector<8x512xf32>
    %473 = arith.addf %470, %472 : vector<8x512xf32>
    %474 = vector.extract_strided_slice %473 {offsets = [0, 0], sizes = [8, 128], strides = [1, 1]} : vector<8x512xf32> to vector<8x128xf32>
    %475 = arith.negf %474 : vector<8x128xf32>
    %476 = math.exp %475 : vector<8x128xf32>
    %cst_225 = arith.constant 1.000000e+00 : f32
    %477 = vector.broadcast %cst_225 : f32 to vector<8x128xf32>
    %478 = arith.addf %477, %476 : vector<8x128xf32>
    %479 = arith.divf %477, %478 : vector<8x128xf32>
    %480 = vector.extract_strided_slice %473 {offsets = [0, 128], sizes = [8, 128], strides = [1, 1]} : vector<8x512xf32> to vector<8x128xf32>
    %481 = arith.negf %480 : vector<8x128xf32>
    %482 = math.exp %481 : vector<8x128xf32>
    %cst_226 = arith.constant 1.000000e+00 : f32
    %483 = vector.broadcast %cst_226 : f32 to vector<8x128xf32>
    %484 = arith.addf %483, %482 : vector<8x128xf32>
    %485 = arith.divf %483, %484 : vector<8x128xf32>
    %486 = vector.extract_strided_slice %473 {offsets = [0, 256], sizes = [8, 128], strides = [1, 1]} : vector<8x512xf32> to vector<8x128xf32>
    %487 = math.tanh %486 : vector<8x128xf32>
    %488 = vector.extract_strided_slice %473 {offsets = [0, 384], sizes = [8, 128], strides = [1, 1]} : vector<8x512xf32> to vector<8x128xf32>
    %489 = arith.negf %488 : vector<8x128xf32>
    %490 = math.exp %489 : vector<8x128xf32>
    %cst_227 = arith.constant 1.000000e+00 : f32
    %491 = vector.broadcast %cst_227 : f32 to vector<8x128xf32>
    %492 = arith.addf %491, %490 : vector<8x128xf32>
    %493 = arith.divf %491, %492 : vector<8x128xf32>
    %c0_228 = arith.constant 0 : index
    %c0_229 = arith.constant 0 : index
    %494 = vector.load %arg11[%c0_228, %c0_229] : memref<8x128xf32, #tpu.memory_space<vmem>>, vector<8x128xf32>
    %495 = arith.mulf %485, %494 : vector<8x128xf32>
    %496 = arith.mulf %479, %487 : vector<8x128xf32>
    %497 = arith.addf %495, %496 : vector<8x128xf32>
    %498 = math.tanh %497 : vector<8x128xf32>
    %499 = arith.mulf %493, %498 : vector<8x128xf32>
    %500 = arith.truncf %499 : vector<8x128xf32> to vector<8x128xbf16>
    %c0_230 = arith.constant 0 : index
    %c0_231 = arith.constant 0 : index
    %501 = vector.load %arg11[%c0_230, %c0_231] : memref<8x128xf32, #tpu.memory_space<vmem>>, vector<8x128xf32>
    tpu.vector_store %arg11[%c0_230, %c0_231], %497 {strides = array<i32>} : memref<8x128xf32, #tpu.memory_space<vmem>>, vector<8x128xf32>,
    %c0_232 = arith.constant 0 : index
    %c0_233 = arith.constant 0 : index
    %502 = vector.load %arg10[%c0_232, %c0_233] : memref<8x128xbf16, #tpu.memory_space<vmem>>, vector<8x128xbf16>
    tpu.vector_store %arg10[%c0_232, %c0_233], %500 {strides = array<i32>} : memref<8x128xbf16, #tpu.memory_space<vmem>>, vector<8x128xbf16>,
    %c4_i32_234 = arith.constant 4 : i32
    %c8_i32_235 = arith.constant 8 : i32
    %503 = arith.muli %c4_i32_234, %c8_i32_235 : i32
    %504 = tpu.assume_multiple %503, 8 : i32
    %505 = arith.index_cast %504 : i32 to index
    %c0_236 = arith.constant 0 : index
    %506 = vector.load %arg9[%505, %c0_236] : memref<64x512xf32, #tpu.memory_space<vmem>>, vector<8x512xf32>
    %c0_237 = arith.constant 0 : index
    %c0_238 = arith.constant 0 : index
    %507 = vector.load %arg10[%c0_237, %c0_238] : memref<8x128xbf16, #tpu.memory_space<vmem>>, vector<8x128xbf16>
    %cst_239 = arith.constant dense<0.000000e+00> : vector<8x512xf32>
    %508 = tpu.matmul %507, %347, %cst_239 {dimension_numbers = #tpu.dot_dimension_numbers<[1], [0], [0], [1], [0, 0, 1, 1], [], []>} : vector<8x128xbf16>, vector<128x512xbf16>, vector<8x512xf32> -> vector<8x512xf32>
    %509 = arith.addf %506, %508 : vector<8x512xf32>
    %510 = vector.extract_strided_slice %509 {offsets = [0, 0], sizes = [8, 128], strides = [1, 1]} : vector<8x512xf32> to vector<8x128xf32>
    %511 = arith.negf %510 : vector<8x128xf32>
    %512 = math.exp %511 : vector<8x128xf32>
    %cst_240 = arith.constant 1.000000e+00 : f32
    %513 = vector.broadcast %cst_240 : f32 to vector<8x128xf32>
    %514 = arith.addf %513, %512 : vector<8x128xf32>
    %515 = arith.divf %513, %514 : vector<8x128xf32>
    %516 = vector.extract_strided_slice %509 {offsets = [0, 128], sizes = [8, 128], strides = [1, 1]} : vector<8x512xf32> to vector<8x128xf32>
    %517 = arith.negf %516 : vector<8x128xf32>
    %518 = math.exp %517 : vector<8x128xf32>
    %cst_241 = arith.constant 1.000000e+00 : f32
    %519 = vector.broadcast %cst_241 : f32 to vector<8x128xf32>
    %520 = arith.addf %519, %518 : vector<8x128xf32>
    %521 = arith.divf %519, %520 : vector<8x128xf32>
    %522 = vector.extract_strided_slice %509 {offsets = [0, 256], sizes = [8, 128], strides = [1, 1]} : vector<8x512xf32> to vector<8x128xf32>
    %523 = math.tanh %522 : vector<8x128xf32>
    %524 = vector.extract_strided_slice %509 {offsets = [0, 384], sizes = [8, 128], strides = [1, 1]} : vector<8x512xf32> to vector<8x128xf32>
    %525 = arith.negf %524 : vector<8x128xf32>
    %526 = math.exp %525 : vector<8x128xf32>
    %cst_242 = arith.constant 1.000000e+00 : f32
    %527 = vector.broadcast %cst_242 : f32 to vector<8x128xf32>
    %528 = arith.addf %527, %526 : vector<8x128xf32>
    %529 = arith.divf %527, %528 : vector<8x128xf32>
    %c0_243 = arith.constant 0 : index
    %c0_244 = arith.constant 0 : index
    %530 = vector.load %arg11[%c0_243, %c0_244] : memref<8x128xf32, #tpu.memory_space<vmem>>, vector<8x128xf32>
    %531 = arith.mulf %521, %530 : vector<8x128xf32>
    %532 = arith.mulf %515, %523 : vector<8x128xf32>
    %533 = arith.addf %531, %532 : vector<8x128xf32>
    %534 = math.tanh %533 : vector<8x128xf32>
    %535 = arith.mulf %529, %534 : vector<8x128xf32>
    %536 = arith.truncf %535 : vector<8x128xf32> to vector<8x128xbf16>
    %c0_245 = arith.constant 0 : index
    %c0_246 = arith.constant 0 : index
    %537 = vector.load %arg11[%c0_245, %c0_246] : memref<8x128xf32, #tpu.memory_space<vmem>>, vector<8x128xf32>
    tpu.vector_store %arg11[%c0_245, %c0_246], %533 {strides = array<i32>} : memref<8x128xf32, #tpu.memory_space<vmem>>, vector<8x128xf32>,
    %c0_247 = arith.constant 0 : index
    %c0_248 = arith.constant 0 : index
    %538 = vector.load %arg10[%c0_247, %c0_248] : memref<8x128xbf16, #tpu.memory_space<vmem>>, vector<8x128xbf16>
    tpu.vector_store %arg10[%c0_247, %c0_248], %536 {strides = array<i32>} : memref<8x128xbf16, #tpu.memory_space<vmem>>, vector<8x128xbf16>,
    %c5_i32_249 = arith.constant 5 : i32
    %c8_i32_250 = arith.constant 8 : i32
    %539 = arith.muli %c5_i32_249, %c8_i32_250 : i32
    %540 = tpu.assume_multiple %539, 8 : i32
    %541 = arith.index_cast %540 : i32 to index
    %c0_251 = arith.constant 0 : index
    %542 = vector.load %arg9[%541, %c0_251] : memref<64x512xf32, #tpu.memory_space<vmem>>, vector<8x512xf32>
    %c0_252 = arith.constant 0 : index
    %c0_253 = arith.constant 0 : index
    %543 = vector.load %arg10[%c0_252, %c0_253] : memref<8x128xbf16, #tpu.memory_space<vmem>>, vector<8x128xbf16>
    %cst_254 = arith.constant dense<0.000000e+00> : vector<8x512xf32>
    %544 = tpu.matmul %543, %347, %cst_254 {dimension_numbers = #tpu.dot_dimension_numbers<[1], [0], [0], [1], [0, 0, 1, 1], [], []>} : vector<8x128xbf16>, vector<128x512xbf16>, vector<8x512xf32> -> vector<8x512xf32>
    %545 = arith.addf %542, %544 : vector<8x512xf32>
    %546 = vector.extract_strided_slice %545 {offsets = [0, 0], sizes = [8, 128], strides = [1, 1]} : vector<8x512xf32> to vector<8x128xf32>
    %547 = arith.negf %546 : vector<8x128xf32>
    %548 = math.exp %547 : vector<8x128xf32>
    %cst_255 = arith.constant 1.000000e+00 : f32
    %549 = vector.broadcast %cst_255 : f32 to vector<8x128xf32>
    %550 = arith.addf %549, %548 : vector<8x128xf32>
    %551 = arith.divf %549, %550 : vector<8x128xf32>
    %552 = vector.extract_strided_slice %545 {offsets = [0, 128], sizes = [8, 128], strides = [1, 1]} : vector<8x512xf32> to vector<8x128xf32>
    %553 = arith.negf %552 : vector<8x128xf32>
    %554 = math.exp %553 : vector<8x128xf32>
    %cst_256 = arith.constant 1.000000e+00 : f32
    %555 = vector.broadcast %cst_256 : f32 to vector<8x128xf32>
    %556 = arith.addf %555, %554 : vector<8x128xf32>
    %557 = arith.divf %555, %556 : vector<8x128xf32>
    %558 = vector.extract_strided_slice %545 {offsets = [0, 256], sizes = [8, 128], strides = [1, 1]} : vector<8x512xf32> to vector<8x128xf32>
    %559 = math.tanh %558 : vector<8x128xf32>
    %560 = vector.extract_strided_slice %545 {offsets = [0, 384], sizes = [8, 128], strides = [1, 1]} : vector<8x512xf32> to vector<8x128xf32>
    %561 = arith.negf %560 : vector<8x128xf32>
    %562 = math.exp %561 : vector<8x128xf32>
    %cst_257 = arith.constant 1.000000e+00 : f32
    %563 = vector.broadcast %cst_257 : f32 to vector<8x128xf32>
    %564 = arith.addf %563, %562 : vector<8x128xf32>
    %565 = arith.divf %563, %564 : vector<8x128xf32>
    %c0_258 = arith.constant 0 : index
    %c0_259 = arith.constant 0 : index
    %566 = vector.load %arg11[%c0_258, %c0_259] : memref<8x128xf32, #tpu.memory_space<vmem>>, vector<8x128xf32>
    %567 = arith.mulf %557, %566 : vector<8x128xf32>
    %568 = arith.mulf %551, %559 : vector<8x128xf32>
    %569 = arith.addf %567, %568 : vector<8x128xf32>
    %570 = math.tanh %569 : vector<8x128xf32>
    %571 = arith.mulf %565, %570 : vector<8x128xf32>
    %572 = arith.truncf %571 : vector<8x128xf32> to vector<8x128xbf16>
    %c0_260 = arith.constant 0 : index
    %c0_261 = arith.constant 0 : index
    %573 = vector.load %arg11[%c0_260, %c0_261] : memref<8x128xf32, #tpu.memory_space<vmem>>, vector<8x128xf32>
    tpu.vector_store %arg11[%c0_260, %c0_261], %569 {strides = array<i32>} : memref<8x128xf32, #tpu.memory_space<vmem>>, vector<8x128xf32>,
    %c0_262 = arith.constant 0 : index
    %c0_263 = arith.constant 0 : index
    %574 = vector.load %arg10[%c0_262, %c0_263] : memref<8x128xbf16, #tpu.memory_space<vmem>>, vector<8x128xbf16>
    tpu.vector_store %arg10[%c0_262, %c0_263], %572 {strides = array<i32>} : memref<8x128xbf16, #tpu.memory_space<vmem>>, vector<8x128xbf16>,
    %c6_i32_264 = arith.constant 6 : i32
    %c8_i32_265 = arith.constant 8 : i32
    %575 = arith.muli %c6_i32_264, %c8_i32_265 : i32
    %576 = tpu.assume_multiple %575, 8 : i32
    %577 = arith.index_cast %576 : i32 to index
    %c0_266 = arith.constant 0 : index
    %578 = vector.load %arg9[%577, %c0_266] : memref<64x512xf32, #tpu.memory_space<vmem>>, vector<8x512xf32>
    %c0_267 = arith.constant 0 : index
    %c0_268 = arith.constant 0 : index
    %579 = vector.load %arg10[%c0_267, %c0_268] : memref<8x128xbf16, #tpu.memory_space<vmem>>, vector<8x128xbf16>
    %cst_269 = arith.constant dense<0.000000e+00> : vector<8x512xf32>
    %580 = tpu.matmul %579, %347, %cst_269 {dimension_numbers = #tpu.dot_dimension_numbers<[1], [0], [0], [1], [0, 0, 1, 1], [], []>} : vector<8x128xbf16>, vector<128x512xbf16>, vector<8x512xf32> -> vector<8x512xf32>
    %581 = arith.addf %578, %580 : vector<8x512xf32>
    %582 = vector.extract_strided_slice %581 {offsets = [0, 0], sizes = [8, 128], strides = [1, 1]} : vector<8x512xf32> to vector<8x128xf32>
    %583 = arith.negf %582 : vector<8x128xf32>
    %584 = math.exp %583 : vector<8x128xf32>
    %cst_270 = arith.constant 1.000000e+00 : f32
    %585 = vector.broadcast %cst_270 : f32 to vector<8x128xf32>
    %586 = arith.addf %585, %584 : vector<8x128xf32>
    %587 = arith.divf %585, %586 : vector<8x128xf32>
    %588 = vector.extract_strided_slice %581 {offsets = [0, 128], sizes = [8, 128], strides = [1, 1]} : vector<8x512xf32> to vector<8x128xf32>
    %589 = arith.negf %588 : vector<8x128xf32>
    %590 = math.exp %589 : vector<8x128xf32>
    %cst_271 = arith.constant 1.000000e+00 : f32
    %591 = vector.broadcast %cst_271 : f32 to vector<8x128xf32>
    %592 = arith.addf %591, %590 : vector<8x128xf32>
    %593 = arith.divf %591, %592 : vector<8x128xf32>
    %594 = vector.extract_strided_slice %581 {offsets = [0, 256], sizes = [8, 128], strides = [1, 1]} : vector<8x512xf32> to vector<8x128xf32>
    %595 = math.tanh %594 : vector<8x128xf32>
    %596 = vector.extract_strided_slice %581 {offsets = [0, 384], sizes = [8, 128], strides = [1, 1]} : vector<8x512xf32> to vector<8x128xf32>
    %597 = arith.negf %596 : vector<8x128xf32>
    %598 = math.exp %597 : vector<8x128xf32>
    %cst_272 = arith.constant 1.000000e+00 : f32
    %599 = vector.broadcast %cst_272 : f32 to vector<8x128xf32>
    %600 = arith.addf %599, %598 : vector<8x128xf32>
    %601 = arith.divf %599, %600 : vector<8x128xf32>
    %c0_273 = arith.constant 0 : index
    %c0_274 = arith.constant 0 : index
    %602 = vector.load %arg11[%c0_273, %c0_274] : memref<8x128xf32, #tpu.memory_space<vmem>>, vector<8x128xf32>
    %603 = arith.mulf %593, %602 : vector<8x128xf32>
    %604 = arith.mulf %587, %595 : vector<8x128xf32>
    %605 = arith.addf %603, %604 : vector<8x128xf32>
    %606 = math.tanh %605 : vector<8x128xf32>
    %607 = arith.mulf %601, %606 : vector<8x128xf32>
    %608 = arith.truncf %607 : vector<8x128xf32> to vector<8x128xbf16>
    %c0_275 = arith.constant 0 : index
    %c0_276 = arith.constant 0 : index
    %609 = vector.load %arg11[%c0_275, %c0_276] : memref<8x128xf32, #tpu.memory_space<vmem>>, vector<8x128xf32>
    tpu.vector_store %arg11[%c0_275, %c0_276], %605 {strides = array<i32>} : memref<8x128xf32, #tpu.memory_space<vmem>>, vector<8x128xf32>,
    %c0_277 = arith.constant 0 : index
    %c0_278 = arith.constant 0 : index
    %610 = vector.load %arg10[%c0_277, %c0_278] : memref<8x128xbf16, #tpu.memory_space<vmem>>, vector<8x128xbf16>
    tpu.vector_store %arg10[%c0_277, %c0_278], %608 {strides = array<i32>} : memref<8x128xbf16, #tpu.memory_space<vmem>>, vector<8x128xbf16>,
    %c7_i32_279 = arith.constant 7 : i32
    %c8_i32_280 = arith.constant 8 : i32
    %611 = arith.muli %c7_i32_279, %c8_i32_280 : i32
    %612 = tpu.assume_multiple %611, 8 : i32
    %613 = arith.index_cast %612 : i32 to index
    %c0_281 = arith.constant 0 : index
    %614 = vector.load %arg9[%613, %c0_281] : memref<64x512xf32, #tpu.memory_space<vmem>>, vector<8x512xf32>
    %c0_282 = arith.constant 0 : index
    %c0_283 = arith.constant 0 : index
    %615 = vector.load %arg10[%c0_282, %c0_283] : memref<8x128xbf16, #tpu.memory_space<vmem>>, vector<8x128xbf16>
    %cst_284 = arith.constant dense<0.000000e+00> : vector<8x512xf32>
    %616 = tpu.matmul %615, %347, %cst_284 {dimension_numbers = #tpu.dot_dimension_numbers<[1], [0], [0], [1], [0, 0, 1, 1], [], []>} : vector<8x128xbf16>, vector<128x512xbf16>, vector<8x512xf32> -> vector<8x512xf32>
    %617 = arith.addf %614, %616 : vector<8x512xf32>
    %618 = vector.extract_strided_slice %617 {offsets = [0, 0], sizes = [8, 128], strides = [1, 1]} : vector<8x512xf32> to vector<8x128xf32>
    %619 = arith.negf %618 : vector<8x128xf32>
    %620 = math.exp %619 : vector<8x128xf32>
    %cst_285 = arith.constant 1.000000e+00 : f32
    %621 = vector.broadcast %cst_285 : f32 to vector<8x128xf32>
    %622 = arith.addf %621, %620 : vector<8x128xf32>
    %623 = arith.divf %621, %622 : vector<8x128xf32>
    %624 = vector.extract_strided_slice %617 {offsets = [0, 128], sizes = [8, 128], strides = [1, 1]} : vector<8x512xf32> to vector<8x128xf32>
    %625 = arith.negf %624 : vector<8x128xf32>
    %626 = math.exp %625 : vector<8x128xf32>
    %cst_286 = arith.constant 1.000000e+00 : f32
    %627 = vector.broadcast %cst_286 : f32 to vector<8x128xf32>
    %628 = arith.addf %627, %626 : vector<8x128xf32>
    %629 = arith.divf %627, %628 : vector<8x128xf32>
    %630 = vector.extract_strided_slice %617 {offsets = [0, 256], sizes = [8, 128], strides = [1, 1]} : vector<8x512xf32> to vector<8x128xf32>
    %631 = math.tanh %630 : vector<8x128xf32>
    %632 = vector.extract_strided_slice %617 {offsets = [0, 384], sizes = [8, 128], strides = [1, 1]} : vector<8x512xf32> to vector<8x128xf32>
    %633 = arith.negf %632 : vector<8x128xf32>
    %634 = math.exp %633 : vector<8x128xf32>
    %cst_287 = arith.constant 1.000000e+00 : f32
    %635 = vector.broadcast %cst_287 : f32 to vector<8x128xf32>
    %636 = arith.addf %635, %634 : vector<8x128xf32>
    %637 = arith.divf %635, %636 : vector<8x128xf32>
    %c0_288 = arith.constant 0 : index
    %c0_289 = arith.constant 0 : index
    %638 = vector.load %arg11[%c0_288, %c0_289] : memref<8x128xf32, #tpu.memory_space<vmem>>, vector<8x128xf32>
    %639 = arith.mulf %629, %638 : vector<8x128xf32>
    %640 = arith.mulf %623, %631 : vector<8x128xf32>
    %641 = arith.addf %639, %640 : vector<8x128xf32>
    %642 = math.tanh %641 : vector<8x128xf32>
    %643 = arith.mulf %637, %642 : vector<8x128xf32>
    %644 = arith.truncf %643 : vector<8x128xf32> to vector<8x128xbf16>
    %c0_290 = arith.constant 0 : index
    %c0_291 = arith.constant 0 : index
    %645 = vector.load %arg11[%c0_290, %c0_291] : memref<8x128xf32, #tpu.memory_space<vmem>>, vector<8x128xf32>
    tpu.vector_store %arg11[%c0_290, %c0_291], %641 {strides = array<i32>} : memref<8x128xf32, #tpu.memory_space<vmem>>, vector<8x128xf32>,
    %c0_292 = arith.constant 0 : index
    %c0_293 = arith.constant 0 : index
    %646 = vector.load %arg10[%c0_292, %c0_293] : memref<8x128xbf16, #tpu.memory_space<vmem>>, vector<8x128xbf16>
    tpu.vector_store %arg10[%c0_292, %c0_293], %644 {strides = array<i32>} : memref<8x128xbf16, #tpu.memory_space<vmem>>, vector<8x128xbf16>,
    %c8_i32_294 = arith.constant 8 : i32
    %c0_295 = arith.constant 0 : index
    %c0_296 = arith.constant 0 : index
    %647 = vector.load %arg10[%c0_295, %c0_296] : memref<8x128xbf16, #tpu.memory_space<vmem>>, vector<8x128xbf16>
    %c0_297 = arith.constant 0 : index
    %c0_298 = arith.constant 0 : index
    %648 = vector.load %arg5[%c0_297, %c0_298] : memref<128x128xbf16, #tpu.memory_space<vmem>>, vector<128x128xbf16>
    %cst_299 = arith.constant dense<0.000000e+00> : vector<8x128xf32>
    %649 = tpu.matmul %647, %648, %cst_299 {dimension_numbers = #tpu.dot_dimension_numbers<[1], [0], [0], [1], [0, 0, 1, 1], [], []>} : vector<8x128xbf16>, vector<128x128xbf16>, vector<8x128xf32> -> vector<8x128xf32>
    %c0_300 = arith.constant 0 : index
    %c0_301 = arith.constant 0 : index
    %650 = vector.load %arg6[%c0_300, %c0_301] : memref<1x128xf32, #tpu.memory_space<vmem>>, vector<1x128xf32>
    %651 = vector.broadcast %650 : vector<1x128xf32> to vector<8x128xf32>
    %652 = arith.addf %649, %651 : vector<8x128xf32>
    %c0_302 = arith.constant 0 : index
    %c0_303 = arith.constant 0 : index
    %c0_304 = arith.constant 0 : index
    %653 = vector.load %arg7[%c0_302, %c0_303, %c0_304] : memref<1x8x128xf32, #tpu.memory_space<vmem>>, vector<1x8x128xf32>
    %654 = vector.shape_cast %653 : vector<1x8x128xf32> to vector<8x128xf32>
    %655 = vector.shape_cast %652 : vector<8x128xf32> to vector<1x8x128xf32>
    tpu.vector_store %arg7[%c0_302, %c0_303, %c0_304], %655 {strides = array<i32>} : memref<1x8x128xf32, #tpu.memory_space<vmem>>, vector<1x8x128xf32>,
    return
  }
  func.func @transform_0(%arg0: i32) -> (i32, i32, i32) {
    %c0_i32 = arith.constant 0 : i32
    %c0_i32_0 = arith.constant 0 : i32
    %c0_i32_1 = arith.constant 0 : i32
    return %arg0, %c0_i32, %c0_i32_0 : i32, i32, i32
  }
  func.func @transform_1(%arg0: i32) -> (i32, i32, i32) {
    %c0_i32 = arith.constant 0 : i32
    %c0_i32_0 = arith.constant 0 : i32
    %c0_i32_1 = arith.constant 0 : i32
    %c0_i32_2 = arith.constant 0 : i32
    return %c0_i32, %c0_i32_0, %c0_i32_1 : i32, i32, i32
  }
  func.func @transform_2(%arg0: i32) -> (i32, i32, i32) {
    %c0_i32 = arith.constant 0 : i32
    %c0_i32_0 = arith.constant 0 : i32
    %c0_i32_1 = arith.constant 0 : i32
    %c0_i32_2 = arith.constant 0 : i32
    return %c0_i32, %c0_i32_0, %c0_i32_1 : i32, i32, i32
  }
  func.func @transform_3(%arg0: i32) -> (i32, i32, i32) {
    %c0_i32 = arith.constant 0 : i32
    %c0_i32_0 = arith.constant 0 : i32
    %c0_i32_1 = arith.constant 0 : i32
    %c0_i32_2 = arith.constant 0 : i32
    return %c0_i32, %c0_i32_0, %c0_i32_1 : i32, i32, i32
  }
  func.func @transform_4(%arg0: i32) -> (i32, i32) {
    %c0_i32 = arith.constant 0 : i32
    %c0_i32_0 = arith.constant 0 : i32
    %c0_i32_1 = arith.constant 0 : i32
    return %c0_i32, %c0_i32_0 : i32, i32
  }
  func.func @transform_5(%arg0: i32) -> (i32, i32) {
    %c0_i32 = arith.constant 0 : i32
    %c0_i32_0 = arith.constant 0 : i32
    %c0_i32_1 = arith.constant 0 : i32
    return %c0_i32, %c0_i32_0 : i32, i32
  }
  func.func @transform_6(%arg0: i32) -> (i32, i32, i32) {
    %c0_i32 = arith.constant 0 : i32
    %c0_i32_0 = arith.constant 0 : i32
    %c0_i32_1 = arith.constant 0 : i32
    return %arg0, %c0_i32, %c0_i32_0 : i32, i32, i32
  }
}

</mosaic_0001>

<llo_original>
// kernel: lstm_model_forward.1
$region0: #{lstm_model_forward.1}
  #allocation0 [shape = 'u32[]', space=smem, size = 0x4, offset = 0x4, fixed_abs, tag = 'smem constant byte address 0x4 - core index']
  #allocation1 [shape = 'u32[144,128]{1,0:T(1,128)}', space=vmem, size = 0x12000, scoped, tag = 'internal scratch']
  #allocation2 [shape = 'bf16[64,128]{1,0:T(8,128)(2,1)}', space=vmem, size = 0x4000, scoped, tag = 'scratch operand']
  #allocation3 [shape = 'f32[64,512]{1,0:T(8,128)}', space=vmem, size = 0x20000, scoped, tag = 'scratch operand']
  #allocation4 [shape = 'bf16[8,128]{1,0:T(8,128)(2,1)}', space=vmem, size = 0x800, scoped, tag = 'scratch operand']
  #allocation5 [shape = 'f32[8,128]{1,0:T(8,128)}', space=vmem, size = 0x1000, scoped, tag = 'scratch operand']
  %s0 = inlined_call_operand.vmem [shape: bf16[1,64,128], index: 0, kind: input, shape index: {}]
  %s1 = inlined_call_operand.hbm [shape: bf16[2,128,512], index: 1, kind: input, shape index: {}]
  %s2 = inlined_call_operand.hbm [shape: bf16[2,128,512], index: 2, kind: input, shape index: {}]
  %s3 = inlined_call_operand.vmem [shape: f32[2,1,512], index: 3, kind: input, shape index: {}]
  %s4 = inlined_call_operand.vmem [shape: bf16[128,128], index: 4, kind: input, shape index: {}]
  %s5 = inlined_call_operand.vmem [shape: f32[1,128], index: 5, kind: input, shape index: {}]
  %s6 = inlined_call_operand.vmem [shape: f32[1,8,128], index: 6, kind: output, shape index: {}]
  %s7 = sld [smem:[#allocation0]]
  $region42: #{lstm_model_forward.1} parent=0
    _
  %s9 = ssub.s32 1, %s7
  %s10 = scalar_select 0, %s9, %s7
  $region1: #{lstm_model_forward.1} parent=0
    #allocation6 [shape = 'u8[262144]{0}', space=vmem, size = 0x40000, scoped, tag = 'input window, operand 1, single buffered']
    #allocation7 [shape = 's32[1]{0}', space=sflag, size = 0x4, scoped, tag = 'scoped memory for lstm_model_forward.1']
    #allocation8 [shape = 'u8[262144]{0}', space=vmem, size = 0x40000, scoped, tag = 'input window, operand 2, single buffered']
    #allocation9 [shape = 's32[1]{0}', space=sflag, size = 0x4, scoped, tag = 'scoped memory for lstm_model_forward.1']
    %11 = vsyncpa [#allocation7], 0
    %12 = vsyncpa [#allocation9], 0
    // Predicated region
    $region2: #{lstm_model_forward.1} parent=1 // pred_check
      _
    $region3: #{lstm_model_forward.1} parent=1 // pred_check_branch
      %14 = sbr.rel (0) target = $region5
    $region4: #{lstm_model_forward.1} parent=1 // pred_region
      _
    $region5: #{lstm_model_forward.1} parent=1 // pred_fallthru
      _
    // Predicated region
    $region6: #{lstm_model_forward.1} parent=1 // pred_check
      _
    $region7: #{lstm_model_forward.1} parent=1 // pred_check_branch
      %16 = sbr.rel (0) target = $region9
    $region8: #{lstm_model_forward.1} parent=1 // pred_region
      %s18 = ssub.s32 8192, 8192
      %19 = vsyncadd [#allocation7], %s18
      %s20 = sshll.u32 [#allocation6], 4
      %s21 = int_to_ptr.vmem [resolvable:$true] %s20
      %26 = dma.hbm_to_vmem [thread:$0]  %s1, 8192, %s21, [#allocation7], 256, 256, 16
    $region9: #{lstm_model_forward.1} parent=1 // pred_fallthru
      _
    // Predicated region
    $region10: #{lstm_model_forward.1} parent=1 // pred_check
      _
    $region11: #{lstm_model_forward.1} parent=1 // pred_check_branch
      %28 = sbr.rel (0) target = $region13
    $region12: #{lstm_model_forward.1} parent=1 // pred_region
      %s30 = ssub.s32 8192, 8192
      %31 = vsyncadd [#allocation9], %s30
      %s32 = sshll.u32 [#allocation8], 4
      %s33 = int_to_ptr.vmem [resolvable:$true] %s32
      %38 = dma.hbm_to_vmem [thread:$0]  %s2, 8192, %s33, [#allocation9], 256, 256, 16
    $region13: #{lstm_model_forward.1} parent=1 // pred_fallthru
      _
    // Predicated region
    $region14: #{lstm_model_forward.1} parent=1 // pred_check
      _
    $region15: #{lstm_model_forward.1} parent=1 // pred_check_branch
      %40 = sbr.rel (0) target = $region17
    $region16: #{lstm_model_forward.1} parent=1 // pred_region
      _
    $region17: #{lstm_model_forward.1} parent=1 // pred_fallthru
      _
    // Predicated region
    $region18: #{lstm_model_forward.1} parent=1 // pred_check
      _
    $region19: #{lstm_model_forward.1} parent=1 // pred_check_branch
      %42 = sbr.rel (0) target = $region21
    $region20: #{lstm_model_forward.1} parent=1 // pred_region
      _
    $region21: #{lstm_model_forward.1} parent=1 // pred_fallthru
      _
    // Predicated region
    $region22: #{lstm_model_forward.1} parent=1 // pred_check
      _
    $region23: #{lstm_model_forward.1} parent=1 // pred_check_branch
      %44 = sbr.rel (0) target = $region25
    $region24: #{lstm_model_forward.1} parent=1 // pred_region
      _
    $region25: #{lstm_model_forward.1} parent=1 // pred_fallthru
      _
    // Predicated region
    $region26: #{lstm_model_forward.1} parent=1 // pred_check
      _
    $region27: #{lstm_model_forward.1} parent=1 // pred_check_branch
      %46 = sbr.rel (0) target = $region29
    $region28: #{lstm_model_forward.1} parent=1 // pred_region
      %47 = dma.done [#allocation7], 8192
    $region29: #{lstm_model_forward.1} parent=1 // pred_fallthru
      _
    // Predicated region
    $region30: #{lstm_model_forward.1} parent=1 // pred_check
      _
    $region31: #{lstm_model_forward.1} parent=1 // pred_check_branch
      %49 = sbr.rel (0) target = $region33
    $region32: #{lstm_model_forward.1} parent=1 // pred_region
      %50 = dma.done [#allocation9], 8192
    $region33: #{lstm_model_forward.1} parent=1 // pred_fallthru
      _
    %v52 = vld [vmem:[#allocation6] sm:$0xff]
    %v53 = vld [vmem:[#allocation6 + $0x8] sm:$0xff]
    %v54 = vld [vmem:[#allocation6 + $0x10] sm:$0xff]
    %v55 = vld [vmem:[#allocation6 + $0x18] sm:$0xff]
    %v56 = vld [vmem:[#allocation6 + $0x20] sm:$0xff]
    %v57 = vld [vmem:[#allocation6 + $0x28] sm:$0xff]
    %v58 = vld [vmem:[#allocation6 + $0x30] sm:$0xff]
    %v59 = vld [vmem:[#allocation6 + $0x38] sm:$0xff]
    %v60 = vld [vmem:[#allocation6 + $0x40] sm:$0xff]
    %v61 = vld [vmem:[#allocation6 + $0x48] sm:$0xff]
    %v62 = vld [vmem:[#allocation6 + $0x50] sm:$0xff]
    %v63 = vld [vmem:[#allocation6 + $0x58] sm:$0xff]
    %v64 = vld [vmem:[#allocation6 + $0x60] sm:$0xff]
    %v65 = vld [vmem:[#allocation6 + $0x68] sm:$0xff]
    %v66 = vld [vmem:[#allocation6 + $0x70] sm:$0xff]
    %v67 = vld [vmem:[#allocation6 + $0x78] sm:$0xff]
    %v68 = vld [vmem:[#allocation6 + $0x80] sm:$0xff]
    %v69 = vld [vmem:[#allocation6 + $0x88] sm:$0xff]
    %v70 = vld [vmem:[#allocation6 + $0x90] sm:$0xff]
    %v71 = vld [vmem:[#allocation6 + $0x98] sm:$0xff]
    %v72 = vld [vmem:[#allocation6 + $0xa0] sm:$0xff]
    %v73 = vld [vmem:[#allocation6 + $0xa8] sm:$0xff]
    %v74 = vld [vmem:[#allocation6 + $0xb0] sm:$0xff]
    %v75 = vld [vmem:[#allocation6 + $0xb8] sm:$0xff]
    %v76 = vld [vmem:[#allocation6 + $0xc0] sm:$0xff]
    %v77 = vld [vmem:[#allocation6 + $0xc8] sm:$0xff]
    %v78 = vld [vmem:[#allocation6 + $0xd0] sm:$0xff]
    %v79 = vld [vmem:[#allocation6 + $0xd8] sm:$0xff]
    %v80 = vld [vmem:[#allocation6 + $0xe0] sm:$0xff]
    %v81 = vld [vmem:[#allocation6 + $0xe8] sm:$0xff]
    %v82 = vld [vmem:[#allocation6 + $0xf0] sm:$0xff]
    %v83 = vld [vmem:[#allocation6 + $0xf8] sm:$0xff]
    %v84 = vld [vmem:[#allocation8] sm:$0xff]
    %v85 = vld [vmem:[#allocation8 + $0x8] sm:$0xff]
    %v86 = vld [vmem:[#allocation8 + $0x10] sm:$0xff]
    %v87 = vld [vmem:[#allocation8 + $0x18] sm:$0xff]
    %v88 = vld [vmem:[#allocation8 + $0x20] sm:$0xff]
    %v89 = vld [vmem:[#allocation8 + $0x28] sm:$0xff]
    %v90 = vld [vmem:[#allocation8 + $0x30] sm:$0xff]
    %v91 = vld [vmem:[#allocation8 + $0x38] sm:$0xff]
    %v92 = vld [vmem:[#allocation8 + $0x40] sm:$0xff]
    %v93 = vld [vmem:[#allocation8 + $0x48] sm:$0xff]
    %v94 = vld [vmem:[#allocation8 + $0x50] sm:$0xff]
    %v95 = vld [vmem:[#allocation8 + $0x58] sm:$0xff]
    %v96 = vld [vmem:[#allocation8 + $0x60] sm:$0xff]
    %v97 = vld [vmem:[#allocation8 + $0x68] sm:$0xff]
    %v98 = vld [vmem:[#allocation8 + $0x70] sm:$0xff]
    %v99 = vld [vmem:[#allocation8 + $0x78] sm:$0xff]
    %v100 = vld [vmem:[#allocation8 + $0x80] sm:$0xff]
    %v101 = vld [vmem:[#allocation8 + $0x88] sm:$0xff]
    %v102 = vld [vmem:[#allocation8 + $0x90] sm:$0xff]
    %v103 = vld [vmem:[#allocation8 + $0x98] sm:$0xff]
    %v104 = vld [vmem:[#allocation8 + $0xa0] sm:$0xff]
    %v105 = vld [vmem:[#allocation8 + $0xa8] sm:$0xff]
    %v106 = vld [vmem:[#allocation8 + $0xb0] sm:$0xff]
    %v107 = vld [vmem:[#allocation8 + $0xb8] sm:$0xff]
    %v108 = vld [vmem:[#allocation8 + $0xc0] sm:$0xff]
    %v109 = vld [vmem:[#allocation8 + $0xc8] sm:$0xff]
    %v110 = vld [vmem:[#allocation8 + $0xd0] sm:$0xff]
    %v111 = vld [vmem:[#allocation8 + $0xd8] sm:$0xff]
    %v112 = vld [vmem:[#allocation8 + $0xe0] sm:$0xff]
    %v113 = vld [vmem:[#allocation8 + $0xe8] sm:$0xff]
    %v114 = vld [vmem:[#allocation8 + $0xf0] sm:$0xff]
    %v115 = vld [vmem:[#allocation8 + $0xf8] sm:$0xff]
    %v116 = vld [vmem:[%s3] sm:$0xf]
    %117 = vst [vmem:[#allocation4] sm:$0xf] 0
    %118 = vst [vmem:[#allocation5] sm:$0xff] 0.0
    %v119 = vld [vmem:[%s0] sm:$0xf]
    %v120 = vld [vmem:[%s0 + $0x4] sm:$0xf]
    %v121 = vld [vmem:[%s0 + $0x8] sm:$0xf]
    %v122 = vld [vmem:[%s0 + $0xc] sm:$0xf]
    %v123 = vld [vmem:[%s0 + $0x10] sm:$0xf]
    %v124 = vld [vmem:[%s0 + $0x14] sm:$0xf]
    %v125 = vld [vmem:[%s0 + $0x18] sm:$0xf]
    %v126 = vld [vmem:[%s0 + $0x1c] sm:$0xf]
    %v128 = vlaneseq
    %v129 = vshrl.u32 %v128, 7
    %v130 = vsub.s32 0, %v129
    %v131 = vrot.slane %v116, %v130
    %v132 = vlaneseq
    %v133 = vshrl.u32 %v132, 7
    %v134 = vsub.s32 1, %v133
    %v135 = vrot.slane %v116, %v134
    %v136 = vlaneseq
    %v137 = vshrl.u32 %v136, 7
    %v138 = vsub.s32 2, %v137
    %v139 = vrot.slane %v116, %v138
    %v140 = vlaneseq
    %v141 = vshrl.u32 %v140, 7
    %v142 = vsub.s32 3, %v141
    %v143 = vrot.slane %v116, %v142
    %v156 = vunpack.c.l.b16 %v119
    %v157 = vunpack.c.l.b16 %v120
    %v158 = vunpack.c.l.b16 %v121
    %v159 = vunpack.c.l.b16 %v122
    %v160 = vunpack.c.l.b16 %v123
    %v161 = vunpack.c.l.b16 %v124
    %v162 = vunpack.c.l.b16 %v125
    %v163 = vunpack.c.l.b16 %v126
    %v164 = vpack.c.b16 %v157, %v156
    %v165 = vpack.c.b16 %v159, %v158
    %v166 = vpack.c.b16 %v161, %v160
    %v167 = vpack.c.b16 %v163, %v162
    %v204 = vunpack.c.l.b16 %v52
    %v205 = vunpack.c.h.b16 %v52
    %v206 = vunpack.c.l.b16 %v53
    %v207 = vunpack.c.h.b16 %v53
    %v208 = vunpack.c.l.b16 %v54
    %v209 = vunpack.c.h.b16 %v54
    %v210 = vunpack.c.l.b16 %v55
    %v211 = vunpack.c.h.b16 %v55
    %v212 = vunpack.c.l.b16 %v56
    %v213 = vunpack.c.h.b16 %v56
    %v214 = vunpack.c.l.b16 %v57
    %v215 = vunpack.c.h.b16 %v57
    %v216 = vunpack.c.l.b16 %v58
    %v217 = vunpack.c.h.b16 %v58
    %v218 = vunpack.c.l.b16 %v59
    %v219 = vunpack.c.h.b16 %v59
    %v220 = vunpack.c.l.b16 %v60
    %v221 = vunpack.c.h.b16 %v60
    %v222 = vunpack.c.l.b16 %v61
    %v223 = vunpack.c.h.b16 %v61
    %v224 = vunpack.c.l.b16 %v62
    %v225 = vunpack.c.h.b16 %v62
    %v226 = vunpack.c.l.b16 %v63
    %v227 = vunpack.c.h.b16 %v63
    %v228 = vunpack.c.l.b16 %v64
    %v229 = vunpack.c.h.b16 %v64
    %v230 = vunpack.c.l.b16 %v65
    %v231 = vunpack.c.h.b16 %v65
    %v232 = vunpack.c.l.b16 %v66
    %v233 = vunpack.c.h.b16 %v66
    %v234 = vunpack.c.l.b16 %v67
    %v235 = vunpack.c.h.b16 %v67
    %v236 = vunpack.c.l.b16 %v68
    %v237 = vunpack.c.h.b16 %v68
    %v238 = vunpack.c.l.b16 %v69
    %v239 = vunpack.c.h.b16 %v69
    %v240 = vunpack.c.l.b16 %v70
    %v241 = vunpack.c.h.b16 %v70
    %v242 = vunpack.c.l.b16 %v71
    %v243 = vunpack.c.h.b16 %v71
    %v244 = vunpack.c.l.b16 %v72
    %v245 = vunpack.c.h.b16 %v72
    %v246 = vunpack.c.l.b16 %v73
    %v247 = vunpack.c.h.b16 %v73
    %v248 = vunpack.c.l.b16 %v74
    %v249 = vunpack.c.h.b16 %v74
    %v250 = vunpack.c.l.b16 %v75
    %v251 = vunpack.c.h.b16 %v75
    %v252 = vunpack.c.l.b16 %v76
    %v253 = vunpack.c.h.b16 %v76
    %v254 = vunpack.c.l.b16 %v77
    %v255 = vunpack.c.h.b16 %v77
    %v256 = vunpack.c.l.b16 %v78
    %v257 = vunpack.c.h.b16 %v78
    %v258 = vunpack.c.l.b16 %v79
    %v259 = vunpack.c.h.b16 %v79
    %v260 = vunpack.c.l.b16 %v80
    %v261 = vunpack.c.h.b16 %v80
    %v262 = vunpack.c.l.b16 %v81
    %v263 = vunpack.c.h.b16 %v81
    %v264 = vunpack.c.l.b16 %v82
    %v265 = vunpack.c.h.b16 %v82
    %v266 = vunpack.c.l.b16 %v83
    %v267 = vunpack.c.h.b16 %v83
    %v268 = vpack.c.b16 %v208, %v204
    %v269 = vpack.c.b16 %v209, %v205
    %v270 = vpack.c.b16 %v210, %v206
    %v271 = vpack.c.b16 %v211, %v207
    %v272 = vpack.c.b16 %v216, %v212
    %v273 = vpack.c.b16 %v217, %v213
    %v274 = vpack.c.b16 %v218, %v214
    %v275 = vpack.c.b16 %v219, %v215
    %v276 = vpack.c.b16 %v224, %v220
    %v277 = vpack.c.b16 %v225, %v221
    %v278 = vpack.c.b16 %v226, %v222
    %v279 = vpack.c.b16 %v227, %v223
    %v280 = vpack.c.b16 %v232, %v228
    %v281 = vpack.c.b16 %v233, %v229
    %v282 = vpack.c.b16 %v234, %v230
    %v283 = vpack.c.b16 %v235, %v231
    %v284 = vpack.c.b16 %v240, %v236
    %v285 = vpack.c.b16 %v241, %v237
    %v286 = vpack.c.b16 %v242, %v238
    %v287 = vpack.c.b16 %v243, %v239
    %v288 = vpack.c.b16 %v248, %v244
    %v289 = vpack.c.b16 %v249, %v245
    %v290 = vpack.c.b16 %v250, %v246
    %v291 = vpack.c.b16 %v251, %v247
    %v292 = vpack.c.b16 %v256, %v252
    %v293 = vpack.c.b16 %v257, %v253
    %v294 = vpack.c.b16 %v258, %v254
    %v295 = vpack.c.b16 %v259, %v255
    %v296 = vpack.c.b16 %v264, %v260
    %v297 = vpack.c.b16 %v265, %v261
    %v298 = vpack.c.b16 %v266, %v262
    %v299 = vpack.c.b16 %v267, %v263
    %332 = vmatprep.subr.bf16.mxu0 %v297
    %333 = vmatpush1.bf16.msra.mxu0 %v296
    %334 = vmatprep.subr.bf16.mxu0 %v293
    %335 = vmatpush1.bf16.msra.mxu0 %v292
    %336 = vmatprep.subr.bf16.mxu0 %v289
    %337 = vmatpush1.bf16.msra.mxu0 %v288
    %338 = vmatprep.subr.bf16.mxu0 %v285
    %339 = vmatpush1.bf16.msra.mxu0 %v284
    %340 = vmatprep.subr.bf16.mxu0 %v281
    %341 = vmatpush1.bf16.msra.mxu0 %v280
    %342 = vmatprep.subr.bf16.mxu0 %v277
    %343 = vmatpush1.bf16.msra.mxu0 %v276
    %344 = vmatprep.subr.bf16.mxu0 %v273
    %345 = vmatpush1.bf16.msra.mxu0 %v272
    %346 = vmatprep.subr.bf16.mxu0 %v269
    %347 = vmatpush1.bf16.msra.mxu0 %v268
    %348 = vmatprep.subr.bf16.mxu0 0
    %349 = vmatpush2.bf16.msra.mxu0 0
    %350 = vmatprep.subr.bf16.mxu0 0
    %351 = vmatpush2.bf16.msra.mxu0 0
    %352 = vmatprep.subr.bf16.mxu0 0
    %353 = vmatpush2.bf16.msra.mxu0 0
    %354 = vmatprep.subr.bf16.mxu0 0
    %355 = vmatpush2.bf16.msra.mxu0 0
    %356 = vmatprep.subr.bf16.mxu0 0
    %357 = vmatpush2.bf16.msra.mxu0 0
    %358 = vmatprep.subr.bf16.mxu0 0
    %359 = vmatpush2.bf16.msra.mxu0 0
    %360 = vmatprep.subr.bf16.mxu0 0
    %361 = vmatpush2.bf16.msra.mxu0 0
    %362 = vmatprep.subr.bf16.mxu0 0
    %363 = vmatpush2.bf16.msra.mxu0 0
    %364 = vmatprep.mubr.bf16.mxu0 0
    %365 = vmatmul.mubr.bf16.gmra.mxu0 %v164
    %v366 = vpop.f32.mrf.mxu0
    %v367 = vadd.f32 %v131, %v366
    %v368 = vpop.f32.mrf.mxu0
    %v369 = vadd.f32 %v135, %v368
    %v370 = vpop.f32.mrf.mxu0
    %v371 = vadd.f32 %v131, %v370
    %v372 = vpop.f32.mrf.mxu0
    %v373 = vadd.f32 %v135, %v372
    %374 = vmatprep.mubr.bf16.mxu0 0
    %375 = vmatmul.mubr.bf16.gmra.mxu0 %v165
    %v376 = vpop.f32.mrf.mxu0
    %v377 = vadd.f32 %v131, %v376
    %v378 = vpop.f32.mrf.mxu0
    %v379 = vadd.f32 %v135, %v378
    %v380 = vpop.f32.mrf.mxu0
    %v381 = vadd.f32 %v131, %v380
    %v382 = vpop.f32.mrf.mxu0
    %v383 = vadd.f32 %v135, %v382
    %384 = vmatprep.mubr.bf16.mxu0 0
    %385 = vmatmul.mubr.bf16.gmra.mxu0 %v166
    %v386 = vpop.f32.mrf.mxu0
    %v387 = vadd.f32 %v131, %v386
    %v388 = vpop.f32.mrf.mxu0
    %v389 = vadd.f32 %v135, %v388
    %v390 = vpop.f32.mrf.mxu0
    %v391 = vadd.f32 %v131, %v390
    %v392 = vpop.f32.mrf.mxu0
    %v393 = vadd.f32 %v135, %v392
    %394 = vmatprep.mubr.bf16.mxu0 0
    %395 = vmatmul.mubr.bf16.gmra.mxu0 %v167
    %v396 = vpop.f32.mrf.mxu0
    %v397 = vadd.f32 %v131, %v396
    %v398 = vpop.f32.mrf.mxu0
    %v399 = vadd.f32 %v135, %v398
    %v400 = vpop.f32.mrf.mxu0
    %v401 = vadd.f32 %v131, %v400
    %v402 = vpop.f32.mrf.mxu0
    %v403 = vadd.f32 %v135, %v402
    %404 = vdwg.mxu0
    %405 = vmatprep.subr.bf16.mxu0 %v299
    %406 = vmatpush1.bf16.msra.mxu0 %v298
    %407 = vmatprep.subr.bf16.mxu0 %v295
    %408 = vmatpush1.bf16.msra.mxu0 %v294
    %409 = vmatprep.subr.bf16.mxu0 %v291
    %410 = vmatpush1.bf16.msra.mxu0 %v290
    %411 = vmatprep.subr.bf16.mxu0 %v287
    %412 = vmatpush1.bf16.msra.mxu0 %v286
    %413 = vmatprep.subr.bf16.mxu0 %v283
    %414 = vmatpush1.bf16.msra.mxu0 %v282
    %415 = vmatprep.subr.bf16.mxu0 %v279
    %416 = vmatpush1.bf16.msra.mxu0 %v278
    %417 = vmatprep.subr.bf16.mxu0 %v275
    %418 = vmatpush1.bf16.msra.mxu0 %v274
    %419 = vmatprep.subr.bf16.mxu0 %v271
    %420 = vmatpush1.bf16.msra.mxu0 %v270
    %421 = vmatprep.subr.bf16.mxu0 0
    %422 = vmatpush2.bf16.msra.mxu0 0
    %423 = vmatprep.subr.bf16.mxu0 0
    %424 = vmatpush2.bf16.msra.mxu0 0
    %425 = vmatprep.subr.bf16.mxu0 0
    %426 = vmatpush2.bf16.msra.mxu0 0
    %427 = vmatprep.subr.bf16.mxu0 0
    %428 = vmatpush2.bf16.msra.mxu0 0
    %429 = vmatprep.subr.bf16.mxu0 0
    %430 = vmatpush2.bf16.msra.mxu0 0
    %431 = vmatprep.subr.bf16.mxu0 0
    %432 = vmatpush2.bf16.msra.mxu0 0
    %433 = vmatprep.subr.bf16.mxu0 0
    %434 = vmatpush2.bf16.msra.mxu0 0
    %435 = vmatprep.subr.bf16.mxu0 0
    %436 = vmatpush2.bf16.msra.mxu0 0
    %437 = vmatprep.mubr.bf16.mxu0 0
    %438 = vmatmul.mubr.bf16.gmra.mxu0 %v164
    %v439 = vpop.f32.mrf.mxu0
    %v440 = vadd.f32 %v139, %v439
    %v441 = vpop.f32.mrf.mxu0
    %v442 = vadd.f32 %v143, %v441
    %v443 = vpop.f32.mrf.mxu0
    %v444 = vadd.f32 %v139, %v443
    %v445 = vpop.f32.mrf.mxu0
    %v446 = vadd.f32 %v143, %v445
    %447 = vmatprep.mubr.bf16.mxu0 0
    %448 = vmatmul.mubr.bf16.gmra.mxu0 %v165
    %v449 = vpop.f32.mrf.mxu0
    %v450 = vadd.f32 %v139, %v449
    %v451 = vpop.f32.mrf.mxu0
    %v452 = vadd.f32 %v143, %v451
    %v453 = vpop.f32.mrf.mxu0
    %v454 = vadd.f32 %v139, %v453
    %v455 = vpop.f32.mrf.mxu0
    %v456 = vadd.f32 %v143, %v455
    %457 = vmatprep.mubr.bf16.mxu0 0
    %458 = vmatmul.mubr.bf16.gmra.mxu0 %v166
    %v459 = vpop.f32.mrf.mxu0
    %v460 = vadd.f32 %v139, %v459
    %v461 = vpop.f32.mrf.mxu0
    %v462 = vadd.f32 %v143, %v461
    %v463 = vpop.f32.mrf.mxu0
    %v464 = vadd.f32 %v139, %v463
    %v465 = vpop.f32.mrf.mxu0
    %v466 = vadd.f32 %v143, %v465
    %467 = vmatprep.mubr.bf16.mxu0 0
    %468 = vmatmul.mubr.bf16.gmra.mxu0 %v167
    %v469 = vpop.f32.mrf.mxu0
    %v470 = vadd.f32 %v139, %v469
    %v471 = vpop.f32.mrf.mxu0
    %v472 = vadd.f32 %v143, %v471
    %v473 = vpop.f32.mrf.mxu0
    %v474 = vadd.f32 %v139, %v473
    %v475 = vpop.f32.mrf.mxu0
    %v476 = vadd.f32 %v143, %v475
    %477 = vdwg.mxu0
    %478 = vst [vmem:[#allocation3] sm:$0xff] %v367
    %479 = vst [vmem:[#allocation3 + $0x8] sm:$0xff] %v369
    %480 = vst [vmem:[#allocation3 + $0x10] sm:$0xff] %v440
    %481 = vst [vmem:[#allocation3 + $0x18] sm:$0xff] %v442
    %482 = vst [vmem:[#allocation3 + $0x20] sm:$0xff] %v371
    %483 = vst [vmem:[#allocation3 + $0x28] sm:$0xff] %v373
    %484 = vst [vmem:[#allocation3 + $0x30] sm:$0xff] %v444
    %485 = vst [vmem:[#allocation3 + $0x38] sm:$0xff] %v446
    %486 = vst [vmem:[#allocation3 + $0x40] sm:$0xff] %v377
    %487 = vst [vmem:[#allocation3 + $0x48] sm:$0xff] %v379
    %488 = vst [vmem:[#allocation3 + $0x50] sm:$0xff] %v450
    %489 = vst [vmem:[#allocation3 + $0x58] sm:$0xff] %v452
    %490 = vst [vmem:[#allocation3 + $0x60] sm:$0xff] %v381
    %491 = vst [vmem:[#allocation3 + $0x68] sm:$0xff] %v383
    %492 = vst [vmem:[#allocation3 + $0x70] sm:$0xff] %v454
    %493 = vst [vmem:[#allocation3 + $0x78] sm:$0xff] %v456
    %494 = vst [vmem:[#allocation3 + $0x80] sm:$0xff] %v387
    %495 = vst [vmem:[#allocation3 + $0x88] sm:$0xff] %v389
    %496 = vst [vmem:[#allocation3 + $0x90] sm:$0xff] %v460
    %497 = vst [vmem:[#allocation3 + $0x98] sm:$0xff] %v462
    %498 = vst [vmem:[#allocation3 + $0xa0] sm:$0xff] %v391
    %499 = vst [vmem:[#allocation3 + $0xa8] sm:$0xff] %v393
    %500 = vst [vmem:[#allocation3 + $0xb0] sm:$0xff] %v464
    %501 = vst [vmem:[#allocation3 + $0xb8] sm:$0xff] %v466
    %502 = vst [vmem:[#allocation3 + $0xc0] sm:$0xff] %v397
    %503 = vst [vmem:[#allocation3 + $0xc8] sm:$0xff] %v399
    %504 = vst [vmem:[#allocation3 + $0xd0] sm:$0xff] %v470
    %505 = vst [vmem:[#allocation3 + $0xd8] sm:$0xff] %v472
    %506 = vst [vmem:[#allocation3 + $0xe0] sm:$0xff] %v401
    %507 = vst [vmem:[#allocation3 + $0xe8] sm:$0xff] %v403
    %508 = vst [vmem:[#allocation3 + $0xf0] sm:$0xff] %v474
    %509 = vst [vmem:[#allocation3 + $0xf8] sm:$0xff] %v476
    %s510 = smul.u32 0, 4
    %s511 = smul.addr %s510, 8
    %s512 = scalar_lea.vmem [#allocation3], %s511
    %v513 = vld [vmem:[%s512] sm:$0xff]
    %v514 = vld [vmem:[%s512 + $0x8] sm:$0xff]
    %v515 = vld [vmem:[%s512 + $0x10] sm:$0xff]
    %v516 = vld [vmem:[%s512 + $0x18] sm:$0xff]
    %v517 = vld [vmem:[#allocation4] sm:$0xf]
    %v550 = vunpack.c.l.b16 %v84
    %v551 = vunpack.c.h.b16 %v84
    %v552 = vunpack.c.l.b16 %v85
    %v553 = vunpack.c.h.b16 %v85
    %v554 = vunpack.c.l.b16 %v86
    %v555 = vunpack.c.h.b16 %v86
    %v556 = vunpack.c.l.b16 %v87
    %v557 = vunpack.c.h.b16 %v87
    %v558 = vunpack.c.l.b16 %v88
    %v559 = vunpack.c.h.b16 %v88
    %v560 = vunpack.c.l.b16 %v89
    %v561 = vunpack.c.h.b16 %v89
    %v562 = vunpack.c.l.b16 %v90
    %v563 = vunpack.c.h.b16 %v90
    %v564 = vunpack.c.l.b16 %v91
    %v565 = vunpack.c.h.b16 %v91
    %v566 = vunpack.c.l.b16 %v92
    %v567 = vunpack.c.h.b16 %v92
    %v568 = vunpack.c.l.b16 %v93
    %v569 = vunpack.c.h.b16 %v93
    %v570 = vunpack.c.l.b16 %v94
    %v571 = vunpack.c.h.b16 %v94
    %v572 = vunpack.c.l.b16 %v95
    %v573 = vunpack.c.h.b16 %v95
    %v574 = vunpack.c.l.b16 %v96
    %v575 = vunpack.c.h.b16 %v96
    %v576 = vunpack.c.l.b16 %v97
    %v577 = vunpack.c.h.b16 %v97
    %v578 = vunpack.c.l.b16 %v98
    %v579 = vunpack.c.h.b16 %v98
    %v580 = vunpack.c.l.b16 %v99
    %v581 = vunpack.c.h.b16 %v99
    %v582 = vunpack.c.l.b16 %v100
    %v583 = vunpack.c.h.b16 %v100
    %v584 = vunpack.c.l.b16 %v101
    %v585 = vunpack.c.h.b16 %v101
    %v586 = vunpack.c.l.b16 %v102
    %v587 = vunpack.c.h.b16 %v102
    %v588 = vunpack.c.l.b16 %v103
    %v589 = vunpack.c.h.b16 %v103
    %v590 = vunpack.c.l.b16 %v104
    %v591 = vunpack.c.h.b16 %v104
    %v592 = vunpack.c.l.b16 %v105
    %v593 = vunpack.c.h.b16 %v105
    %v594 = vunpack.c.l.b16 %v106
    %v595 = vunpack.c.h.b16 %v106
    %v596 = vunpack.c.l.b16 %v107
    %v597 = vunpack.c.h.b16 %v107
    %v598 = vunpack.c.l.b16 %v108
    %v599 = vunpack.c.h.b16 %v108
    %v600 = vunpack.c.l.b16 %v109
    %v601 = vunpack.c.h.b16 %v109
    %v602 = vunpack.c.l.b16 %v110
    %v603 = vunpack.c.h.b16 %v110
    %v604 = vunpack.c.l.b16 %v111
    %v605 = vunpack.c.h.b16 %v111
    %v606 = vunpack.c.l.b16 %v112
    %v607 = vunpack.c.h.b16 %v112
    %v608 = vunpack.c.l.b16 %v113
    %v609 = vunpack.c.h.b16 %v113
    %v610 = vunpack.c.l.b16 %v114
    %v611 = vunpack.c.h.b16 %v114
    %v612 = vunpack.c.l.b16 %v115
    %v613 = vunpack.c.h.b16 %v115
    %v614 = vpack.c.b16 %v554, %v550
    %v615 = vpack.c.b16 %v555, %v551
    %v616 = vpack.c.b16 %v556, %v552
    %v617 = vpack.c.b16 %v557, %v553
    %v618 = vpack.c.b16 %v562, %v558
    %v619 = vpack.c.b16 %v563, %v559
    %v620 = vpack.c.b16 %v564, %v560
    %v621 = vpack.c.b16 %v565, %v561
    %v622 = vpack.c.b16 %v570, %v566
    %v623 = vpack.c.b16 %v571, %v567
    %v624 = vpack.c.b16 %v572, %v568
    %v625 = vpack.c.b16 %v573, %v569
    %v626 = vpack.c.b16 %v578, %v574
    %v627 = vpack.c.b16 %v579, %v575
    %v628 = vpack.c.b16 %v580, %v576
    %v629 = vpack.c.b16 %v581, %v577
    %v630 = vpack.c.b16 %v586, %v582
    %v631 = vpack.c.b16 %v587, %v583
    %v632 = vpack.c.b16 %v588, %v584
    %v633 = vpack.c.b16 %v589, %v585
    %v634 = vpack.c.b16 %v594, %v590
    %v635 = vpack.c.b16 %v595, %v591
    %v636 = vpack.c.b16 %v596, %v592
    %v637 = vpack.c.b16 %v597, %v593
    %v638 = vpack.c.b16 %v602, %v598
    %v639 = vpack.c.b16 %v603, %v599
    %v640 = vpack.c.b16 %v604, %v600
    %v641 = vpack.c.b16 %v605, %v601
    %v642 = vpack.c.b16 %v610, %v606
    %v643 = vpack.c.b16 %v611, %v607
    %v644 = vpack.c.b16 %v612, %v608
    %v645 = vpack.c.b16 %v613, %v609
    %678 = vmatprep.subr.bf16.mxu0 %v643
    %679 = vmatpush1.bf16.msra.mxu0 %v642
    %680 = vmatprep.subr.bf16.mxu0 %v639
    %681 = vmatpush1.bf16.msra.mxu0 %v638
    %682 = vmatprep.subr.bf16.mxu0 %v635
    %683 = vmatpush1.bf16.msra.mxu0 %v634
    %684 = vmatprep.subr.bf16.mxu0 %v631
    %685 = vmatpush1.bf16.msra.mxu0 %v630
    %686 = vmatprep.subr.bf16.mxu0 %v627
    %687 = vmatpush1.bf16.msra.mxu0 %v626
    %688 = vmatprep.subr.bf16.mxu0 %v623
    %689 = vmatpush1.bf16.msra.mxu0 %v622
    %690 = vmatprep.subr.bf16.mxu0 %v619
    %691 = vmatpush1.bf16.msra.mxu0 %v618
    %692 = vmatprep.subr.bf16.mxu0 %v615
    %693 = vmatpush1.bf16.msra.mxu0 %v614
    %694 = vmatprep.subr.bf16.mxu0 0
    %695 = vmatpush2.bf16.msra.mxu0 0
    %696 = vmatprep.subr.bf16.mxu0 0
    %697 = vmatpush2.bf16.msra.mxu0 0
    %698 = vmatprep.subr.bf16.mxu0 0
    %699 = vmatpush2.bf16.msra.mxu0 0
    %700 = vmatprep.subr.bf16.mxu0 0
    %701 = vmatpush2.bf16.msra.mxu0 0
    %702 = vmatprep.subr.bf16.mxu0 0
    %703 = vmatpush2.bf16.msra.mxu0 0
    %704 = vmatprep.subr.bf16.mxu0 0
    %705 = vmatpush2.bf16.msra.mxu0 0
    %706 = vmatprep.subr.bf16.mxu0 0
    %707 = vmatpush2.bf16.msra.mxu0 0
    %708 = vmatprep.subr.bf16.mxu0 0
    %709 = vmatpush2.bf16.msra.mxu0 0
    %710 = vmatprep.mubr.bf16.mxu0 0
    %711 = vmatmul.mubr.bf16.gmra.mxu0 %v517
    %v712 = vpop.f32.mrf.mxu0
    %v713 = vadd.f32 0.0, %v712
    %v714 = vpop.f32.mrf.mxu0
    %v715 = vadd.f32 0.0, %v714
    %v716 = vpop.f32.mrf.mxu0
    %v717 = vpop.f32.mrf.mxu0
    %718 = vdwg.mxu0
    %719 = vmatprep.subr.bf16.mxu0 %v645
    %720 = vmatpush1.bf16.msra.mxu0 %v644
    %721 = vmatprep.subr.bf16.mxu0 %v641
    %722 = vmatpush1.bf16.msra.mxu0 %v640
    %723 = vmatprep.subr.bf16.mxu0 %v637
    %724 = vmatpush1.bf16.msra.mxu0 %v636
    %725 = vmatprep.subr.bf16.mxu0 %v633
    %726 = vmatpush1.bf16.msra.mxu0 %v632
    %727 = vmatprep.subr.bf16.mxu0 %v629
    %728 = vmatpush1.bf16.msra.mxu0 %v628
    %729 = vmatprep.subr.bf16.mxu0 %v625
    %730 = vmatpush1.bf16.msra.mxu0 %v624
    %731 = vmatprep.subr.bf16.mxu0 %v621
    %732 = vmatpush1.bf16.msra.mxu0 %v620
    %733 = vmatprep.subr.bf16.mxu0 %v617
    %734 = vmatpush1.bf16.msra.mxu0 %v616
    %735 = vmatprep.subr.bf16.mxu0 0
    %736 = vmatpush2.bf16.msra.mxu0 0
    %737 = vmatprep.subr.bf16.mxu0 0
    %738 = vmatpush2.bf16.msra.mxu0 0
    %739 = vmatprep.subr.bf16.mxu0 0
    %740 = vmatpush2.bf16.msra.mxu0 0
    %741 = vmatprep.subr.bf16.mxu0 0
    %742 = vmatpush2.bf16.msra.mxu0 0
    %743 = vmatprep.subr.bf16.mxu0 0
    %744 = vmatpush2.bf16.msra.mxu0 0
    %745 = vmatprep.subr.bf16.mxu0 0
    %746 = vmatpush2.bf16.msra.mxu0 0
    %747 = vmatprep.subr.bf16.mxu0 0
    %748 = vmatpush2.bf16.msra.mxu0 0
    %749 = vmatprep.subr.bf16.mxu0 0
    %750 = vmatpush2.bf16.msra.mxu0 0
    %751 = vmatprep.mubr.bf16.mxu0 0
    %752 = vmatmul.mubr.bf16.gmra.mxu0 %v517
    %v753 = vpop.f32.mrf.mxu0
    %v754 = vadd.f32 0.0, %v753
    %v755 = vpop.f32.mrf.mxu0
    %v756 = vadd.f32 0.0, %v755
    %v757 = vpop.f32.mrf.mxu0
    %v758 = vpop.f32.mrf.mxu0
    %759 = vdwg.mxu0
    %v760 = vadd.f32 %v513, %v713
    %v761 = vadd.f32 %v514, %v715
    %v762 = vadd.f32 %v515, %v754
    %v763 = vadd.f32 %v516, %v756
    %v764 = vxor.u32 %v760, 2147483648
    %v765 = vmul.f32 %v764, 1.442695
    %v766 = vpow.pop %v765
    %v767 = vadd.f32 %v766, 1.0
    %v768 = vrcp.pop %v767
    %v769 = vmul.f32 1.0, %v768
    %v770 = vxor.u32 %v761, 2147483648
    %v771 = vmul.f32 %v770, 1.442695
    %v772 = vpow.pop %v771
    %v773 = vadd.f32 %v772, 1.0
    %v774 = vrcp.pop %v773
    %v775 = vmul.f32 1.0, %v774
    %v776 = vtanh.pop %v762
    %v777 = vxor.u32 %v763, 2147483648
    %v778 = vmul.f32 %v777, 1.442695
    %v779 = vpow.pop %v778
    %v780 = vadd.f32 %v779, 1.0
    %v781 = vrcp.pop %v780
    %v782 = vmul.f32 1.0, %v781
    %v783 = vld [vmem:[#allocation5] sm:$0xff]
    %v784 = vmul.f32 %v775, %v783
    %v785 = vmul.f32 %v769, %v776
    %v786 = vadd.f32 %v784, %v785
    %v787 = vtanh.pop %v786
    %v788 = vmul.f32 %v782, %v787
    %v789 = vpack.c.bf16 %v788, %v788
    %790 = vst [vmem:[#allocation5] sm:$0xff] %v786
    %791 = vst [vmem:[#allocation4] sm:$0xf] %v789
    %792 = vst [vmem:[#allocation2] sm:$0xf] %v789
    %s793 = smul.u32 1, 4
    %s794 = smul.addr %s793, 8
    %s795 = scalar_lea.vmem [#allocation3], %s794
    %v796 = vld [vmem:[%s795] sm:$0xff]
    %v797 = vld [vmem:[%s795 + $0x8] sm:$0xff]
    %v798 = vld [vmem:[%s795 + $0x10] sm:$0xff]
    %v799 = vld [vmem:[%s795 + $0x18] sm:$0xff]
    %v800 = vld [vmem:[#allocation4] sm:$0xf]
    %801 = vmatprep.subr.bf16.mxu0 %v643
    %802 = vmatpush1.bf16.msra.mxu0 %v642
    %803 = vmatprep.subr.bf16.mxu0 %v639
    %804 = vmatpush1.bf16.msra.mxu0 %v638
    %805 = vmatprep.subr.bf16.mxu0 %v635
    %806 = vmatpush1.bf16.msra.mxu0 %v634
    %807 = vmatprep.subr.bf16.mxu0 %v631
    %808 = vmatpush1.bf16.msra.mxu0 %v630
    %809 = vmatprep.subr.bf16.mxu0 %v627
    %810 = vmatpush1.bf16.msra.mxu0 %v626
    %811 = vmatprep.subr.bf16.mxu0 %v623
    %812 = vmatpush1.bf16.msra.mxu0 %v622
    %813 = vmatprep.subr.bf16.mxu0 %v619
    %814 = vmatpush1.bf16.msra.mxu0 %v618
    %815 = vmatprep.subr.bf16.mxu0 %v615
    %816 = vmatpush1.bf16.msra.mxu0 %v614
    %817 = vmatprep.subr.bf16.mxu0 0
    %818 = vmatpush2.bf16.msra.mxu0 0
    %819 = vmatprep.subr.bf16.mxu0 0
    %820 = vmatpush2.bf16.msra.mxu0 0
    %821 = vmatprep.subr.bf16.mxu0 0
    %822 = vmatpush2.bf16.msra.mxu0 0
    %823 = vmatprep.subr.bf16.mxu0 0
    %824 = vmatpush2.bf16.msra.mxu0 0
    %825 = vmatprep.subr.bf16.mxu0 0
    %826 = vmatpush2.bf16.msra.mxu0 0
    %827 = vmatprep.subr.bf16.mxu0 0
    %828 = vmatpush2.bf16.msra.mxu0 0
    %829 = vmatprep.subr.bf16.mxu0 0
    %830 = vmatpush2.bf16.msra.mxu0 0
    %831 = vmatprep.subr.bf16.mxu0 0
    %832 = vmatpush2.bf16.msra.mxu0 0
    %833 = vmatprep.mubr.bf16.mxu0 0
    %834 = vmatmul.mubr.bf16.gmra.mxu0 %v800
    %v835 = vpop.f32.mrf.mxu0
    %v836 = vadd.f32 0.0, %v835
    %v837 = vpop.f32.mrf.mxu0
    %v838 = vadd.f32 0.0, %v837
    %v839 = vpop.f32.mrf.mxu0
    %v840 = vpop.f32.mrf.mxu0
    %841 = vdwg.mxu0
    %842 = vmatprep.subr.bf16.mxu0 %v645
    %843 = vmatpush1.bf16.msra.mxu0 %v644
    %844 = vmatprep.subr.bf16.mxu0 %v641
    %845 = vmatpush1.bf16.msra.mxu0 %v640
    %846 = vmatprep.subr.bf16.mxu0 %v637
    %847 = vmatpush1.bf16.msra.mxu0 %v636
    %848 = vmatprep.subr.bf16.mxu0 %v633
    %849 = vmatpush1.bf16.msra.mxu0 %v632
    %850 = vmatprep.subr.bf16.mxu0 %v629
    %851 = vmatpush1.bf16.msra.mxu0 %v628
    %852 = vmatprep.subr.bf16.mxu0 %v625
    %853 = vmatpush1.bf16.msra.mxu0 %v624
    %854 = vmatprep.subr.bf16.mxu0 %v621
    %855 = vmatpush1.bf16.msra.mxu0 %v620
    %856 = vmatprep.subr.bf16.mxu0 %v617
    %857 = vmatpush1.bf16.msra.mxu0 %v616
    %858 = vmatprep.subr.bf16.mxu0 0
    %859 = vmatpush2.bf16.msra.mxu0 0
    %860 = vmatprep.subr.bf16.mxu0 0
    %861 = vmatpush2.bf16.msra.mxu0 0
    %862 = vmatprep.subr.bf16.mxu0 0
    %863 = vmatpush2.bf16.msra.mxu0 0
    %864 = vmatprep.subr.bf16.mxu0 0
    %865 = vmatpush2.bf16.msra.mxu0 0
    %866 = vmatprep.subr.bf16.mxu0 0
    %867 = vmatpush2.bf16.msra.mxu0 0
    %868 = vmatprep.subr.bf16.mxu0 0
    %869 = vmatpush2.bf16.msra.mxu0 0
    %870 = vmatprep.subr.bf16.mxu0 0
    %871 = vmatpush2.bf16.msra.mxu0 0
    %872 = vmatprep.subr.bf16.mxu0 0
    %873 = vmatpush2.bf16.msra.mxu0 0
    %874 = vmatprep.mubr.bf16.mxu0 0
    %875 = vmatmul.mubr.bf16.gmra.mxu0 %v800
    %v876 = vpop.f32.mrf.mxu0
    %v877 = vadd.f32 0.0, %v876
    %v878 = vpop.f32.mrf.mxu0
    %v879 = vadd.f32 0.0, %v878
    %v880 = vpop.f32.mrf.mxu0
    %v881 = vpop.f32.mrf.mxu0
    %882 = vdwg.mxu0
    %v883 = vadd.f32 %v796, %v836
    %v884 = vadd.f32 %v797, %v838
    %v885 = vadd.f32 %v798, %v877
    %v886 = vadd.f32 %v799, %v879
    %v887 = vxor.u32 %v883, 2147483648
    %v888 = vmul.f32 %v887, 1.442695
    %v889 = vpow.pop %v888
    %v890 = vadd.f32 %v889, 1.0
    %v891 = vrcp.pop %v890
    %v892 = vmul.f32 1.0, %v891
    %v893 = vxor.u32 %v884, 2147483648
    %v894 = vmul.f32 %v893, 1.442695
    %v895 = vpow.pop %v894
    %v896 = vadd.f32 %v895, 1.0
    %v897 = vrcp.pop %v896
    %v898 = vmul.f32 1.0, %v897
    %v899 = vtanh.pop %v885
    %v900 = vxor.u32 %v886, 2147483648
    %v901 = vmul.f32 %v900, 1.442695
    %v902 = vpow.pop %v901
    %v903 = vadd.f32 %v902, 1.0
    %v904 = vrcp.pop %v903
    %v905 = vmul.f32 1.0, %v904
    %v906 = vld [vmem:[#allocation5] sm:$0xff]
    %v907 = vmul.f32 %v898, %v906
    %v908 = vmul.f32 %v892, %v899
    %v909 = vadd.f32 %v907, %v908
    %v910 = vtanh.pop %v909
    %v911 = vmul.f32 %v905, %v910
    %v912 = vpack.c.bf16 %v911, %v911
    %913 = vst [vmem:[#allocation5] sm:$0xff] %v909
    %914 = vst [vmem:[#allocation4] sm:$0xf] %v912
    %s915 = scalar_lea.vmem [#allocation2], 4
    %916 = vst [vmem:[%s915] sm:$0xf] %v912
    %s917 = smul.u32 2, 4
    %s918 = smul.addr %s917, 8
    %s919 = scalar_lea.vmem [#allocation3], %s918
    %v920 = vld [vmem:[%s919] sm:$0xff]
    %v921 = vld [vmem:[%s919 + $0x8] sm:$0xff]
    %v922 = vld [vmem:[%s919 + $0x10] sm:$0xff]
    %v923 = vld [vmem:[%s919 + $0x18] sm:$0xff]
    %v924 = vld [vmem:[#allocation4] sm:$0xf]
    %925 = vmatprep.subr.bf16.mxu0 %v643
    %926 = vmatpush1.bf16.msra.mxu0 %v642
    %927 = vmatprep.subr.bf16.mxu0 %v639
    %928 = vmatpush1.bf16.msra.mxu0 %v638
    %929 = vmatprep.subr.bf16.mxu0 %v635
    %930 = vmatpush1.bf16.msra.mxu0 %v634
    %931 = vmatprep.subr.bf16.mxu0 %v631
    %932 = vmatpush1.bf16.msra.mxu0 %v630
    %933 = vmatprep.subr.bf16.mxu0 %v627
    %934 = vmatpush1.bf16.msra.mxu0 %v626
    %935 = vmatprep.subr.bf16.mxu0 %v623
    %936 = vmatpush1.bf16.msra.mxu0 %v622
    %937 = vmatprep.subr.bf16.mxu0 %v619
    %938 = vmatpush1.bf16.msra.mxu0 %v618
    %939 = vmatprep.subr.bf16.mxu0 %v615
    %940 = vmatpush1.bf16.msra.mxu0 %v614
    %941 = vmatprep.subr.bf16.mxu0 0
    %942 = vmatpush2.bf16.msra.mxu0 0
    %943 = vmatprep.subr.bf16.mxu0 0
    %944 = vmatpush2.bf16.msra.mxu0 0
    %945 = vmatprep.subr.bf16.mxu0 0
    %946 = vmatpush2.bf16.msra.mxu0 0
    %947 = vmatprep.subr.bf16.mxu0 0
    %948 = vmatpush2.bf16.msra.mxu0 0
    %949 = vmatprep.subr.bf16.mxu0 0
    %950 = vmatpush2.bf16.msra.mxu0 0
    %951 = vmatprep.subr.bf16.mxu0 0
    %952 = vmatpush2.bf16.msra.mxu0 0
    %953 = vmatprep.subr.bf16.mxu0 0
    %954 = vmatpush2.bf16.msra.mxu0 0
    %955 = vmatprep.subr.bf16.mxu0 0
    %956 = vmatpush2.bf16.msra.mxu0 0
    %957 = vmatprep.mubr.bf16.mxu0 0
    %958 = vmatmul.mubr.bf16.gmra.mxu0 %v924
    %v959 = vpop.f32.mrf.mxu0
    %v960 = vadd.f32 0.0, %v959
    %v961 = vpop.f32.mrf.mxu0
    %v962 = vadd.f32 0.0, %v961
    %v963 = vpop.f32.mrf.mxu0
    %v964 = vpop.f32.mrf.mxu0
    %965 = vdwg.mxu0
    %966 = vmatprep.subr.bf16.mxu0 %v645
    %967 = vmatpush1.bf16.msra.mxu0 %v644
    %968 = vmatprep.subr.bf16.mxu0 %v641
    %969 = vmatpush1.bf16.msra.mxu0 %v640
    %970 = vmatprep.subr.bf16.mxu0 %v637
    %971 = vmatpush1.bf16.msra.mxu0 %v636
    %972 = vmatprep.subr.bf16.mxu0 %v633
    %973 = vmatpush1.bf16.msra.mxu0 %v632
    %974 = vmatprep.subr.bf16.mxu0 %v629
    %975 = vmatpush1.bf16.msra.mxu0 %v628
    %976 = vmatprep.subr.bf16.mxu0 %v625
    %977 = vmatpush1.bf16.msra.mxu0 %v624
    %978 = vmatprep.subr.bf16.mxu0 %v621
    %979 = vmatpush1.bf16.msra.mxu0 %v620
    %980 = vmatprep.subr.bf16.mxu0 %v617
    %981 = vmatpush1.bf16.msra.mxu0 %v616
    %982 = vmatprep.subr.bf16.mxu0 0
    %983 = vmatpush2.bf16.msra.mxu0 0
    %984 = vmatprep.subr.bf16.mxu0 0
    %985 = vmatpush2.bf16.msra.mxu0 0
    %986 = vmatprep.subr.bf16.mxu0 0
    %987 = vmatpush2.bf16.msra.mxu0 0
    %988 = vmatprep.subr.bf16.mxu0 0
    %989 = vmatpush2.bf16.msra.mxu0 0
    %990 = vmatprep.subr.bf16.mxu0 0
    %991 = vmatpush2.bf16.msra.mxu0 0
    %992 = vmatprep.subr.bf16.mxu0 0
    %993 = vmatpush2.bf16.msra.mxu0 0
    %994 = vmatprep.subr.bf16.mxu0 0
    %995 = vmatpush2.bf16.msra.mxu0 0
    %996 = vmatprep.subr.bf16.mxu0 0
    %997 = vmatpush2.bf16.msra.mxu0 0
    %998 = vmatprep.mubr.bf16.mxu0 0
    %999 = vmatmul.mubr.bf16.gmra.mxu0 %v924
    %v1000 = vpop.f32.mrf.mxu0
    %v1001 = vadd.f32 0.0, %v1000
    %v1002 = vpop.f32.mrf.mxu0
    %v1003 = vadd.f32 0.0, %v1002
    %v1004 = vpop.f32.mrf.mxu0
    %v1005 = vpop.f32.mrf.mxu0
    %1006 = vdwg.mxu0
    %v1007 = vadd.f32 %v920, %v960
    %v1008 = vadd.f32 %v921, %v962
    %v1009 = vadd.f32 %v922, %v1001
    %v1010 = vadd.f32 %v923, %v1003
    %v1011 = vxor.u32 %v1007, 2147483648
    %v1012 = vmul.f32 %v1011, 1.442695
    %v1013 = vpow.pop %v1012
    %v1014 = vadd.f32 %v1013, 1.0
    %v1015 = vrcp.pop %v1014
    %v1016 = vmul.f32 1.0, %v1015
    %v1017 = vxor.u32 %v1008, 2147483648
    %v1018 = vmul.f32 %v1017, 1.442695
    %v1019 = vpow.pop %v1018
    %v1020 = vadd.f32 %v1019, 1.0
    %v1021 = vrcp.pop %v1020
    %v1022 = vmul.f32 1.0, %v1021
    %v1023 = vtanh.pop %v1009
    %v1024 = vxor.u32 %v1010, 2147483648
    %v1025 = vmul.f32 %v1024, 1.442695
    %v1026 = vpow.pop %v1025
    %v1027 = vadd.f32 %v1026, 1.0
    %v1028 = vrcp.pop %v1027
    %v1029 = vmul.f32 1.0, %v1028
    %v1030 = vld [vmem:[#allocation5] sm:$0xff]
    %v1031 = vmul.f32 %v1022, %v1030
    %v1032 = vmul.f32 %v1016, %v1023
    %v1033 = vadd.f32 %v1031, %v1032
    %v1034 = vtanh.pop %v1033
    %v1035 = vmul.f32 %v1029, %v1034
    %v1036 = vpack.c.bf16 %v1035, %v1035
    %1037 = vst [vmem:[#allocation5] sm:$0xff] %v1033
    %1038 = vst [vmem:[#allocation4] sm:$0xf] %v1036
    %s1039 = scalar_lea.vmem [#allocation2], 8
    %1040 = vst [vmem:[%s1039] sm:$0xf] %v1036
    %s1041 = smul.u32 3, 4
    %s1042 = smul.addr %s1041, 8
    %s1043 = scalar_lea.vmem [#allocation3], %s1042
    %v1044 = vld [vmem:[%s1043] sm:$0xff]
    %v1045 = vld [vmem:[%s1043 + $0x8] sm:$0xff]
    %v1046 = vld [vmem:[%s1043 + $0x10] sm:$0xff]
    %v1047 = vld [vmem:[%s1043 + $0x18] sm:$0xff]
    %v1048 = vld [vmem:[#allocation4] sm:$0xf]
    %1049 = vmatprep.subr.bf16.mxu0 %v643
    %1050 = vmatpush1.bf16.msra.mxu0 %v642
    %1051 = vmatprep.subr.bf16.mxu0 %v639
    %1052 = vmatpush1.bf16.msra.mxu0 %v638
    %1053 = vmatprep.subr.bf16.mxu0 %v635
    %1054 = vmatpush1.bf16.msra.mxu0 %v634
    %1055 = vmatprep.subr.bf16.mxu0 %v631
    %1056 = vmatpush1.bf16.msra.mxu0 %v630
    %1057 = vmatprep.subr.bf16.mxu0 %v627
    %1058 = vmatpush1.bf16.msra.mxu0 %v626
    %1059 = vmatprep.subr.bf16.mxu0 %v623
    %1060 = vmatpush1.bf16.msra.mxu0 %v622
    %1061 = vmatprep.subr.bf16.mxu0 %v619
    %1062 = vmatpush1.bf16.msra.mxu0 %v618
    %1063 = vmatprep.subr.bf16.mxu0 %v615
    %1064 = vmatpush1.bf16.msra.mxu0 %v614
    %1065 = vmatprep.subr.bf16.mxu0 0
    %1066 = vmatpush2.bf16.msra.mxu0 0
    %1067 = vmatprep.subr.bf16.mxu0 0
    %1068 = vmatpush2.bf16.msra.mxu0 0
    %1069 = vmatprep.subr.bf16.mxu0 0
    %1070 = vmatpush2.bf16.msra.mxu0 0
    %1071 = vmatprep.subr.bf16.mxu0 0
    %1072 = vmatpush2.bf16.msra.mxu0 0
    %1073 = vmatprep.subr.bf16.mxu0 0
    %1074 = vmatpush2.bf16.msra.mxu0 0
    %1075 = vmatprep.subr.bf16.mxu0 0
    %1076 = vmatpush2.bf16.msra.mxu0 0
    %1077 = vmatprep.subr.bf16.mxu0 0
    %1078 = vmatpush2.bf16.msra.mxu0 0
    %1079 = vmatprep.subr.bf16.mxu0 0
    %1080 = vmatpush2.bf16.msra.mxu0 0
    %1081 = vmatprep.mubr.bf16.mxu0 0
    %1082 = vmatmul.mubr.bf16.gmra.mxu0 %v1048
    %v1083 = vpop.f32.mrf.mxu0
    %v1084 = vadd.f32 0.0, %v1083
    %v1085 = vpop.f32.mrf.mxu0
    %v1086 = vadd.f32 0.0, %v1085
    %v1087 = vpop.f32.mrf.mxu0
    %v1088 = vpop.f32.mrf.mxu0
    %1089 = vdwg.mxu0
    %1090 = vmatprep.subr.bf16.mxu0 %v645
    %1091 = vmatpush1.bf16.msra.mxu0 %v644
    %1092 = vmatprep.subr.bf16.mxu0 %v641
    %1093 = vmatpush1.bf16.msra.mxu0 %v640
    %1094 = vmatprep.subr.bf16.mxu0 %v637
    %1095 = vmatpush1.bf16.msra.mxu0 %v636
    %1096 = vmatprep.subr.bf16.mxu0 %v633
    %1097 = vmatpush1.bf16.msra.mxu0 %v632
    %1098 = vmatprep.subr.bf16.mxu0 %v629
    %1099 = vmatpush1.bf16.msra.mxu0 %v628
    %1100 = vmatprep.subr.bf16.mxu0 %v625
    %1101 = vmatpush1.bf16.msra.mxu0 %v624
    %1102 = vmatprep.subr.bf16.mxu0 %v621
    %1103 = vmatpush1.bf16.msra.mxu0 %v620
    %1104 = vmatprep.subr.bf16.mxu0 %v617
    %1105 = vmatpush1.bf16.msra.mxu0 %v616
    %1106 = vmatprep.subr.bf16.mxu0 0
    %1107 = vmatpush2.bf16.msra.mxu0 0
    %1108 = vmatprep.subr.bf16.mxu0 0
    %1109 = vmatpush2.bf16.msra.mxu0 0
    %1110 = vmatprep.subr.bf16.mxu0 0
    %1111 = vmatpush2.bf16.msra.mxu0 0
    %1112 = vmatprep.subr.bf16.mxu0 0
    %1113 = vmatpush2.bf16.msra.mxu0 0
    %1114 = vmatprep.subr.bf16.mxu0 0
    %1115 = vmatpush2.bf16.msra.mxu0 0
    %1116 = vmatprep.subr.bf16.mxu0 0
    %1117 = vmatpush2.bf16.msra.mxu0 0
    %1118 = vmatprep.subr.bf16.mxu0 0
    %1119 = vmatpush2.bf16.msra.mxu0 0
    %1120 = vmatprep.subr.bf16.mxu0 0
    %1121 = vmatpush2.bf16.msra.mxu0 0
    %1122 = vmatprep.mubr.bf16.mxu0 0
    %1123 = vmatmul.mubr.bf16.gmra.mxu0 %v1048
    %v1124 = vpop.f32.mrf.mxu0
    %v1125 = vadd.f32 0.0, %v1124
    %v1126 = vpop.f32.mrf.mxu0
    %v1127 = vadd.f32 0.0, %v1126
    %v1128 = vpop.f32.mrf.mxu0
    %v1129 = vpop.f32.mrf.mxu0
    %1130 = vdwg.mxu0
    %v1131 = vadd.f32 %v1044, %v1084
    %v1132 = vadd.f32 %v1045, %v1086
    %v1133 = vadd.f32 %v1046, %v1125
    %v1134 = vadd.f32 %v1047, %v1127
    %v1135 = vxor.u32 %v1131, 2147483648
    %v1136 = vmul.f32 %v1135, 1.442695
    %v1137 = vpow.pop %v1136
    %v1138 = vadd.f32 %v1137, 1.0
    %v1139 = vrcp.pop %v1138
    %v1140 = vmul.f32 1.0, %v1139
    %v1141 = vxor.u32 %v1132, 2147483648
    %v1142 = vmul.f32 %v1141, 1.442695
    %v1143 = vpow.pop %v1142
    %v1144 = vadd.f32 %v1143, 1.0
    %v1145 = vrcp.pop %v1144
    %v1146 = vmul.f32 1.0, %v1145
    %v1147 = vtanh.pop %v1133
    %v1148 = vxor.u32 %v1134, 2147483648
    %v1149 = vmul.f32 %v1148, 1.442695
    %v1150 = vpow.pop %v1149
    %v1151 = vadd.f32 %v1150, 1.0
    %v1152 = vrcp.pop %v1151
    %v1153 = vmul.f32 1.0, %v1152
    %v1154 = vld [vmem:[#allocation5] sm:$0xff]
    %v1155 = vmul.f32 %v1146, %v1154
    %v1156 = vmul.f32 %v1140, %v1147
    %v1157 = vadd.f32 %v1155, %v1156
    %v1158 = vtanh.pop %v1157
    %v1159 = vmul.f32 %v1153, %v1158
    %v1160 = vpack.c.bf16 %v1159, %v1159
    %1161 = vst [vmem:[#allocation5] sm:$0xff] %v1157
    %1162 = vst [vmem:[#allocation4] sm:$0xf] %v1160
    %s1163 = scalar_lea.vmem [#allocation2], 12
    %1164 = vst [vmem:[%s1163] sm:$0xf] %v1160
    %s1165 = smul.u32 4, 4
    %s1166 = smul.addr %s1165, 8
    %s1167 = scalar_lea.vmem [#allocation3], %s1166
    %v1168 = vld [vmem:[%s1167] sm:$0xff]
    %v1169 = vld [vmem:[%s1167 + $0x8] sm:$0xff]
    %v1170 = vld [vmem:[%s1167 + $0x10] sm:$0xff]
    %v1171 = vld [vmem:[%s1167 + $0x18] sm:$0xff]
    %v1172 = vld [vmem:[#allocation4] sm:$0xf]
    %1173 = vmatprep.subr.bf16.mxu0 %v643
    %1174 = vmatpush1.bf16.msra.mxu0 %v642
    %1175 = vmatprep.subr.bf16.mxu0 %v639
    %1176 = vmatpush1.bf16.msra.mxu0 %v638
    %1177 = vmatprep.subr.bf16.mxu0 %v635
    %1178 = vmatpush1.bf16.msra.mxu0 %v634
    %1179 = vmatprep.subr.bf16.mxu0 %v631
    %1180 = vmatpush1.bf16.msra.mxu0 %v630
    %1181 = vmatprep.subr.bf16.mxu0 %v627
    %1182 = vmatpush1.bf16.msra.mxu0 %v626
    %1183 = vmatprep.subr.bf16.mxu0 %v623
    %1184 = vmatpush1.bf16.msra.mxu0 %v622
    %1185 = vmatprep.subr.bf16.mxu0 %v619
    %1186 = vmatpush1.bf16.msra.mxu0 %v618
    %1187 = vmatprep.subr.bf16.mxu0 %v615
    %1188 = vmatpush1.bf16.msra.mxu0 %v614
    %1189 = vmatprep.subr.bf16.mxu0 0
    %1190 = vmatpush2.bf16.msra.mxu0 0
    %1191 = vmatprep.subr.bf16.mxu0 0
    %1192 = vmatpush2.bf16.msra.mxu0 0
    %1193 = vmatprep.subr.bf16.mxu0 0
    %1194 = vmatpush2.bf16.msra.mxu0 0
    %1195 = vmatprep.subr.bf16.mxu0 0
    %1196 = vmatpush2.bf16.msra.mxu0 0
    %1197 = vmatprep.subr.bf16.mxu0 0
    %1198 = vmatpush2.bf16.msra.mxu0 0
    %1199 = vmatprep.subr.bf16.mxu0 0
    %1200 = vmatpush2.bf16.msra.mxu0 0
    %1201 = vmatprep.subr.bf16.mxu0 0
    %1202 = vmatpush2.bf16.msra.mxu0 0
    %1203 = vmatprep.subr.bf16.mxu0 0
    %1204 = vmatpush2.bf16.msra.mxu0 0
    %1205 = vmatprep.mubr.bf16.mxu0 0
    %1206 = vmatmul.mubr.bf16.gmra.mxu0 %v1172
    %v1207 = vpop.f32.mrf.mxu0
    %v1208 = vadd.f32 0.0, %v1207
    %v1209 = vpop.f32.mrf.mxu0
    %v1210 = vadd.f32 0.0, %v1209
    %v1211 = vpop.f32.mrf.mxu0
    %v1212 = vpop.f32.mrf.mxu0
    %1213 = vdwg.mxu0
    %1214 = vmatprep.subr.bf16.mxu0 %v645
    %1215 = vmatpush1.bf16.msra.mxu0 %v644
    %1216 = vmatprep.subr.bf16.mxu0 %v641
    %1217 = vmatpush1.bf16.msra.mxu0 %v640
    %1218 = vmatprep.subr.bf16.mxu0 %v637
    %1219 = vmatpush1.bf16.msra.mxu0 %v636
    %1220 = vmatprep.subr.bf16.mxu0 %v633
    %1221 = vmatpush1.bf16.msra.mxu0 %v632
    %1222 = vmatprep.subr.bf16.mxu0 %v629
    %1223 = vmatpush1.bf16.msra.mxu0 %v628
    %1224 = vmatprep.subr.bf16.mxu0 %v625
    %1225 = vmatpush1.bf16.msra.mxu0 %v624
    %1226 = vmatprep.subr.bf16.mxu0 %v621
    %1227 = vmatpush1.bf16.msra.mxu0 %v620
    %1228 = vmatprep.subr.bf16.mxu0 %v617
    %1229 = vmatpush1.bf16.msra.mxu0 %v616
    %1230 = vmatprep.subr.bf16.mxu0 0
    %1231 = vmatpush2.bf16.msra.mxu0 0
    %1232 = vmatprep.subr.bf16.mxu0 0
    %1233 = vmatpush2.bf16.msra.mxu0 0
    %1234 = vmatprep.subr.bf16.mxu0 0
    %1235 = vmatpush2.bf16.msra.mxu0 0
    %1236 = vmatprep.subr.bf16.mxu0 0
    %1237 = vmatpush2.bf16.msra.mxu0 0
    %1238 = vmatprep.subr.bf16.mxu0 0
    %1239 = vmatpush2.bf16.msra.mxu0 0
    %1240 = vmatprep.subr.bf16.mxu0 0
    %1241 = vmatpush2.bf16.msra.mxu0 0
    %1242 = vmatprep.subr.bf16.mxu0 0
    %1243 = vmatpush2.bf16.msra.mxu0 0
    %1244 = vmatprep.subr.bf16.mxu0 0
    %1245 = vmatpush2.bf16.msra.mxu0 0
    %1246 = vmatprep.mubr.bf16.mxu0 0
    %1247 = vmatmul.mubr.bf16.gmra.mxu0 %v1172
    %v1248 = vpop.f32.mrf.mxu0
    %v1249 = vadd.f32 0.0, %v1248
    %v1250 = vpop.f32.mrf.mxu0
    %v1251 = vadd.f32 0.0, %v1250
    %v1252 = vpop.f32.mrf.mxu0
    %v1253 = vpop.f32.mrf.mxu0
    %1254 = vdwg.mxu0
    %v1255 = vadd.f32 %v1168, %v1208
    %v1256 = vadd.f32 %v1169, %v1210
    %v1257 = vadd.f32 %v1170, %v1249
    %v1258 = vadd.f32 %v1171, %v1251
    %v1259 = vxor.u32 %v1255, 2147483648
    %v1260 = vmul.f32 %v1259, 1.442695
    %v1261 = vpow.pop %v1260
    %v1262 = vadd.f32 %v1261, 1.0
    %v1263 = vrcp.pop %v1262
    %v1264 = vmul.f32 1.0, %v1263
    %v1265 = vxor.u32 %v1256, 2147483648
    %v1266 = vmul.f32 %v1265, 1.442695
    %v1267 = vpow.pop %v1266
    %v1268 = vadd.f32 %v1267, 1.0
    %v1269 = vrcp.pop %v1268
    %v1270 = vmul.f32 1.0, %v1269
    %v1271 = vtanh.pop %v1257
    %v1272 = vxor.u32 %v1258, 2147483648
    %v1273 = vmul.f32 %v1272, 1.442695
    %v1274 = vpow.pop %v1273
    %v1275 = vadd.f32 %v1274, 1.0
    %v1276 = vrcp.pop %v1275
    %v1277 = vmul.f32 1.0, %v1276
    %v1278 = vld [vmem:[#allocation5] sm:$0xff]
    %v1279 = vmul.f32 %v1270, %v1278
    %v1280 = vmul.f32 %v1264, %v1271
    %v1281 = vadd.f32 %v1279, %v1280
    %v1282 = vtanh.pop %v1281
    %v1283 = vmul.f32 %v1277, %v1282
    %v1284 = vpack.c.bf16 %v1283, %v1283
    %1285 = vst [vmem:[#allocation5] sm:$0xff] %v1281
    %1286 = vst [vmem:[#allocation4] sm:$0xf] %v1284
    %s1287 = scalar_lea.vmem [#allocation2], 16
    %1288 = vst [vmem:[%s1287] sm:$0xf] %v1284
    %s1289 = smul.u32 5, 4
    %s1290 = smul.addr %s1289, 8
    %s1291 = scalar_lea.vmem [#allocation3], %s1290
    %v1292 = vld [vmem:[%s1291] sm:$0xff]
    %v1293 = vld [vmem:[%s1291 + $0x8] sm:$0xff]
    %v1294 = vld [vmem:[%s1291 + $0x10] sm:$0xff]
    %v1295 = vld [vmem:[%s1291 + $0x18] sm:$0xff]
    %v1296 = vld [vmem:[#allocation4] sm:$0xf]
    %1297 = vmatprep.subr.bf16.mxu0 %v643
    %1298 = vmatpush1.bf16.msra.mxu0 %v642
    %1299 = vmatprep.subr.bf16.mxu0 %v639
    %1300 = vmatpush1.bf16.msra.mxu0 %v638
    %1301 = vmatprep.subr.bf16.mxu0 %v635
    %1302 = vmatpush1.bf16.msra.mxu0 %v634
    %1303 = vmatprep.subr.bf16.mxu0 %v631
    %1304 = vmatpush1.bf16.msra.mxu0 %v630
    %1305 = vmatprep.subr.bf16.mxu0 %v627
    %1306 = vmatpush1.bf16.msra.mxu0 %v626
    %1307 = vmatprep.subr.bf16.mxu0 %v623
    %1308 = vmatpush1.bf16.msra.mxu0 %v622
    %1309 = vmatprep.subr.bf16.mxu0 %v619
    %1310 = vmatpush1.bf16.msra.mxu0 %v618
    %1311 = vmatprep.subr.bf16.mxu0 %v615
    %1312 = vmatpush1.bf16.msra.mxu0 %v614
    %1313 = vmatprep.subr.bf16.mxu0 0
    %1314 = vmatpush2.bf16.msra.mxu0 0
    %1315 = vmatprep.subr.bf16.mxu0 0
    %1316 = vmatpush2.bf16.msra.mxu0 0
    %1317 = vmatprep.subr.bf16.mxu0 0
    %1318 = vmatpush2.bf16.msra.mxu0 0
    %1319 = vmatprep.subr.bf16.mxu0 0
    %1320 = vmatpush2.bf16.msra.mxu0 0
    %1321 = vmatprep.subr.bf16.mxu0 0
    %1322 = vmatpush2.bf16.msra.mxu0 0
    %1323 = vmatprep.subr.bf16.mxu0 0
    %1324 = vmatpush2.bf16.msra.mxu0 0
    %1325 = vmatprep.subr.bf16.mxu0 0
    %1326 = vmatpush2.bf16.msra.mxu0 0
    %1327 = vmatprep.subr.bf16.mxu0 0
    %1328 = vmatpush2.bf16.msra.mxu0 0
    %1329 = vmatprep.mubr.bf16.mxu0 0
    %1330 = vmatmul.mubr.bf16.gmra.mxu0 %v1296
    %v1331 = vpop.f32.mrf.mxu0
    %v1332 = vadd.f32 0.0, %v1331
    %v1333 = vpop.f32.mrf.mxu0
    %v1334 = vadd.f32 0.0, %v1333
    %v1335 = vpop.f32.mrf.mxu0
    %v1336 = vpop.f32.mrf.mxu0
    %1337 = vdwg.mxu0
    %1338 = vmatprep.subr.bf16.mxu0 %v645
    %1339 = vmatpush1.bf16.msra.mxu0 %v644
    %1340 = vmatprep.subr.bf16.mxu0 %v641
    %1341 = vmatpush1.bf16.msra.mxu0 %v640
    %1342 = vmatprep.subr.bf16.mxu0 %v637
    %1343 = vmatpush1.bf16.msra.mxu0 %v636
    %1344 = vmatprep.subr.bf16.mxu0 %v633
    %1345 = vmatpush1.bf16.msra.mxu0 %v632
    %1346 = vmatprep.subr.bf16.mxu0 %v629
    %1347 = vmatpush1.bf16.msra.mxu0 %v628
    %1348 = vmatprep.subr.bf16.mxu0 %v625
    %1349 = vmatpush1.bf16.msra.mxu0 %v624
    %1350 = vmatprep.subr.bf16.mxu0 %v621
    %1351 = vmatpush1.bf16.msra.mxu0 %v620
    %1352 = vmatprep.subr.bf16.mxu0 %v617
    %1353 = vmatpush1.bf16.msra.mxu0 %v616
    %1354 = vmatprep.subr.bf16.mxu0 0
    %1355 = vmatpush2.bf16.msra.mxu0 0
    %1356 = vmatprep.subr.bf16.mxu0 0
    %1357 = vmatpush2.bf16.msra.mxu0 0
    %1358 = vmatprep.subr.bf16.mxu0 0
    %1359 = vmatpush2.bf16.msra.mxu0 0
    %1360 = vmatprep.subr.bf16.mxu0 0
    %1361 = vmatpush2.bf16.msra.mxu0 0
    %1362 = vmatprep.subr.bf16.mxu0 0
    %1363 = vmatpush2.bf16.msra.mxu0 0
    %1364 = vmatprep.subr.bf16.mxu0 0
    %1365 = vmatpush2.bf16.msra.mxu0 0
    %1366 = vmatprep.subr.bf16.mxu0 0
    %1367 = vmatpush2.bf16.msra.mxu0 0
    %1368 = vmatprep.subr.bf16.mxu0 0
    %1369 = vmatpush2.bf16.msra.mxu0 0
    %1370 = vmatprep.mubr.bf16.mxu0 0
    %1371 = vmatmul.mubr.bf16.gmra.mxu0 %v1296
    %v1372 = vpop.f32.mrf.mxu0
    %v1373 = vadd.f32 0.0, %v1372
    %v1374 = vpop.f32.mrf.mxu0
    %v1375 = vadd.f32 0.0, %v1374
    %v1376 = vpop.f32.mrf.mxu0
    %v1377 = vpop.f32.mrf.mxu0
    %1378 = vdwg.mxu0
    %v1379 = vadd.f32 %v1292, %v1332
    %v1380 = vadd.f32 %v1293, %v1334
    %v1381 = vadd.f32 %v1294, %v1373
    %v1382 = vadd.f32 %v1295, %v1375
    %v1383 = vxor.u32 %v1379, 2147483648
    %v1384 = vmul.f32 %v1383, 1.442695
    %v1385 = vpow.pop %v1384
    %v1386 = vadd.f32 %v1385, 1.0
    %v1387 = vrcp.pop %v1386
    %v1388 = vmul.f32 1.0, %v1387
    %v1389 = vxor.u32 %v1380, 2147483648
    %v1390 = vmul.f32 %v1389, 1.442695
    %v1391 = vpow.pop %v1390
    %v1392 = vadd.f32 %v1391, 1.0
    %v1393 = vrcp.pop %v1392
    %v1394 = vmul.f32 1.0, %v1393
    %v1395 = vtanh.pop %v1381
    %v1396 = vxor.u32 %v1382, 2147483648
    %v1397 = vmul.f32 %v1396, 1.442695
    %v1398 = vpow.pop %v1397
    %v1399 = vadd.f32 %v1398, 1.0
    %v1400 = vrcp.pop %v1399
    %v1401 = vmul.f32 1.0, %v1400
    %v1402 = vld [vmem:[#allocation5] sm:$0xff]
    %v1403 = vmul.f32 %v1394, %v1402
    %v1404 = vmul.f32 %v1388, %v1395
    %v1405 = vadd.f32 %v1403, %v1404
    %v1406 = vtanh.pop %v1405
    %v1407 = vmul.f32 %v1401, %v1406
    %v1408 = vpack.c.bf16 %v1407, %v1407
    %1409 = vst [vmem:[#allocation5] sm:$0xff] %v1405
    %1410 = vst [vmem:[#allocation4] sm:$0xf] %v1408
    %s1411 = scalar_lea.vmem [#allocation2], 20
    %1412 = vst [vmem:[%s1411] sm:$0xf] %v1408
    %s1413 = smul.u32 6, 4
    %s1414 = smul.addr %s1413, 8
    %s1415 = scalar_lea.vmem [#allocation3], %s1414
    %v1416 = vld [vmem:[%s1415] sm:$0xff]
    %v1417 = vld [vmem:[%s1415 + $0x8] sm:$0xff]
    %v1418 = vld [vmem:[%s1415 + $0x10] sm:$0xff]
    %v1419 = vld [vmem:[%s1415 + $0x18] sm:$0xff]
    %v1420 = vld [vmem:[#allocation4] sm:$0xf]
    %1421 = vmatprep.subr.bf16.mxu0 %v643
    %1422 = vmatpush1.bf16.msra.mxu0 %v642
    %1423 = vmatprep.subr.bf16.mxu0 %v639
    %1424 = vmatpush1.bf16.msra.mxu0 %v638
    %1425 = vmatprep.subr.bf16.mxu0 %v635
    %1426 = vmatpush1.bf16.msra.mxu0 %v634
    %1427 = vmatprep.subr.bf16.mxu0 %v631
    %1428 = vmatpush1.bf16.msra.mxu0 %v630
    %1429 = vmatprep.subr.bf16.mxu0 %v627
    %1430 = vmatpush1.bf16.msra.mxu0 %v626
    %1431 = vmatprep.subr.bf16.mxu0 %v623
    %1432 = vmatpush1.bf16.msra.mxu0 %v622
    %1433 = vmatprep.subr.bf16.mxu0 %v619
    %1434 = vmatpush1.bf16.msra.mxu0 %v618
    %1435 = vmatprep.subr.bf16.mxu0 %v615
    %1436 = vmatpush1.bf16.msra.mxu0 %v614
    %1437 = vmatprep.subr.bf16.mxu0 0
    %1438 = vmatpush2.bf16.msra.mxu0 0
    %1439 = vmatprep.subr.bf16.mxu0 0
    %1440 = vmatpush2.bf16.msra.mxu0 0
    %1441 = vmatprep.subr.bf16.mxu0 0
    %1442 = vmatpush2.bf16.msra.mxu0 0
    %1443 = vmatprep.subr.bf16.mxu0 0
    %1444 = vmatpush2.bf16.msra.mxu0 0
    %1445 = vmatprep.subr.bf16.mxu0 0
    %1446 = vmatpush2.bf16.msra.mxu0 0
    %1447 = vmatprep.subr.bf16.mxu0 0
    %1448 = vmatpush2.bf16.msra.mxu0 0
    %1449 = vmatprep.subr.bf16.mxu0 0
    %1450 = vmatpush2.bf16.msra.mxu0 0
    %1451 = vmatprep.subr.bf16.mxu0 0
    %1452 = vmatpush2.bf16.msra.mxu0 0
    %1453 = vmatprep.mubr.bf16.mxu0 0
    %1454 = vmatmul.mubr.bf16.gmra.mxu0 %v1420
    %v1455 = vpop.f32.mrf.mxu0
    %v1456 = vadd.f32 0.0, %v1455
    %v1457 = vpop.f32.mrf.mxu0
    %v1458 = vadd.f32 0.0, %v1457
    %v1459 = vpop.f32.mrf.mxu0
    %v1460 = vpop.f32.mrf.mxu0
    %1461 = vdwg.mxu0
    %1462 = vmatprep.subr.bf16.mxu0 %v645
    %1463 = vmatpush1.bf16.msra.mxu0 %v644
    %1464 = vmatprep.subr.bf16.mxu0 %v641
    %1465 = vmatpush1.bf16.msra.mxu0 %v640
    %1466 = vmatprep.subr.bf16.mxu0 %v637
    %1467 = vmatpush1.bf16.msra.mxu0 %v636
    %1468 = vmatprep.subr.bf16.mxu0 %v633
    %1469 = vmatpush1.bf16.msra.mxu0 %v632
    %1470 = vmatprep.subr.bf16.mxu0 %v629
    %1471 = vmatpush1.bf16.msra.mxu0 %v628
    %1472 = vmatprep.subr.bf16.mxu0 %v625
    %1473 = vmatpush1.bf16.msra.mxu0 %v624
    %1474 = vmatprep.subr.bf16.mxu0 %v621
    %1475 = vmatpush1.bf16.msra.mxu0 %v620
    %1476 = vmatprep.subr.bf16.mxu0 %v617
    %1477 = vmatpush1.bf16.msra.mxu0 %v616
    %1478 = vmatprep.subr.bf16.mxu0 0
    %1479 = vmatpush2.bf16.msra.mxu0 0
    %1480 = vmatprep.subr.bf16.mxu0 0
    %1481 = vmatpush2.bf16.msra.mxu0 0
    %1482 = vmatprep.subr.bf16.mxu0 0
    %1483 = vmatpush2.bf16.msra.mxu0 0
    %1484 = vmatprep.subr.bf16.mxu0 0
    %1485 = vmatpush2.bf16.msra.mxu0 0
    %1486 = vmatprep.subr.bf16.mxu0 0
    %1487 = vmatpush2.bf16.msra.mxu0 0
    %1488 = vmatprep.subr.bf16.mxu0 0
    %1489 = vmatpush2.bf16.msra.mxu0 0
    %1490 = vmatprep.subr.bf16.mxu0 0
    %1491 = vmatpush2.bf16.msra.mxu0 0
    %1492 = vmatprep.subr.bf16.mxu0 0
    %1493 = vmatpush2.bf16.msra.mxu0 0
    %1494 = vmatprep.mubr.bf16.mxu0 0
    %1495 = vmatmul.mubr.bf16.gmra.mxu0 %v1420
    %v1496 = vpop.f32.mrf.mxu0
    %v1497 = vadd.f32 0.0, %v1496
    %v1498 = vpop.f32.mrf.mxu0
    %v1499 = vadd.f32 0.0, %v1498
    %v1500 = vpop.f32.mrf.mxu0
    %v1501 = vpop.f32.mrf.mxu0
    %1502 = vdwg.mxu0
    %v1503 = vadd.f32 %v1416, %v1456
    %v1504 = vadd.f32 %v1417, %v1458
    %v1505 = vadd.f32 %v1418, %v1497
    %v1506 = vadd.f32 %v1419, %v1499
    %v1507 = vxor.u32 %v1503, 2147483648
    %v1508 = vmul.f32 %v1507, 1.442695
    %v1509 = vpow.pop %v1508
    %v1510 = vadd.f32 %v1509, 1.0
    %v1511 = vrcp.pop %v1510
    %v1512 = vmul.f32 1.0, %v1511
    %v1513 = vxor.u32 %v1504, 2147483648
    %v1514 = vmul.f32 %v1513, 1.442695
    %v1515 = vpow.pop %v1514
    %v1516 = vadd.f32 %v1515, 1.0
    %v1517 = vrcp.pop %v1516
    %v1518 = vmul.f32 1.0, %v1517
    %v1519 = vtanh.pop %v1505
    %v1520 = vxor.u32 %v1506, 2147483648
    %v1521 = vmul.f32 %v1520, 1.442695
    %v1522 = vpow.pop %v1521
    %v1523 = vadd.f32 %v1522, 1.0
    %v1524 = vrcp.pop %v1523
    %v1525 = vmul.f32 1.0, %v1524
    %v1526 = vld [vmem:[#allocation5] sm:$0xff]
    %v1527 = vmul.f32 %v1518, %v1526
    %v1528 = vmul.f32 %v1512, %v1519
    %v1529 = vadd.f32 %v1527, %v1528
    %v1530 = vtanh.pop %v1529
    %v1531 = vmul.f32 %v1525, %v1530
    %v1532 = vpack.c.bf16 %v1531, %v1531
    %1533 = vst [vmem:[#allocation5] sm:$0xff] %v1529
    %1534 = vst [vmem:[#allocation4] sm:$0xf] %v1532
    %s1535 = scalar_lea.vmem [#allocation2], 24
    %1536 = vst [vmem:[%s1535] sm:$0xf] %v1532
    %s1537 = smul.u32 7, 4
    %s1538 = smul.addr %s1537, 8
    %s1539 = scalar_lea.vmem [#allocation3], %s1538
    %v1540 = vld [vmem:[%s1539] sm:$0xff]
    %v1541 = vld [vmem:[%s1539 + $0x8] sm:$0xff]
    %v1542 = vld [vmem:[%s1539 + $0x10] sm:$0xff]
    %v1543 = vld [vmem:[%s1539 + $0x18] sm:$0xff]
    %v1544 = vld [vmem:[#allocation4] sm:$0xf]
    %1545 = vmatprep.subr.bf16.mxu0 %v643
    %1546 = vmatpush1.bf16.msra.mxu0 %v642
    %1547 = vmatprep.subr.bf16.mxu0 %v639
    %1548 = vmatpush1.bf16.msra.mxu0 %v638
    %1549 = vmatprep.subr.bf16.mxu0 %v635
    %1550 = vmatpush1.bf16.msra.mxu0 %v634
    %1551 = vmatprep.subr.bf16.mxu0 %v631
    %1552 = vmatpush1.bf16.msra.mxu0 %v630
    %1553 = vmatprep.subr.bf16.mxu0 %v627
    %1554 = vmatpush1.bf16.msra.mxu0 %v626
    %1555 = vmatprep.subr.bf16.mxu0 %v623
    %1556 = vmatpush1.bf16.msra.mxu0 %v622
    %1557 = vmatprep.subr.bf16.mxu0 %v619
    %1558 = vmatpush1.bf16.msra.mxu0 %v618
    %1559 = vmatprep.subr.bf16.mxu0 %v615
    %1560 = vmatpush1.bf16.msra.mxu0 %v614
    %1561 = vmatprep.subr.bf16.mxu0 0
    %1562 = vmatpush2.bf16.msra.mxu0 0
    %1563 = vmatprep.subr.bf16.mxu0 0
    %1564 = vmatpush2.bf16.msra.mxu0 0
    %1565 = vmatprep.subr.bf16.mxu0 0
    %1566 = vmatpush2.bf16.msra.mxu0 0
    %1567 = vmatprep.subr.bf16.mxu0 0
    %1568 = vmatpush2.bf16.msra.mxu0 0
    %1569 = vmatprep.subr.bf16.mxu0 0
    %1570 = vmatpush2.bf16.msra.mxu0 0
    %1571 = vmatprep.subr.bf16.mxu0 0
    %1572 = vmatpush2.bf16.msra.mxu0 0
    %1573 = vmatprep.subr.bf16.mxu0 0
    %1574 = vmatpush2.bf16.msra.mxu0 0
    %1575 = vmatprep.subr.bf16.mxu0 0
    %1576 = vmatpush2.bf16.msra.mxu0 0
    %1577 = vmatprep.mubr.bf16.mxu0 0
    %1578 = vmatmul.mubr.bf16.gmra.mxu0 %v1544
    %v1579 = vpop.f32.mrf.mxu0
    %v1580 = vadd.f32 0.0, %v1579
    %v1581 = vpop.f32.mrf.mxu0
    %v1582 = vadd.f32 0.0, %v1581
    %v1583 = vpop.f32.mrf.mxu0
    %v1584 = vpop.f32.mrf.mxu0
    %1585 = vdwg.mxu0
    %1586 = vmatprep.subr.bf16.mxu0 %v645
    %1587 = vmatpush1.bf16.msra.mxu0 %v644
    %1588 = vmatprep.subr.bf16.mxu0 %v641
    %1589 = vmatpush1.bf16.msra.mxu0 %v640
    %1590 = vmatprep.subr.bf16.mxu0 %v637
    %1591 = vmatpush1.bf16.msra.mxu0 %v636
    %1592 = vmatprep.subr.bf16.mxu0 %v633
    %1593 = vmatpush1.bf16.msra.mxu0 %v632
    %1594 = vmatprep.subr.bf16.mxu0 %v629
    %1595 = vmatpush1.bf16.msra.mxu0 %v628
    %1596 = vmatprep.subr.bf16.mxu0 %v625
    %1597 = vmatpush1.bf16.msra.mxu0 %v624
    %1598 = vmatprep.subr.bf16.mxu0 %v621
    %1599 = vmatpush1.bf16.msra.mxu0 %v620
    %1600 = vmatprep.subr.bf16.mxu0 %v617
    %1601 = vmatpush1.bf16.msra.mxu0 %v616
    %1602 = vmatprep.subr.bf16.mxu0 0
    %1603 = vmatpush2.bf16.msra.mxu0 0
    %1604 = vmatprep.subr.bf16.mxu0 0
    %1605 = vmatpush2.bf16.msra.mxu0 0
    %1606 = vmatprep.subr.bf16.mxu0 0
    %1607 = vmatpush2.bf16.msra.mxu0 0
    %1608 = vmatprep.subr.bf16.mxu0 0
    %1609 = vmatpush2.bf16.msra.mxu0 0
    %1610 = vmatprep.subr.bf16.mxu0 0
    %1611 = vmatpush2.bf16.msra.mxu0 0
    %1612 = vmatprep.subr.bf16.mxu0 0
    %1613 = vmatpush2.bf16.msra.mxu0 0
    %1614 = vmatprep.subr.bf16.mxu0 0
    %1615 = vmatpush2.bf16.msra.mxu0 0
    %1616 = vmatprep.subr.bf16.mxu0 0
    %1617 = vmatpush2.bf16.msra.mxu0 0
    %1618 = vmatprep.mubr.bf16.mxu0 0
    %1619 = vmatmul.mubr.bf16.gmra.mxu0 %v1544
    %v1620 = vpop.f32.mrf.mxu0
    %v1621 = vadd.f32 0.0, %v1620
    %v1622 = vpop.f32.mrf.mxu0
    %v1623 = vadd.f32 0.0, %v1622
    %v1624 = vpop.f32.mrf.mxu0
    %v1625 = vpop.f32.mrf.mxu0
    %1626 = vdwg.mxu0
    %v1627 = vadd.f32 %v1540, %v1580
    %v1628 = vadd.f32 %v1541, %v1582
    %v1629 = vadd.f32 %v1542, %v1621
    %v1630 = vadd.f32 %v1543, %v1623
    %v1631 = vxor.u32 %v1627, 2147483648
    %v1632 = vmul.f32 %v1631, 1.442695
    %v1633 = vpow.pop %v1632
    %v1634 = vadd.f32 %v1633, 1.0
    %v1635 = vrcp.pop %v1634
    %v1636 = vmul.f32 1.0, %v1635
    %v1637 = vxor.u32 %v1628, 2147483648
    %v1638 = vmul.f32 %v1637, 1.442695
    %v1639 = vpow.pop %v1638
    %v1640 = vadd.f32 %v1639, 1.0
    %v1641 = vrcp.pop %v1640
    %v1642 = vmul.f32 1.0, %v1641
    %v1643 = vtanh.pop %v1629
    %v1644 = vxor.u32 %v1630, 2147483648
    %v1645 = vmul.f32 %v1644, 1.442695
    %v1646 = vpow.pop %v1645
    %v1647 = vadd.f32 %v1646, 1.0
    %v1648 = vrcp.pop %v1647
    %v1649 = vmul.f32 1.0, %v1648
    %v1650 = vld [vmem:[#allocation5] sm:$0xff]
    %v1651 = vmul.f32 %v1642, %v1650
    %v1652 = vmul.f32 %v1636, %v1643
    %v1653 = vadd.f32 %v1651, %v1652
    %v1654 = vtanh.pop %v1653
    %v1655 = vmul.f32 %v1649, %v1654
    %v1656 = vpack.c.bf16 %v1655, %v1655
    %1657 = vst [vmem:[#allocation5] sm:$0xff] %v1653
    %1658 = vst [vmem:[#allocation4] sm:$0xf] %v1656
    %s1659 = scalar_lea.vmem [#allocation2], 28
    %1660 = vst [vmem:[%s1659] sm:$0xf] %v1656
    %s1661 = scalar_lea.vmem [#allocation6], 256
    %v1662 = vld [vmem:[%s1661] sm:$0xff]
    %v1663 = vld [vmem:[%s1661 + $0x8] sm:$0xff]
    %v1664 = vld [vmem:[%s1661 + $0x10] sm:$0xff]
    %v1665 = vld [vmem:[%s1661 + $0x18] sm:$0xff]
    %v1666 = vld [vmem:[%s1661 + $0x20] sm:$0xff]
    %v1667 = vld [vmem:[%s1661 + $0x28] sm:$0xff]
    %v1668 = vld [vmem:[%s1661 + $0x30] sm:$0xff]
    %v1669 = vld [vmem:[%s1661 + $0x38] sm:$0xff]
    %v1670 = vld [vmem:[%s1661 + $0x40] sm:$0xff]
    %v1671 = vld [vmem:[%s1661 + $0x48] sm:$0xff]
    %v1672 = vld [vmem:[%s1661 + $0x50] sm:$0xff]
    %v1673 = vld [vmem:[%s1661 + $0x58] sm:$0xff]
    %v1674 = vld [vmem:[%s1661 + $0x60] sm:$0xff]
    %v1675 = vld [vmem:[%s1661 + $0x68] sm:$0xff]
    %v1676 = vld [vmem:[%s1661 + $0x70] sm:$0xff]
    %v1677 = vld [vmem:[%s1661 + $0x78] sm:$0xff]
    %v1678 = vld [vmem:[%s1661 + $0x80] sm:$0xff]
    %v1679 = vld [vmem:[%s1661 + $0x88] sm:$0xff]
    %v1680 = vld [vmem:[%s1661 + $0x90] sm:$0xff]
    %v1681 = vld [vmem:[%s1661 + $0x98] sm:$0xff]
    %v1682 = vld [vmem:[%s1661 + $0xa0] sm:$0xff]
    %v1683 = vld [vmem:[%s1661 + $0xa8] sm:$0xff]
    %v1684 = vld [vmem:[%s1661 + $0xb0] sm:$0xff]
    %v1685 = vld [vmem:[%s1661 + $0xb8] sm:$0xff]
    %v1686 = vld [vmem:[%s1661 + $0xc0] sm:$0xff]
    %v1687 = vld [vmem:[%s1661 + $0xc8] sm:$0xff]
    %v1688 = vld [vmem:[%s1661 + $0xd0] sm:$0xff]
    %v1689 = vld [vmem:[%s1661 + $0xd8] sm:$0xff]
    %v1690 = vld [vmem:[%s1661 + $0xe0] sm:$0xff]
    %v1691 = vld [vmem:[%s1661 + $0xe8] sm:$0xff]
    %v1692 = vld [vmem:[%s1661 + $0xf0] sm:$0xff]
    %v1693 = vld [vmem:[%s1661 + $0xf8] sm:$0xff]
    %s1694 = scalar_lea.vmem [#allocation8], 256
    %v1695 = vld [vmem:[%s1694] sm:$0xff]
    %v1696 = vld [vmem:[%s1694 + $0x8] sm:$0xff]
    %v1697 = vld [vmem:[%s1694 + $0x10] sm:$0xff]
    %v1698 = vld [vmem:[%s1694 + $0x18] sm:$0xff]
    %v1699 = vld [vmem:[%s1694 + $0x20] sm:$0xff]
    %v1700 = vld [vmem:[%s1694 + $0x28] sm:$0xff]
    %v1701 = vld [vmem:[%s1694 + $0x30] sm:$0xff]
    %v1702 = vld [vmem:[%s1694 + $0x38] sm:$0xff]
    %v1703 = vld [vmem:[%s1694 + $0x40] sm:$0xff]
    %v1704 = vld [vmem:[%s1694 + $0x48] sm:$0xff]
    %v1705 = vld [vmem:[%s1694 + $0x50] sm:$0xff]
    %v1706 = vld [vmem:[%s1694 + $0x58] sm:$0xff]
    %v1707 = vld [vmem:[%s1694 + $0x60] sm:$0xff]
    %v1708 = vld [vmem:[%s1694 + $0x68] sm:$0xff]
    %v1709 = vld [vmem:[%s1694 + $0x70] sm:$0xff]
    %v1710 = vld [vmem:[%s1694 + $0x78] sm:$0xff]
    %v1711 = vld [vmem:[%s1694 + $0x80] sm:$0xff]
    %v1712 = vld [vmem:[%s1694 + $0x88] sm:$0xff]
    %v1713 = vld [vmem:[%s1694 + $0x90] sm:$0xff]
    %v1714 = vld [vmem:[%s1694 + $0x98] sm:$0xff]
    %v1715 = vld [vmem:[%s1694 + $0xa0] sm:$0xff]
    %v1716 = vld [vmem:[%s1694 + $0xa8] sm:$0xff]
    %v1717 = vld [vmem:[%s1694 + $0xb0] sm:$0xff]
    %v1718 = vld [vmem:[%s1694 + $0xb8] sm:$0xff]
    %v1719 = vld [vmem:[%s1694 + $0xc0] sm:$0xff]
    %v1720 = vld [vmem:[%s1694 + $0xc8] sm:$0xff]
    %v1721 = vld [vmem:[%s1694 + $0xd0] sm:$0xff]
    %v1722 = vld [vmem:[%s1694 + $0xd8] sm:$0xff]
    %v1723 = vld [vmem:[%s1694 + $0xe0] sm:$0xff]
    %v1724 = vld [vmem:[%s1694 + $0xe8] sm:$0xff]
    %v1725 = vld [vmem:[%s1694 + $0xf0] sm:$0xff]
    %v1726 = vld [vmem:[%s1694 + $0xf8] sm:$0xff]
    %s1727 = scalar_lea.vmem %s3, 4
    %v1728 = vld [vmem:[%s1727] sm:$0xf]
    %1729 = vst [vmem:[#allocation4] sm:$0xf] 0
    %1730 = vst [vmem:[#allocation5] sm:$0xff] 0.0
    %v1731 = vld [vmem:[#allocation2] sm:$0xf]
    %v1732 = vld [vmem:[#allocation2 + $0x4] sm:$0xf]
    %v1733 = vld [vmem:[#allocation2 + $0x8] sm:$0xf]
    %v1734 = vld [vmem:[#allocation2 + $0xc] sm:$0xf]
    %v1735 = vld [vmem:[#allocation2 + $0x10] sm:$0xf]
    %v1736 = vld [vmem:[#allocation2 + $0x14] sm:$0xf]
    %v1737 = vld [vmem:[#allocation2 + $0x18] sm:$0xf]
    %v1738 = vld [vmem:[#allocation2 + $0x1c] sm:$0xf]
    %v1740 = vlaneseq
    %v1741 = vshrl.u32 %v1740, 7
    %v1742 = vsub.s32 0, %v1741
    %v1743 = vrot.slane %v1728, %v1742
    %v1744 = vlaneseq
    %v1745 = vshrl.u32 %v1744, 7
    %v1746 = vsub.s32 1, %v1745
    %v1747 = vrot.slane %v1728, %v1746
    %v1748 = vlaneseq
    %v1749 = vshrl.u32 %v1748, 7
    %v1750 = vsub.s32 2, %v1749
    %v1751 = vrot.slane %v1728, %v1750
    %v1752 = vlaneseq
    %v1753 = vshrl.u32 %v1752, 7
    %v1754 = vsub.s32 3, %v1753
    %v1755 = vrot.slane %v1728, %v1754
    %v1768 = vunpack.c.l.b16 %v1731
    %v1769 = vunpack.c.l.b16 %v1732
    %v1770 = vunpack.c.l.b16 %v1733
    %v1771 = vunpack.c.l.b16 %v1734
    %v1772 = vunpack.c.l.b16 %v1735
    %v1773 = vunpack.c.l.b16 %v1736
    %v1774 = vunpack.c.l.b16 %v1737
    %v1775 = vunpack.c.l.b16 %v1738
    %v1776 = vpack.c.b16 %v1769, %v1768
    %v1777 = vpack.c.b16 %v1771, %v1770
    %v1778 = vpack.c.b16 %v1773, %v1772
    %v1779 = vpack.c.b16 %v1775, %v1774
    %v1816 = vunpack.c.l.b16 %v1662
    %v1817 = vunpack.c.h.b16 %v1662
    %v1818 = vunpack.c.l.b16 %v1663
    %v1819 = vunpack.c.h.b16 %v1663
    %v1820 = vunpack.c.l.b16 %v1664
    %v1821 = vunpack.c.h.b16 %v1664
    %v1822 = vunpack.c.l.b16 %v1665
    %v1823 = vunpack.c.h.b16 %v1665
    %v1824 = vunpack.c.l.b16 %v1666
    %v1825 = vunpack.c.h.b16 %v1666
    %v1826 = vunpack.c.l.b16 %v1667
    %v1827 = vunpack.c.h.b16 %v1667
    %v1828 = vunpack.c.l.b16 %v1668
    %v1829 = vunpack.c.h.b16 %v1668
    %v1830 = vunpack.c.l.b16 %v1669
    %v1831 = vunpack.c.h.b16 %v1669
    %v1832 = vunpack.c.l.b16 %v1670
    %v1833 = vunpack.c.h.b16 %v1670
    %v1834 = vunpack.c.l.b16 %v1671
    %v1835 = vunpack.c.h.b16 %v1671
    %v1836 = vunpack.c.l.b16 %v1672
    %v1837 = vunpack.c.h.b16 %v1672
    %v1838 = vunpack.c.l.b16 %v1673
    %v1839 = vunpack.c.h.b16 %v1673
    %v1840 = vunpack.c.l.b16 %v1674
    %v1841 = vunpack.c.h.b16 %v1674
    %v1842 = vunpack.c.l.b16 %v1675
    %v1843 = vunpack.c.h.b16 %v1675
    %v1844 = vunpack.c.l.b16 %v1676
    %v1845 = vunpack.c.h.b16 %v1676
    %v1846 = vunpack.c.l.b16 %v1677
    %v1847 = vunpack.c.h.b16 %v1677
    %v1848 = vunpack.c.l.b16 %v1678
    %v1849 = vunpack.c.h.b16 %v1678
    %v1850 = vunpack.c.l.b16 %v1679
    %v1851 = vunpack.c.h.b16 %v1679
    %v1852 = vunpack.c.l.b16 %v1680
    %v1853 = vunpack.c.h.b16 %v1680
    %v1854 = vunpack.c.l.b16 %v1681
    %v1855 = vunpack.c.h.b16 %v1681
    %v1856 = vunpack.c.l.b16 %v1682
    %v1857 = vunpack.c.h.b16 %v1682
    %v1858 = vunpack.c.l.b16 %v1683
    %v1859 = vunpack.c.h.b16 %v1683
    %v1860 = vunpack.c.l.b16 %v1684
    %v1861 = vunpack.c.h.b16 %v1684
    %v1862 = vunpack.c.l.b16 %v1685
    %v1863 = vunpack.c.h.b16 %v1685
    %v1864 = vunpack.c.l.b16 %v1686
    %v1865 = vunpack.c.h.b16 %v1686
    %v1866 = vunpack.c.l.b16 %v1687
    %v1867 = vunpack.c.h.b16 %v1687
    %v1868 = vunpack.c.l.b16 %v1688
    %v1869 = vunpack.c.h.b16 %v1688
    %v1870 = vunpack.c.l.b16 %v1689
    %v1871 = vunpack.c.h.b16 %v1689
    %v1872 = vunpack.c.l.b16 %v1690
    %v1873 = vunpack.c.h.b16 %v1690
    %v1874 = vunpack.c.l.b16 %v1691
    %v1875 = vunpack.c.h.b16 %v1691
    %v1876 = vunpack.c.l.b16 %v1692
    %v1877 = vunpack.c.h.b16 %v1692
    %v1878 = vunpack.c.l.b16 %v1693
    %v1879 = vunpack.c.h.b16 %v1693
    %v1880 = vpack.c.b16 %v1820, %v1816
    %v1881 = vpack.c.b16 %v1821, %v1817
    %v1882 = vpack.c.b16 %v1822, %v1818
    %v1883 = vpack.c.b16 %v1823, %v1819
    %v1884 = vpack.c.b16 %v1828, %v1824
    %v1885 = vpack.c.b16 %v1829, %v1825
    %v1886 = vpack.c.b16 %v1830, %v1826
    %v1887 = vpack.c.b16 %v1831, %v1827
    %v1888 = vpack.c.b16 %v1836, %v1832
    %v1889 = vpack.c.b16 %v1837, %v1833
    %v1890 = vpack.c.b16 %v1838, %v1834
    %v1891 = vpack.c.b16 %v1839, %v1835
    %v1892 = vpack.c.b16 %v1844, %v1840
    %v1893 = vpack.c.b16 %v1845, %v1841
    %v1894 = vpack.c.b16 %v1846, %v1842
    %v1895 = vpack.c.b16 %v1847, %v1843
    %v1896 = vpack.c.b16 %v1852, %v1848
    %v1897 = vpack.c.b16 %v1853, %v1849
    %v1898 = vpack.c.b16 %v1854, %v1850
    %v1899 = vpack.c.b16 %v1855, %v1851
    %v1900 = vpack.c.b16 %v1860, %v1856
    %v1901 = vpack.c.b16 %v1861, %v1857
    %v1902 = vpack.c.b16 %v1862, %v1858
    %v1903 = vpack.c.b16 %v1863, %v1859
    %v1904 = vpack.c.b16 %v1868, %v1864
    %v1905 = vpack.c.b16 %v1869, %v1865
    %v1906 = vpack.c.b16 %v1870, %v1866
    %v1907 = vpack.c.b16 %v1871, %v1867
    %v1908 = vpack.c.b16 %v1876, %v1872
    %v1909 = vpack.c.b16 %v1877, %v1873
    %v1910 = vpack.c.b16 %v1878, %v1874
    %v1911 = vpack.c.b16 %v1879, %v1875
    %1944 = vmatprep.subr.bf16.mxu0 %v1909
    %1945 = vmatpush1.bf16.msra.mxu0 %v1908
    %1946 = vmatprep.subr.bf16.mxu0 %v1905
    %1947 = vmatpush1.bf16.msra.mxu0 %v1904
    %1948 = vmatprep.subr.bf16.mxu0 %v1901
    %1949 = vmatpush1.bf16.msra.mxu0 %v1900
    %1950 = vmatprep.subr.bf16.mxu0 %v1897
    %1951 = vmatpush1.bf16.msra.mxu0 %v1896
    %1952 = vmatprep.subr.bf16.mxu0 %v1893
    %1953 = vmatpush1.bf16.msra.mxu0 %v1892
    %1954 = vmatprep.subr.bf16.mxu0 %v1889
    %1955 = vmatpush1.bf16.msra.mxu0 %v1888
    %1956 = vmatprep.subr.bf16.mxu0 %v1885
    %1957 = vmatpush1.bf16.msra.mxu0 %v1884
    %1958 = vmatprep.subr.bf16.mxu0 %v1881
    %1959 = vmatpush1.bf16.msra.mxu0 %v1880
    %1960 = vmatprep.subr.bf16.mxu0 0
    %1961 = vmatpush2.bf16.msra.mxu0 0
    %1962 = vmatprep.subr.bf16.mxu0 0
    %1963 = vmatpush2.bf16.msra.mxu0 0
    %1964 = vmatprep.subr.bf16.mxu0 0
    %1965 = vmatpush2.bf16.msra.mxu0 0
    %1966 = vmatprep.subr.bf16.mxu0 0
    %1967 = vmatpush2.bf16.msra.mxu0 0
    %1968 = vmatprep.subr.bf16.mxu0 0
    %1969 = vmatpush2.bf16.msra.mxu0 0
    %1970 = vmatprep.subr.bf16.mxu0 0
    %1971 = vmatpush2.bf16.msra.mxu0 0
    %1972 = vmatprep.subr.bf16.mxu0 0
    %1973 = vmatpush2.bf16.msra.mxu0 0
    %1974 = vmatprep.subr.bf16.mxu0 0
    %1975 = vmatpush2.bf16.msra.mxu0 0
    %1976 = vmatprep.mubr.bf16.mxu0 0
    %1977 = vmatmul.mubr.bf16.gmra.mxu0 %v1776
    %v1978 = vpop.f32.mrf.mxu0
    %v1979 = vadd.f32 %v1743, %v1978
    %v1980 = vpop.f32.mrf.mxu0
    %v1981 = vadd.f32 %v1747, %v1980
    %v1982 = vpop.f32.mrf.mxu0
    %v1983 = vadd.f32 %v1743, %v1982
    %v1984 = vpop.f32.mrf.mxu0
    %v1985 = vadd.f32 %v1747, %v1984
    %1986 = vmatprep.mubr.bf16.mxu0 0
    %1987 = vmatmul.mubr.bf16.gmra.mxu0 %v1777
    %v1988 = vpop.f32.mrf.mxu0
    %v1989 = vadd.f32 %v1743, %v1988
    %v1990 = vpop.f32.mrf.mxu0
    %v1991 = vadd.f32 %v1747, %v1990
    %v1992 = vpop.f32.mrf.mxu0
    %v1993 = vadd.f32 %v1743, %v1992
    %v1994 = vpop.f32.mrf.mxu0
    %v1995 = vadd.f32 %v1747, %v1994
    %1996 = vmatprep.mubr.bf16.mxu0 0
    %1997 = vmatmul.mubr.bf16.gmra.mxu0 %v1778
    %v1998 = vpop.f32.mrf.mxu0
    %v1999 = vadd.f32 %v1743, %v1998
    %v2000 = vpop.f32.mrf.mxu0
    %v2001 = vadd.f32 %v1747, %v2000
    %v2002 = vpop.f32.mrf.mxu0
    %v2003 = vadd.f32 %v1743, %v2002
    %v2004 = vpop.f32.mrf.mxu0
    %v2005 = vadd.f32 %v1747, %v2004
    %2006 = vmatprep.mubr.bf16.mxu0 0
    %2007 = vmatmul.mubr.bf16.gmra.mxu0 %v1779
    %v2008 = vpop.f32.mrf.mxu0
    %v2009 = vadd.f32 %v1743, %v2008
    %v2010 = vpop.f32.mrf.mxu0
    %v2011 = vadd.f32 %v1747, %v2010
    %v2012 = vpop.f32.mrf.mxu0
    %v2013 = vadd.f32 %v1743, %v2012
    %v2014 = vpop.f32.mrf.mxu0
    %v2015 = vadd.f32 %v1747, %v2014
    %2016 = vdwg.mxu0
    %2017 = vmatprep.subr.bf16.mxu0 %v1911
    %2018 = vmatpush1.bf16.msra.mxu0 %v1910
    %2019 = vmatprep.subr.bf16.mxu0 %v1907
    %2020 = vmatpush1.bf16.msra.mxu0 %v1906
    %2021 = vmatprep.subr.bf16.mxu0 %v1903
    %2022 = vmatpush1.bf16.msra.mxu0 %v1902
    %2023 = vmatprep.subr.bf16.mxu0 %v1899
    %2024 = vmatpush1.bf16.msra.mxu0 %v1898
    %2025 = vmatprep.subr.bf16.mxu0 %v1895
    %2026 = vmatpush1.bf16.msra.mxu0 %v1894
    %2027 = vmatprep.subr.bf16.mxu0 %v1891
    %2028 = vmatpush1.bf16.msra.mxu0 %v1890
    %2029 = vmatprep.subr.bf16.mxu0 %v1887
    %2030 = vmatpush1.bf16.msra.mxu0 %v1886
    %2031 = vmatprep.subr.bf16.mxu0 %v1883
    %2032 = vmatpush1.bf16.msra.mxu0 %v1882
    %2033 = vmatprep.subr.bf16.mxu0 0
    %2034 = vmatpush2.bf16.msra.mxu0 0
    %2035 = vmatprep.subr.bf16.mxu0 0
    %2036 = vmatpush2.bf16.msra.mxu0 0
    %2037 = vmatprep.subr.bf16.mxu0 0
    %2038 = vmatpush2.bf16.msra.mxu0 0
    %2039 = vmatprep.subr.bf16.mxu0 0
    %2040 = vmatpush2.bf16.msra.mxu0 0
    %2041 = vmatprep.subr.bf16.mxu0 0
    %2042 = vmatpush2.bf16.msra.mxu0 0
    %2043 = vmatprep.subr.bf16.mxu0 0
    %2044 = vmatpush2.bf16.msra.mxu0 0
    %2045 = vmatprep.subr.bf16.mxu0 0
    %2046 = vmatpush2.bf16.msra.mxu0 0
    %2047 = vmatprep.subr.bf16.mxu0 0
    %2048 = vmatpush2.bf16.msra.mxu0 0
    %2049 = vmatprep.mubr.bf16.mxu0 0
    %2050 = vmatmul.mubr.bf16.gmra.mxu0 %v1776
    %v2051 = vpop.f32.mrf.mxu0
    %v2052 = vadd.f32 %v1751, %v2051
    %v2053 = vpop.f32.mrf.mxu0
    %v2054 = vadd.f32 %v1755, %v2053
    %v2055 = vpop.f32.mrf.mxu0
    %v2056 = vadd.f32 %v1751, %v2055
    %v2057 = vpop.f32.mrf.mxu0
    %v2058 = vadd.f32 %v1755, %v2057
    %2059 = vmatprep.mubr.bf16.mxu0 0
    %2060 = vmatmul.mubr.bf16.gmra.mxu0 %v1777
    %v2061 = vpop.f32.mrf.mxu0
    %v2062 = vadd.f32 %v1751, %v2061
    %v2063 = vpop.f32.mrf.mxu0
    %v2064 = vadd.f32 %v1755, %v2063
    %v2065 = vpop.f32.mrf.mxu0
    %v2066 = vadd.f32 %v1751, %v2065
    %v2067 = vpop.f32.mrf.mxu0
    %v2068 = vadd.f32 %v1755, %v2067
    %2069 = vmatprep.mubr.bf16.mxu0 0
    %2070 = vmatmul.mubr.bf16.gmra.mxu0 %v1778
    %v2071 = vpop.f32.mrf.mxu0
    %v2072 = vadd.f32 %v1751, %v2071
    %v2073 = vpop.f32.mrf.mxu0
    %v2074 = vadd.f32 %v1755, %v2073
    %v2075 = vpop.f32.mrf.mxu0
    %v2076 = vadd.f32 %v1751, %v2075
    %v2077 = vpop.f32.mrf.mxu0
    %v2078 = vadd.f32 %v1755, %v2077
    %2079 = vmatprep.mubr.bf16.mxu0 0
    %2080 = vmatmul.mubr.bf16.gmra.mxu0 %v1779
    %v2081 = vpop.f32.mrf.mxu0
    %v2082 = vadd.f32 %v1751, %v2081
    %v2083 = vpop.f32.mrf.mxu0
    %v2084 = vadd.f32 %v1755, %v2083
    %v2085 = vpop.f32.mrf.mxu0
    %v2086 = vadd.f32 %v1751, %v2085
    %v2087 = vpop.f32.mrf.mxu0
    %v2088 = vadd.f32 %v1755, %v2087
    %2089 = vdwg.mxu0
    %2090 = vst [vmem:[#allocation3] sm:$0xff] %v1979
    %2091 = vst [vmem:[#allocation3 + $0x8] sm:$0xff] %v1981
    %2092 = vst [vmem:[#allocation3 + $0x10] sm:$0xff] %v2052
    %2093 = vst [vmem:[#allocation3 + $0x18] sm:$0xff] %v2054
    %2094 = vst [vmem:[#allocation3 + $0x20] sm:$0xff] %v1983
    %2095 = vst [vmem:[#allocation3 + $0x28] sm:$0xff] %v1985
    %2096 = vst [vmem:[#allocation3 + $0x30] sm:$0xff] %v2056
    %2097 = vst [vmem:[#allocation3 + $0x38] sm:$0xff] %v2058
    %2098 = vst [vmem:[#allocation3 + $0x40] sm:$0xff] %v1989
    %2099 = vst [vmem:[#allocation3 + $0x48] sm:$0xff] %v1991
    %2100 = vst [vmem:[#allocation3 + $0x50] sm:$0xff] %v2062
    %2101 = vst [vmem:[#allocation3 + $0x58] sm:$0xff] %v2064
    %2102 = vst [vmem:[#allocation3 + $0x60] sm:$0xff] %v1993
    %2103 = vst [vmem:[#allocation3 + $0x68] sm:$0xff] %v1995
    %2104 = vst [vmem:[#allocation3 + $0x70] sm:$0xff] %v2066
    %2105 = vst [vmem:[#allocation3 + $0x78] sm:$0xff] %v2068
    %2106 = vst [vmem:[#allocation3 + $0x80] sm:$0xff] %v1999
    %2107 = vst [vmem:[#allocation3 + $0x88] sm:$0xff] %v2001
    %2108 = vst [vmem:[#allocation3 + $0x90] sm:$0xff] %v2072
    %2109 = vst [vmem:[#allocation3 + $0x98] sm:$0xff] %v2074
    %2110 = vst [vmem:[#allocation3 + $0xa0] sm:$0xff] %v2003
    %2111 = vst [vmem:[#allocation3 + $0xa8] sm:$0xff] %v2005
    %2112 = vst [vmem:[#allocation3 + $0xb0] sm:$0xff] %v2076
    %2113 = vst [vmem:[#allocation3 + $0xb8] sm:$0xff] %v2078
    %2114 = vst [vmem:[#allocation3 + $0xc0] sm:$0xff] %v2009
    %2115 = vst [vmem:[#allocation3 + $0xc8] sm:$0xff] %v2011
    %2116 = vst [vmem:[#allocation3 + $0xd0] sm:$0xff] %v2082
    %2117 = vst [vmem:[#allocation3 + $0xd8] sm:$0xff] %v2084
    %2118 = vst [vmem:[#allocation3 + $0xe0] sm:$0xff] %v2013
    %2119 = vst [vmem:[#allocation3 + $0xe8] sm:$0xff] %v2015
    %2120 = vst [vmem:[#allocation3 + $0xf0] sm:$0xff] %v2086
    %2121 = vst [vmem:[#allocation3 + $0xf8] sm:$0xff] %v2088
    %v2122 = vld [vmem:[%s512] sm:$0xff]
    %v2123 = vld [vmem:[%s512 + $0x8] sm:$0xff]
    %v2124 = vld [vmem:[%s512 + $0x10] sm:$0xff]
    %v2125 = vld [vmem:[%s512 + $0x18] sm:$0xff]
    %v2126 = vld [vmem:[#allocation4] sm:$0xf]
    %v2159 = vunpack.c.l.b16 %v1695
    %v2160 = vunpack.c.h.b16 %v1695
    %v2161 = vunpack.c.l.b16 %v1696
    %v2162 = vunpack.c.h.b16 %v1696
    %v2163 = vunpack.c.l.b16 %v1697
    %v2164 = vunpack.c.h.b16 %v1697
    %v2165 = vunpack.c.l.b16 %v1698
    %v2166 = vunpack.c.h.b16 %v1698
    %v2167 = vunpack.c.l.b16 %v1699
    %v2168 = vunpack.c.h.b16 %v1699
    %v2169 = vunpack.c.l.b16 %v1700
    %v2170 = vunpack.c.h.b16 %v1700
    %v2171 = vunpack.c.l.b16 %v1701
    %v2172 = vunpack.c.h.b16 %v1701
    %v2173 = vunpack.c.l.b16 %v1702
    %v2174 = vunpack.c.h.b16 %v1702
    %v2175 = vunpack.c.l.b16 %v1703
    %v2176 = vunpack.c.h.b16 %v1703
    %v2177 = vunpack.c.l.b16 %v1704
    %v2178 = vunpack.c.h.b16 %v1704
    %v2179 = vunpack.c.l.b16 %v1705
    %v2180 = vunpack.c.h.b16 %v1705
    %v2181 = vunpack.c.l.b16 %v1706
    %v2182 = vunpack.c.h.b16 %v1706
    %v2183 = vunpack.c.l.b16 %v1707
    %v2184 = vunpack.c.h.b16 %v1707
    %v2185 = vunpack.c.l.b16 %v1708
    %v2186 = vunpack.c.h.b16 %v1708
    %v2187 = vunpack.c.l.b16 %v1709
    %v2188 = vunpack.c.h.b16 %v1709
    %v2189 = vunpack.c.l.b16 %v1710
    %v2190 = vunpack.c.h.b16 %v1710
    %v2191 = vunpack.c.l.b16 %v1711
    %v2192 = vunpack.c.h.b16 %v1711
    %v2193 = vunpack.c.l.b16 %v1712
    %v2194 = vunpack.c.h.b16 %v1712
    %v2195 = vunpack.c.l.b16 %v1713
    %v2196 = vunpack.c.h.b16 %v1713
    %v2197 = vunpack.c.l.b16 %v1714
    %v2198 = vunpack.c.h.b16 %v1714
    %v2199 = vunpack.c.l.b16 %v1715
    %v2200 = vunpack.c.h.b16 %v1715
    %v2201 = vunpack.c.l.b16 %v1716
    %v2202 = vunpack.c.h.b16 %v1716
    %v2203 = vunpack.c.l.b16 %v1717
    %v2204 = vunpack.c.h.b16 %v1717
    %v2205 = vunpack.c.l.b16 %v1718
    %v2206 = vunpack.c.h.b16 %v1718
    %v2207 = vunpack.c.l.b16 %v1719
    %v2208 = vunpack.c.h.b16 %v1719
    %v2209 = vunpack.c.l.b16 %v1720
    %v2210 = vunpack.c.h.b16 %v1720
    %v2211 = vunpack.c.l.b16 %v1721
    %v2212 = vunpack.c.h.b16 %v1721
    %v2213 = vunpack.c.l.b16 %v1722
    %v2214 = vunpack.c.h.b16 %v1722
    %v2215 = vunpack.c.l.b16 %v1723
    %v2216 = vunpack.c.h.b16 %v1723
    %v2217 = vunpack.c.l.b16 %v1724
    %v2218 = vunpack.c.h.b16 %v1724
    %v2219 = vunpack.c.l.b16 %v1725
    %v2220 = vunpack.c.h.b16 %v1725
    %v2221 = vunpack.c.l.b16 %v1726
    %v2222 = vunpack.c.h.b16 %v1726
    %v2223 = vpack.c.b16 %v2163, %v2159
    %v2224 = vpack.c.b16 %v2164, %v2160
    %v2225 = vpack.c.b16 %v2165, %v2161
    %v2226 = vpack.c.b16 %v2166, %v2162
    %v2227 = vpack.c.b16 %v2171, %v2167
    %v2228 = vpack.c.b16 %v2172, %v2168
    %v2229 = vpack.c.b16 %v2173, %v2169
    %v2230 = vpack.c.b16 %v2174, %v2170
    %v2231 = vpack.c.b16 %v2179, %v2175
    %v2232 = vpack.c.b16 %v2180, %v2176
    %v2233 = vpack.c.b16 %v2181, %v2177
    %v2234 = vpack.c.b16 %v2182, %v2178
    %v2235 = vpack.c.b16 %v2187, %v2183
    %v2236 = vpack.c.b16 %v2188, %v2184
    %v2237 = vpack.c.b16 %v2189, %v2185
    %v2238 = vpack.c.b16 %v2190, %v2186
    %v2239 = vpack.c.b16 %v2195, %v2191
    %v2240 = vpack.c.b16 %v2196, %v2192
    %v2241 = vpack.c.b16 %v2197, %v2193
    %v2242 = vpack.c.b16 %v2198, %v2194
    %v2243 = vpack.c.b16 %v2203, %v2199
    %v2244 = vpack.c.b16 %v2204, %v2200
    %v2245 = vpack.c.b16 %v2205, %v2201
    %v2246 = vpack.c.b16 %v2206, %v2202
    %v2247 = vpack.c.b16 %v2211, %v2207
    %v2248 = vpack.c.b16 %v2212, %v2208
    %v2249 = vpack.c.b16 %v2213, %v2209
    %v2250 = vpack.c.b16 %v2214, %v2210
    %v2251 = vpack.c.b16 %v2219, %v2215
    %v2252 = vpack.c.b16 %v2220, %v2216
    %v2253 = vpack.c.b16 %v2221, %v2217
    %v2254 = vpack.c.b16 %v2222, %v2218
    %2287 = vmatprep.subr.bf16.mxu0 %v2252
    %2288 = vmatpush1.bf16.msra.mxu0 %v2251
    %2289 = vmatprep.subr.bf16.mxu0 %v2248
    %2290 = vmatpush1.bf16.msra.mxu0 %v2247
    %2291 = vmatprep.subr.bf16.mxu0 %v2244
    %2292 = vmatpush1.bf16.msra.mxu0 %v2243
    %2293 = vmatprep.subr.bf16.mxu0 %v2240
    %2294 = vmatpush1.bf16.msra.mxu0 %v2239
    %2295 = vmatprep.subr.bf16.mxu0 %v2236
    %2296 = vmatpush1.bf16.msra.mxu0 %v2235
    %2297 = vmatprep.subr.bf16.mxu0 %v2232
    %2298 = vmatpush1.bf16.msra.mxu0 %v2231
    %2299 = vmatprep.subr.bf16.mxu0 %v2228
    %2300 = vmatpush1.bf16.msra.mxu0 %v2227
    %2301 = vmatprep.subr.bf16.mxu0 %v2224
    %2302 = vmatpush1.bf16.msra.mxu0 %v2223
    %2303 = vmatprep.subr.bf16.mxu0 0
    %2304 = vmatpush2.bf16.msra.mxu0 0
    %2305 = vmatprep.subr.bf16.mxu0 0
    %2306 = vmatpush2.bf16.msra.mxu0 0
    %2307 = vmatprep.subr.bf16.mxu0 0
    %2308 = vmatpush2.bf16.msra.mxu0 0
    %2309 = vmatprep.subr.bf16.mxu0 0
    %2310 = vmatpush2.bf16.msra.mxu0 0
    %2311 = vmatprep.subr.bf16.mxu0 0
    %2312 = vmatpush2.bf16.msra.mxu0 0
    %2313 = vmatprep.subr.bf16.mxu0 0
    %2314 = vmatpush2.bf16.msra.mxu0 0
    %2315 = vmatprep.subr.bf16.mxu0 0
    %2316 = vmatpush2.bf16.msra.mxu0 0
    %2317 = vmatprep.subr.bf16.mxu0 0
    %2318 = vmatpush2.bf16.msra.mxu0 0
    %2319 = vmatprep.mubr.bf16.mxu0 0
    %2320 = vmatmul.mubr.bf16.gmra.mxu0 %v2126
    %v2321 = vpop.f32.mrf.mxu0
    %v2322 = vadd.f32 0.0, %v2321
    %v2323 = vpop.f32.mrf.mxu0
    %v2324 = vadd.f32 0.0, %v2323
    %v2325 = vpop.f32.mrf.mxu0
    %v2326 = vpop.f32.mrf.mxu0
    %2327 = vdwg.mxu0
    %2328 = vmatprep.subr.bf16.mxu0 %v2254
    %2329 = vmatpush1.bf16.msra.mxu0 %v2253
    %2330 = vmatprep.subr.bf16.mxu0 %v2250
    %2331 = vmatpush1.bf16.msra.mxu0 %v2249
    %2332 = vmatprep.subr.bf16.mxu0 %v2246
    %2333 = vmatpush1.bf16.msra.mxu0 %v2245
    %2334 = vmatprep.subr.bf16.mxu0 %v2242
    %2335 = vmatpush1.bf16.msra.mxu0 %v2241
    %2336 = vmatprep.subr.bf16.mxu0 %v2238
    %2337 = vmatpush1.bf16.msra.mxu0 %v2237
    %2338 = vmatprep.subr.bf16.mxu0 %v2234
    %2339 = vmatpush1.bf16.msra.mxu0 %v2233
    %2340 = vmatprep.subr.bf16.mxu0 %v2230
    %2341 = vmatpush1.bf16.msra.mxu0 %v2229
    %2342 = vmatprep.subr.bf16.mxu0 %v2226
    %2343 = vmatpush1.bf16.msra.mxu0 %v2225
    %2344 = vmatprep.subr.bf16.mxu0 0
    %2345 = vmatpush2.bf16.msra.mxu0 0
    %2346 = vmatprep.subr.bf16.mxu0 0
    %2347 = vmatpush2.bf16.msra.mxu0 0
    %2348 = vmatprep.subr.bf16.mxu0 0
    %2349 = vmatpush2.bf16.msra.mxu0 0
    %2350 = vmatprep.subr.bf16.mxu0 0
    %2351 = vmatpush2.bf16.msra.mxu0 0
    %2352 = vmatprep.subr.bf16.mxu0 0
    %2353 = vmatpush2.bf16.msra.mxu0 0
    %2354 = vmatprep.subr.bf16.mxu0 0
    %2355 = vmatpush2.bf16.msra.mxu0 0
    %2356 = vmatprep.subr.bf16.mxu0 0
    %2357 = vmatpush2.bf16.msra.mxu0 0
    %2358 = vmatprep.subr.bf16.mxu0 0
    %2359 = vmatpush2.bf16.msra.mxu0 0
    %2360 = vmatprep.mubr.bf16.mxu0 0
    %2361 = vmatmul.mubr.bf16.gmra.mxu0 %v2126
    %v2362 = vpop.f32.mrf.mxu0
    %v2363 = vadd.f32 0.0, %v2362
    %v2364 = vpop.f32.mrf.mxu0
    %v2365 = vadd.f32 0.0, %v2364
    %v2366 = vpop.f32.mrf.mxu0
    %v2367 = vpop.f32.mrf.mxu0
    %2368 = vdwg.mxu0
    %v2369 = vadd.f32 %v2122, %v2322
    %v2370 = vadd.f32 %v2123, %v2324
    %v2371 = vadd.f32 %v2124, %v2363
    %v2372 = vadd.f32 %v2125, %v2365
    %v2373 = vxor.u32 %v2369, 2147483648
    %v2374 = vmul.f32 %v2373, 1.442695
    %v2375 = vpow.pop %v2374
    %v2376 = vadd.f32 %v2375, 1.0
    %v2377 = vrcp.pop %v2376
    %v2378 = vmul.f32 1.0, %v2377
    %v2379 = vxor.u32 %v2370, 2147483648
    %v2380 = vmul.f32 %v2379, 1.442695
    %v2381 = vpow.pop %v2380
    %v2382 = vadd.f32 %v2381, 1.0
    %v2383 = vrcp.pop %v2382
    %v2384 = vmul.f32 1.0, %v2383
    %v2385 = vtanh.pop %v2371
    %v2386 = vxor.u32 %v2372, 2147483648
    %v2387 = vmul.f32 %v2386, 1.442695
    %v2388 = vpow.pop %v2387
    %v2389 = vadd.f32 %v2388, 1.0
    %v2390 = vrcp.pop %v2389
    %v2391 = vmul.f32 1.0, %v2390
    %v2392 = vld [vmem:[#allocation5] sm:$0xff]
    %v2393 = vmul.f32 %v2384, %v2392
    %v2394 = vmul.f32 %v2378, %v2385
    %v2395 = vadd.f32 %v2393, %v2394
    %v2396 = vtanh.pop %v2395
    %v2397 = vmul.f32 %v2391, %v2396
    %v2398 = vpack.c.bf16 %v2397, %v2397
    %2399 = vst [vmem:[#allocation5] sm:$0xff] %v2395
    %2400 = vst [vmem:[#allocation4] sm:$0xf] %v2398
    %v2401 = vld [vmem:[%s795] sm:$0xff]
    %v2402 = vld [vmem:[%s795 + $0x8] sm:$0xff]
    %v2403 = vld [vmem:[%s795 + $0x10] sm:$0xff]
    %v2404 = vld [vmem:[%s795 + $0x18] sm:$0xff]
    %v2405 = vld [vmem:[#allocation4] sm:$0xf]
    %2406 = vmatprep.subr.bf16.mxu0 %v2252
    %2407 = vmatpush1.bf16.msra.mxu0 %v2251
    %2408 = vmatprep.subr.bf16.mxu0 %v2248
    %2409 = vmatpush1.bf16.msra.mxu0 %v2247
    %2410 = vmatprep.subr.bf16.mxu0 %v2244
    %2411 = vmatpush1.bf16.msra.mxu0 %v2243
    %2412 = vmatprep.subr.bf16.mxu0 %v2240
    %2413 = vmatpush1.bf16.msra.mxu0 %v2239
    %2414 = vmatprep.subr.bf16.mxu0 %v2236
    %2415 = vmatpush1.bf16.msra.mxu0 %v2235
    %2416 = vmatprep.subr.bf16.mxu0 %v2232
    %2417 = vmatpush1.bf16.msra.mxu0 %v2231
    %2418 = vmatprep.subr.bf16.mxu0 %v2228
    %2419 = vmatpush1.bf16.msra.mxu0 %v2227
    %2420 = vmatprep.subr.bf16.mxu0 %v2224
    %2421 = vmatpush1.bf16.msra.mxu0 %v2223
    %2422 = vmatprep.subr.bf16.mxu0 0
    %2423 = vmatpush2.bf16.msra.mxu0 0
    %2424 = vmatprep.subr.bf16.mxu0 0
    %2425 = vmatpush2.bf16.msra.mxu0 0
    %2426 = vmatprep.subr.bf16.mxu0 0
    %2427 = vmatpush2.bf16.msra.mxu0 0
    %2428 = vmatprep.subr.bf16.mxu0 0
    %2429 = vmatpush2.bf16.msra.mxu0 0
    %2430 = vmatprep.subr.bf16.mxu0 0
    %2431 = vmatpush2.bf16.msra.mxu0 0
    %2432 = vmatprep.subr.bf16.mxu0 0
    %2433 = vmatpush2.bf16.msra.mxu0 0
    %2434 = vmatprep.subr.bf16.mxu0 0
    %2435 = vmatpush2.bf16.msra.mxu0 0
    %2436 = vmatprep.subr.bf16.mxu0 0
    %2437 = vmatpush2.bf16.msra.mxu0 0
    %2438 = vmatprep.mubr.bf16.mxu0 0
    %2439 = vmatmul.mubr.bf16.gmra.mxu0 %v2405
    %v2440 = vpop.f32.mrf.mxu0
    %v2441 = vadd.f32 0.0, %v2440
    %v2442 = vpop.f32.mrf.mxu0
    %v2443 = vadd.f32 0.0, %v2442
    %v2444 = vpop.f32.mrf.mxu0
    %v2445 = vpop.f32.mrf.mxu0
    %2446 = vdwg.mxu0
    %2447 = vmatprep.subr.bf16.mxu0 %v2254
    %2448 = vmatpush1.bf16.msra.mxu0 %v2253
    %2449 = vmatprep.subr.bf16.mxu0 %v2250
    %2450 = vmatpush1.bf16.msra.mxu0 %v2249
    %2451 = vmatprep.subr.bf16.mxu0 %v2246
    %2452 = vmatpush1.bf16.msra.mxu0 %v2245
    %2453 = vmatprep.subr.bf16.mxu0 %v2242
    %2454 = vmatpush1.bf16.msra.mxu0 %v2241
    %2455 = vmatprep.subr.bf16.mxu0 %v2238
    %2456 = vmatpush1.bf16.msra.mxu0 %v2237
    %2457 = vmatprep.subr.bf16.mxu0 %v2234
    %2458 = vmatpush1.bf16.msra.mxu0 %v2233
    %2459 = vmatprep.subr.bf16.mxu0 %v2230
    %2460 = vmatpush1.bf16.msra.mxu0 %v2229
    %2461 = vmatprep.subr.bf16.mxu0 %v2226
    %2462 = vmatpush1.bf16.msra.mxu0 %v2225
    %2463 = vmatprep.subr.bf16.mxu0 0
    %2464 = vmatpush2.bf16.msra.mxu0 0
    %2465 = vmatprep.subr.bf16.mxu0 0
    %2466 = vmatpush2.bf16.msra.mxu0 0
    %2467 = vmatprep.subr.bf16.mxu0 0
    %2468 = vmatpush2.bf16.msra.mxu0 0
    %2469 = vmatprep.subr.bf16.mxu0 0
    %2470 = vmatpush2.bf16.msra.mxu0 0
    %2471 = vmatprep.subr.bf16.mxu0 0
    %2472 = vmatpush2.bf16.msra.mxu0 0
    %2473 = vmatprep.subr.bf16.mxu0 0
    %2474 = vmatpush2.bf16.msra.mxu0 0
    %2475 = vmatprep.subr.bf16.mxu0 0
    %2476 = vmatpush2.bf16.msra.mxu0 0
    %2477 = vmatprep.subr.bf16.mxu0 0
    %2478 = vmatpush2.bf16.msra.mxu0 0
    %2479 = vmatprep.mubr.bf16.mxu0 0
    %2480 = vmatmul.mubr.bf16.gmra.mxu0 %v2405
    %v2481 = vpop.f32.mrf.mxu0
    %v2482 = vadd.f32 0.0, %v2481
    %v2483 = vpop.f32.mrf.mxu0
    %v2484 = vadd.f32 0.0, %v2483
    %v2485 = vpop.f32.mrf.mxu0
    %v2486 = vpop.f32.mrf.mxu0
    %2487 = vdwg.mxu0
    %v2488 = vadd.f32 %v2401, %v2441
    %v2489 = vadd.f32 %v2402, %v2443
    %v2490 = vadd.f32 %v2403, %v2482
    %v2491 = vadd.f32 %v2404, %v2484
    %v2492 = vxor.u32 %v2488, 2147483648
    %v2493 = vmul.f32 %v2492, 1.442695
    %v2494 = vpow.pop %v2493
    %v2495 = vadd.f32 %v2494, 1.0
    %v2496 = vrcp.pop %v2495
    %v2497 = vmul.f32 1.0, %v2496
    %v2498 = vxor.u32 %v2489, 2147483648
    %v2499 = vmul.f32 %v2498, 1.442695
    %v2500 = vpow.pop %v2499
    %v2501 = vadd.f32 %v2500, 1.0
    %v2502 = vrcp.pop %v2501
    %v2503 = vmul.f32 1.0, %v2502
    %v2504 = vtanh.pop %v2490
    %v2505 = vxor.u32 %v2491, 2147483648
    %v2506 = vmul.f32 %v2505, 1.442695
    %v2507 = vpow.pop %v2506
    %v2508 = vadd.f32 %v2507, 1.0
    %v2509 = vrcp.pop %v2508
    %v2510 = vmul.f32 1.0, %v2509
    %v2511 = vld [vmem:[#allocation5] sm:$0xff]
    %v2512 = vmul.f32 %v2503, %v2511
    %v2513 = vmul.f32 %v2497, %v2504
    %v2514 = vadd.f32 %v2512, %v2513
    %v2515 = vtanh.pop %v2514
    %v2516 = vmul.f32 %v2510, %v2515
    %v2517 = vpack.c.bf16 %v2516, %v2516
    %2518 = vst [vmem:[#allocation5] sm:$0xff] %v2514
    %2519 = vst [vmem:[#allocation4] sm:$0xf] %v2517
    %v2520 = vld [vmem:[%s919] sm:$0xff]
    %v2521 = vld [vmem:[%s919 + $0x8] sm:$0xff]
    %v2522 = vld [vmem:[%s919 + $0x10] sm:$0xff]
    %v2523 = vld [vmem:[%s919 + $0x18] sm:$0xff]
    %v2524 = vld [vmem:[#allocation4] sm:$0xf]
    %2525 = vmatprep.subr.bf16.mxu0 %v2252
    %2526 = vmatpush1.bf16.msra.mxu0 %v2251
    %2527 = vmatprep.subr.bf16.mxu0 %v2248
    %2528 = vmatpush1.bf16.msra.mxu0 %v2247
    %2529 = vmatprep.subr.bf16.mxu0 %v2244
    %2530 = vmatpush1.bf16.msra.mxu0 %v2243
    %2531 = vmatprep.subr.bf16.mxu0 %v2240
    %2532 = vmatpush1.bf16.msra.mxu0 %v2239
    %2533 = vmatprep.subr.bf16.mxu0 %v2236
    %2534 = vmatpush1.bf16.msra.mxu0 %v2235
    %2535 = vmatprep.subr.bf16.mxu0 %v2232
    %2536 = vmatpush1.bf16.msra.mxu0 %v2231
    %2537 = vmatprep.subr.bf16.mxu0 %v2228
    %2538 = vmatpush1.bf16.msra.mxu0 %v2227
    %2539 = vmatprep.subr.bf16.mxu0 %v2224
    %2540 = vmatpush1.bf16.msra.mxu0 %v2223
    %2541 = vmatprep.subr.bf16.mxu0 0
    %2542 = vmatpush2.bf16.msra.mxu0 0
    %2543 = vmatprep.subr.bf16.mxu0 0
    %2544 = vmatpush2.bf16.msra.mxu0 0
    %2545 = vmatprep.subr.bf16.mxu0 0
    %2546 = vmatpush2.bf16.msra.mxu0 0
    %2547 = vmatprep.subr.bf16.mxu0 0
    %2548 = vmatpush2.bf16.msra.mxu0 0
    %2549 = vmatprep.subr.bf16.mxu0 0
    %2550 = vmatpush2.bf16.msra.mxu0 0
    %2551 = vmatprep.subr.bf16.mxu0 0
    %2552 = vmatpush2.bf16.msra.mxu0 0
    %2553 = vmatprep.subr.bf16.mxu0 0
    %2554 = vmatpush2.bf16.msra.mxu0 0
    %2555 = vmatprep.subr.bf16.mxu0 0
    %2556 = vmatpush2.bf16.msra.mxu0 0
    %2557 = vmatprep.mubr.bf16.mxu0 0
    %2558 = vmatmul.mubr.bf16.gmra.mxu0 %v2524
    %v2559 = vpop.f32.mrf.mxu0
    %v2560 = vadd.f32 0.0, %v2559
    %v2561 = vpop.f32.mrf.mxu0
    %v2562 = vadd.f32 0.0, %v2561
    %v2563 = vpop.f32.mrf.mxu0
    %v2564 = vpop.f32.mrf.mxu0
    %2565 = vdwg.mxu0
    %2566 = vmatprep.subr.bf16.mxu0 %v2254
    %2567 = vmatpush1.bf16.msra.mxu0 %v2253
    %2568 = vmatprep.subr.bf16.mxu0 %v2250
    %2569 = vmatpush1.bf16.msra.mxu0 %v2249
    %2570 = vmatprep.subr.bf16.mxu0 %v2246
    %2571 = vmatpush1.bf16.msra.mxu0 %v2245
    %2572 = vmatprep.subr.bf16.mxu0 %v2242
    %2573 = vmatpush1.bf16.msra.mxu0 %v2241
    %2574 = vmatprep.subr.bf16.mxu0 %v2238
    %2575 = vmatpush1.bf16.msra.mxu0 %v2237
    %2576 = vmatprep.subr.bf16.mxu0 %v2234
    %2577 = vmatpush1.bf16.msra.mxu0 %v2233
    %2578 = vmatprep.subr.bf16.mxu0 %v2230
    %2579 = vmatpush1.bf16.msra.mxu0 %v2229
    %2580 = vmatprep.subr.bf16.mxu0 %v2226
    %2581 = vmatpush1.bf16.msra.mxu0 %v2225
    %2582 = vmatprep.subr.bf16.mxu0 0
    %2583 = vmatpush2.bf16.msra.mxu0 0
    %2584 = vmatprep.subr.bf16.mxu0 0
    %2585 = vmatpush2.bf16.msra.mxu0 0
    %2586 = vmatprep.subr.bf16.mxu0 0
    %2587 = vmatpush2.bf16.msra.mxu0 0
    %2588 = vmatprep.subr.bf16.mxu0 0
    %2589 = vmatpush2.bf16.msra.mxu0 0
    %2590 = vmatprep.subr.bf16.mxu0 0
    %2591 = vmatpush2.bf16.msra.mxu0 0
    %2592 = vmatprep.subr.bf16.mxu0 0
    %2593 = vmatpush2.bf16.msra.mxu0 0
    %2594 = vmatprep.subr.bf16.mxu0 0
    %2595 = vmatpush2.bf16.msra.mxu0 0
    %2596 = vmatprep.subr.bf16.mxu0 0
    %2597 = vmatpush2.bf16.msra.mxu0 0
    %2598 = vmatprep.mubr.bf16.mxu0 0
    %2599 = vmatmul.mubr.bf16.gmra.mxu0 %v2524
    %v2600 = vpop.f32.mrf.mxu0
    %v2601 = vadd.f32 0.0, %v2600
    %v2602 = vpop.f32.mrf.mxu0
    %v2603 = vadd.f32 0.0, %v2602
    %v2604 = vpop.f32.mrf.mxu0
    %v2605 = vpop.f32.mrf.mxu0
    %2606 = vdwg.mxu0
    %v2607 = vadd.f32 %v2520, %v2560
    %v2608 = vadd.f32 %v2521, %v2562
    %v2609 = vadd.f32 %v2522, %v2601
    %v2610 = vadd.f32 %v2523, %v2603
    %v2611 = vxor.u32 %v2607, 2147483648
    %v2612 = vmul.f32 %v2611, 1.442695
    %v2613 = vpow.pop %v2612
    %v2614 = vadd.f32 %v2613, 1.0
    %v2615 = vrcp.pop %v2614
    %v2616 = vmul.f32 1.0, %v2615
    %v2617 = vxor.u32 %v2608, 2147483648
    %v2618 = vmul.f32 %v2617, 1.442695
    %v2619 = vpow.pop %v2618
    %v2620 = vadd.f32 %v2619, 1.0
    %v2621 = vrcp.pop %v2620
    %v2622 = vmul.f32 1.0, %v2621
    %v2623 = vtanh.pop %v2609
    %v2624 = vxor.u32 %v2610, 2147483648
    %v2625 = vmul.f32 %v2624, 1.442695
    %v2626 = vpow.pop %v2625
    %v2627 = vadd.f32 %v2626, 1.0
    %v2628 = vrcp.pop %v2627
    %v2629 = vmul.f32 1.0, %v2628
    %v2630 = vld [vmem:[#allocation5] sm:$0xff]
    %v2631 = vmul.f32 %v2622, %v2630
    %v2632 = vmul.f32 %v2616, %v2623
    %v2633 = vadd.f32 %v2631, %v2632
    %v2634 = vtanh.pop %v2633
    %v2635 = vmul.f32 %v2629, %v2634
    %v2636 = vpack.c.bf16 %v2635, %v2635
    %2637 = vst [vmem:[#allocation5] sm:$0xff] %v2633
    %2638 = vst [vmem:[#allocation4] sm:$0xf] %v2636
    %v2639 = vld [vmem:[%s1043] sm:$0xff]
    %v2640 = vld [vmem:[%s1043 + $0x8] sm:$0xff]
    %v2641 = vld [vmem:[%s1043 + $0x10] sm:$0xff]
    %v2642 = vld [vmem:[%s1043 + $0x18] sm:$0xff]
    %v2643 = vld [vmem:[#allocation4] sm:$0xf]
    %2644 = vmatprep.subr.bf16.mxu0 %v2252
    %2645 = vmatpush1.bf16.msra.mxu0 %v2251
    %2646 = vmatprep.subr.bf16.mxu0 %v2248
    %2647 = vmatpush1.bf16.msra.mxu0 %v2247
    %2648 = vmatprep.subr.bf16.mxu0 %v2244
    %2649 = vmatpush1.bf16.msra.mxu0 %v2243
    %2650 = vmatprep.subr.bf16.mxu0 %v2240
    %2651 = vmatpush1.bf16.msra.mxu0 %v2239
    %2652 = vmatprep.subr.bf16.mxu0 %v2236
    %2653 = vmatpush1.bf16.msra.mxu0 %v2235
    %2654 = vmatprep.subr.bf16.mxu0 %v2232
    %2655 = vmatpush1.bf16.msra.mxu0 %v2231
    %2656 = vmatprep.subr.bf16.mxu0 %v2228
    %2657 = vmatpush1.bf16.msra.mxu0 %v2227
    %2658 = vmatprep.subr.bf16.mxu0 %v2224
    %2659 = vmatpush1.bf16.msra.mxu0 %v2223
    %2660 = vmatprep.subr.bf16.mxu0 0
    %2661 = vmatpush2.bf16.msra.mxu0 0
    %2662 = vmatprep.subr.bf16.mxu0 0
    %2663 = vmatpush2.bf16.msra.mxu0 0
    %2664 = vmatprep.subr.bf16.mxu0 0
    %2665 = vmatpush2.bf16.msra.mxu0 0
    %2666 = vmatprep.subr.bf16.mxu0 0
    %2667 = vmatpush2.bf16.msra.mxu0 0
    %2668 = vmatprep.subr.bf16.mxu0 0
    %2669 = vmatpush2.bf16.msra.mxu0 0
    %2670 = vmatprep.subr.bf16.mxu0 0
    %2671 = vmatpush2.bf16.msra.mxu0 0
    %2672 = vmatprep.subr.bf16.mxu0 0
    %2673 = vmatpush2.bf16.msra.mxu0 0
    %2674 = vmatprep.subr.bf16.mxu0 0
    %2675 = vmatpush2.bf16.msra.mxu0 0
    %2676 = vmatprep.mubr.bf16.mxu0 0
    %2677 = vmatmul.mubr.bf16.gmra.mxu0 %v2643
    %v2678 = vpop.f32.mrf.mxu0
    %v2679 = vadd.f32 0.0, %v2678
    %v2680 = vpop.f32.mrf.mxu0
    %v2681 = vadd.f32 0.0, %v2680
    %v2682 = vpop.f32.mrf.mxu0
    %v2683 = vpop.f32.mrf.mxu0
    %2684 = vdwg.mxu0
    %2685 = vmatprep.subr.bf16.mxu0 %v2254
    %2686 = vmatpush1.bf16.msra.mxu0 %v2253
    %2687 = vmatprep.subr.bf16.mxu0 %v2250
    %2688 = vmatpush1.bf16.msra.mxu0 %v2249
    %2689 = vmatprep.subr.bf16.mxu0 %v2246
    %2690 = vmatpush1.bf16.msra.mxu0 %v2245
    %2691 = vmatprep.subr.bf16.mxu0 %v2242
    %2692 = vmatpush1.bf16.msra.mxu0 %v2241
    %2693 = vmatprep.subr.bf16.mxu0 %v2238
    %2694 = vmatpush1.bf16.msra.mxu0 %v2237
    %2695 = vmatprep.subr.bf16.mxu0 %v2234
    %2696 = vmatpush1.bf16.msra.mxu0 %v2233
    %2697 = vmatprep.subr.bf16.mxu0 %v2230
    %2698 = vmatpush1.bf16.msra.mxu0 %v2229
    %2699 = vmatprep.subr.bf16.mxu0 %v2226
    %2700 = vmatpush1.bf16.msra.mxu0 %v2225
    %2701 = vmatprep.subr.bf16.mxu0 0
    %2702 = vmatpush2.bf16.msra.mxu0 0
    %2703 = vmatprep.subr.bf16.mxu0 0
    %2704 = vmatpush2.bf16.msra.mxu0 0
    %2705 = vmatprep.subr.bf16.mxu0 0
    %2706 = vmatpush2.bf16.msra.mxu0 0
    %2707 = vmatprep.subr.bf16.mxu0 0
    %2708 = vmatpush2.bf16.msra.mxu0 0
    %2709 = vmatprep.subr.bf16.mxu0 0
    %2710 = vmatpush2.bf16.msra.mxu0 0
    %2711 = vmatprep.subr.bf16.mxu0 0
    %2712 = vmatpush2.bf16.msra.mxu0 0
    %2713 = vmatprep.subr.bf16.mxu0 0
    %2714 = vmatpush2.bf16.msra.mxu0 0
    %2715 = vmatprep.subr.bf16.mxu0 0
    %2716 = vmatpush2.bf16.msra.mxu0 0
    %2717 = vmatprep.mubr.bf16.mxu0 0
    %2718 = vmatmul.mubr.bf16.gmra.mxu0 %v2643
    %v2719 = vpop.f32.mrf.mxu0
    %v2720 = vadd.f32 0.0, %v2719
    %v2721 = vpop.f32.mrf.mxu0
    %v2722 = vadd.f32 0.0, %v2721
    %v2723 = vpop.f32.mrf.mxu0
    %v2724 = vpop.f32.mrf.mxu0
    %2725 = vdwg.mxu0
    %v2726 = vadd.f32 %v2639, %v2679
    %v2727 = vadd.f32 %v2640, %v2681
    %v2728 = vadd.f32 %v2641, %v2720
    %v2729 = vadd.f32 %v2642, %v2722
    %v2730 = vxor.u32 %v2726, 2147483648
    %v2731 = vmul.f32 %v2730, 1.442695
    %v2732 = vpow.pop %v2731
    %v2733 = vadd.f32 %v2732, 1.0
    %v2734 = vrcp.pop %v2733
    %v2735 = vmul.f32 1.0, %v2734
    %v2736 = vxor.u32 %v2727, 2147483648
    %v2737 = vmul.f32 %v2736, 1.442695
    %v2738 = vpow.pop %v2737
    %v2739 = vadd.f32 %v2738, 1.0
    %v2740 = vrcp.pop %v2739
    %v2741 = vmul.f32 1.0, %v2740
    %v2742 = vtanh.pop %v2728
    %v2743 = vxor.u32 %v2729, 2147483648
    %v2744 = vmul.f32 %v2743, 1.442695
    %v2745 = vpow.pop %v2744
    %v2746 = vadd.f32 %v2745, 1.0
    %v2747 = vrcp.pop %v2746
    %v2748 = vmul.f32 1.0, %v2747
    %v2749 = vld [vmem:[#allocation5] sm:$0xff]
    %v2750 = vmul.f32 %v2741, %v2749
    %v2751 = vmul.f32 %v2735, %v2742
    %v2752 = vadd.f32 %v2750, %v2751
    %v2753 = vtanh.pop %v2752
    %v2754 = vmul.f32 %v2748, %v2753
    %v2755 = vpack.c.bf16 %v2754, %v2754
    %2756 = vst [vmem:[#allocation5] sm:$0xff] %v2752
    %2757 = vst [vmem:[#allocation4] sm:$0xf] %v2755
    %v2758 = vld [vmem:[%s1167] sm:$0xff]
    %v2759 = vld [vmem:[%s1167 + $0x8] sm:$0xff]
    %v2760 = vld [vmem:[%s1167 + $0x10] sm:$0xff]
    %v2761 = vld [vmem:[%s1167 + $0x18] sm:$0xff]
    %v2762 = vld [vmem:[#allocation4] sm:$0xf]
    %2763 = vmatprep.subr.bf16.mxu0 %v2252
    %2764 = vmatpush1.bf16.msra.mxu0 %v2251
    %2765 = vmatprep.subr.bf16.mxu0 %v2248
    %2766 = vmatpush1.bf16.msra.mxu0 %v2247
    %2767 = vmatprep.subr.bf16.mxu0 %v2244
    %2768 = vmatpush1.bf16.msra.mxu0 %v2243
    %2769 = vmatprep.subr.bf16.mxu0 %v2240
    %2770 = vmatpush1.bf16.msra.mxu0 %v2239
    %2771 = vmatprep.subr.bf16.mxu0 %v2236
    %2772 = vmatpush1.bf16.msra.mxu0 %v2235
    %2773 = vmatprep.subr.bf16.mxu0 %v2232
    %2774 = vmatpush1.bf16.msra.mxu0 %v2231
    %2775 = vmatprep.subr.bf16.mxu0 %v2228
    %2776 = vmatpush1.bf16.msra.mxu0 %v2227
    %2777 = vmatprep.subr.bf16.mxu0 %v2224
    %2778 = vmatpush1.bf16.msra.mxu0 %v2223
    %2779 = vmatprep.subr.bf16.mxu0 0
    %2780 = vmatpush2.bf16.msra.mxu0 0
    %2781 = vmatprep.subr.bf16.mxu0 0
    %2782 = vmatpush2.bf16.msra.mxu0 0
    %2783 = vmatprep.subr.bf16.mxu0 0
    %2784 = vmatpush2.bf16.msra.mxu0 0
    %2785 = vmatprep.subr.bf16.mxu0 0
    %2786 = vmatpush2.bf16.msra.mxu0 0
    %2787 = vmatprep.subr.bf16.mxu0 0
    %2788 = vmatpush2.bf16.msra.mxu0 0
    %2789 = vmatprep.subr.bf16.mxu0 0
    %2790 = vmatpush2.bf16.msra.mxu0 0
    %2791 = vmatprep.subr.bf16.mxu0 0
    %2792 = vmatpush2.bf16.msra.mxu0 0
    %2793 = vmatprep.subr.bf16.mxu0 0
    %2794 = vmatpush2.bf16.msra.mxu0 0
    %2795 = vmatprep.mubr.bf16.mxu0 0
    %2796 = vmatmul.mubr.bf16.gmra.mxu0 %v2762
    %v2797 = vpop.f32.mrf.mxu0
    %v2798 = vadd.f32 0.0, %v2797
    %v2799 = vpop.f32.mrf.mxu0
    %v2800 = vadd.f32 0.0, %v2799
    %v2801 = vpop.f32.mrf.mxu0
    %v2802 = vpop.f32.mrf.mxu0
    %2803 = vdwg.mxu0
    %2804 = vmatprep.subr.bf16.mxu0 %v2254
    %2805 = vmatpush1.bf16.msra.mxu0 %v2253
    %2806 = vmatprep.subr.bf16.mxu0 %v2250
    %2807 = vmatpush1.bf16.msra.mxu0 %v2249
    %2808 = vmatprep.subr.bf16.mxu0 %v2246
    %2809 = vmatpush1.bf16.msra.mxu0 %v2245
    %2810 = vmatprep.subr.bf16.mxu0 %v2242
    %2811 = vmatpush1.bf16.msra.mxu0 %v2241
    %2812 = vmatprep.subr.bf16.mxu0 %v2238
    %2813 = vmatpush1.bf16.msra.mxu0 %v2237
    %2814 = vmatprep.subr.bf16.mxu0 %v2234
    %2815 = vmatpush1.bf16.msra.mxu0 %v2233
    %2816 = vmatprep.subr.bf16.mxu0 %v2230
    %2817 = vmatpush1.bf16.msra.mxu0 %v2229
    %2818 = vmatprep.subr.bf16.mxu0 %v2226
    %2819 = vmatpush1.bf16.msra.mxu0 %v2225
    %2820 = vmatprep.subr.bf16.mxu0 0
    %2821 = vmatpush2.bf16.msra.mxu0 0
    %2822 = vmatprep.subr.bf16.mxu0 0
    %2823 = vmatpush2.bf16.msra.mxu0 0
    %2824 = vmatprep.subr.bf16.mxu0 0
    %2825 = vmatpush2.bf16.msra.mxu0 0
    %2826 = vmatprep.subr.bf16.mxu0 0
    %2827 = vmatpush2.bf16.msra.mxu0 0
    %2828 = vmatprep.subr.bf16.mxu0 0
    %2829 = vmatpush2.bf16.msra.mxu0 0
    %2830 = vmatprep.subr.bf16.mxu0 0
    %2831 = vmatpush2.bf16.msra.mxu0 0
    %2832 = vmatprep.subr.bf16.mxu0 0
    %2833 = vmatpush2.bf16.msra.mxu0 0
    %2834 = vmatprep.subr.bf16.mxu0 0
    %2835 = vmatpush2.bf16.msra.mxu0 0
    %2836 = vmatprep.mubr.bf16.mxu0 0
    %2837 = vmatmul.mubr.bf16.gmra.mxu0 %v2762
    %v2838 = vpop.f32.mrf.mxu0
    %v2839 = vadd.f32 0.0, %v2838
    %v2840 = vpop.f32.mrf.mxu0
    %v2841 = vadd.f32 0.0, %v2840
    %v2842 = vpop.f32.mrf.mxu0
    %v2843 = vpop.f32.mrf.mxu0
    %2844 = vdwg.mxu0
    %v2845 = vadd.f32 %v2758, %v2798
    %v2846 = vadd.f32 %v2759, %v2800
    %v2847 = vadd.f32 %v2760, %v2839
    %v2848 = vadd.f32 %v2761, %v2841
    %v2849 = vxor.u32 %v2845, 2147483648
    %v2850 = vmul.f32 %v2849, 1.442695
    %v2851 = vpow.pop %v2850
    %v2852 = vadd.f32 %v2851, 1.0
    %v2853 = vrcp.pop %v2852
    %v2854 = vmul.f32 1.0, %v2853
    %v2855 = vxor.u32 %v2846, 2147483648
    %v2856 = vmul.f32 %v2855, 1.442695
    %v2857 = vpow.pop %v2856
    %v2858 = vadd.f32 %v2857, 1.0
    %v2859 = vrcp.pop %v2858
    %v2860 = vmul.f32 1.0, %v2859
    %v2861 = vtanh.pop %v2847
    %v2862 = vxor.u32 %v2848, 2147483648
    %v2863 = vmul.f32 %v2862, 1.442695
    %v2864 = vpow.pop %v2863
    %v2865 = vadd.f32 %v2864, 1.0
    %v2866 = vrcp.pop %v2865
    %v2867 = vmul.f32 1.0, %v2866
    %v2868 = vld [vmem:[#allocation5] sm:$0xff]
    %v2869 = vmul.f32 %v2860, %v2868
    %v2870 = vmul.f32 %v2854, %v2861
    %v2871 = vadd.f32 %v2869, %v2870
    %v2872 = vtanh.pop %v2871
    %v2873 = vmul.f32 %v2867, %v2872
    %v2874 = vpack.c.bf16 %v2873, %v2873
    %2875 = vst [vmem:[#allocation5] sm:$0xff] %v2871
    %2876 = vst [vmem:[#allocation4] sm:$0xf] %v2874
    %v2877 = vld [vmem:[%s1291] sm:$0xff]
    %v2878 = vld [vmem:[%s1291 + $0x8] sm:$0xff]
    %v2879 = vld [vmem:[%s1291 + $0x10] sm:$0xff]
    %v2880 = vld [vmem:[%s1291 + $0x18] sm:$0xff]
    %v2881 = vld [vmem:[#allocation4] sm:$0xf]
    %2882 = vmatprep.subr.bf16.mxu0 %v2252
    %2883 = vmatpush1.bf16.msra.mxu0 %v2251
    %2884 = vmatprep.subr.bf16.mxu0 %v2248
    %2885 = vmatpush1.bf16.msra.mxu0 %v2247
    %2886 = vmatprep.subr.bf16.mxu0 %v2244
    %2887 = vmatpush1.bf16.msra.mxu0 %v2243
    %2888 = vmatprep.subr.bf16.mxu0 %v2240
    %2889 = vmatpush1.bf16.msra.mxu0 %v2239
    %2890 = vmatprep.subr.bf16.mxu0 %v2236
    %2891 = vmatpush1.bf16.msra.mxu0 %v2235
    %2892 = vmatprep.subr.bf16.mxu0 %v2232
    %2893 = vmatpush1.bf16.msra.mxu0 %v2231
    %2894 = vmatprep.subr.bf16.mxu0 %v2228
    %2895 = vmatpush1.bf16.msra.mxu0 %v2227
    %2896 = vmatprep.subr.bf16.mxu0 %v2224
    %2897 = vmatpush1.bf16.msra.mxu0 %v2223
    %2898 = vmatprep.subr.bf16.mxu0 0
    %2899 = vmatpush2.bf16.msra.mxu0 0
    %2900 = vmatprep.subr.bf16.mxu0 0
    %2901 = vmatpush2.bf16.msra.mxu0 0
    %2902 = vmatprep.subr.bf16.mxu0 0
    %2903 = vmatpush2.bf16.msra.mxu0 0
    %2904 = vmatprep.subr.bf16.mxu0 0
    %2905 = vmatpush2.bf16.msra.mxu0 0
    %2906 = vmatprep.subr.bf16.mxu0 0
    %2907 = vmatpush2.bf16.msra.mxu0 0
    %2908 = vmatprep.subr.bf16.mxu0 0
    %2909 = vmatpush2.bf16.msra.mxu0 0
    %2910 = vmatprep.subr.bf16.mxu0 0
    %2911 = vmatpush2.bf16.msra.mxu0 0
    %2912 = vmatprep.subr.bf16.mxu0 0
    %2913 = vmatpush2.bf16.msra.mxu0 0
    %2914 = vmatprep.mubr.bf16.mxu0 0
    %2915 = vmatmul.mubr.bf16.gmra.mxu0 %v2881
    %v2916 = vpop.f32.mrf.mxu0
    %v2917 = vadd.f32 0.0, %v2916
    %v2918 = vpop.f32.mrf.mxu0
    %v2919 = vadd.f32 0.0, %v2918
    %v2920 = vpop.f32.mrf.mxu0
    %v2921 = vpop.f32.mrf.mxu0
    %2922 = vdwg.mxu0
    %2923 = vmatprep.subr.bf16.mxu0 %v2254
    %2924 = vmatpush1.bf16.msra.mxu0 %v2253
    %2925 = vmatprep.subr.bf16.mxu0 %v2250
    %2926 = vmatpush1.bf16.msra.mxu0 %v2249
    %2927 = vmatprep.subr.bf16.mxu0 %v2246
    %2928 = vmatpush1.bf16.msra.mxu0 %v2245
    %2929 = vmatprep.subr.bf16.mxu0 %v2242
    %2930 = vmatpush1.bf16.msra.mxu0 %v2241
    %2931 = vmatprep.subr.bf16.mxu0 %v2238
    %2932 = vmatpush1.bf16.msra.mxu0 %v2237
    %2933 = vmatprep.subr.bf16.mxu0 %v2234
    %2934 = vmatpush1.bf16.msra.mxu0 %v2233
    %2935 = vmatprep.subr.bf16.mxu0 %v2230
    %2936 = vmatpush1.bf16.msra.mxu0 %v2229
    %2937 = vmatprep.subr.bf16.mxu0 %v2226
    %2938 = vmatpush1.bf16.msra.mxu0 %v2225
    %2939 = vmatprep.subr.bf16.mxu0 0
    %2940 = vmatpush2.bf16.msra.mxu0 0
    %2941 = vmatprep.subr.bf16.mxu0 0
    %2942 = vmatpush2.bf16.msra.mxu0 0
    %2943 = vmatprep.subr.bf16.mxu0 0
    %2944 = vmatpush2.bf16.msra.mxu0 0
    %2945 = vmatprep.subr.bf16.mxu0 0
    %2946 = vmatpush2.bf16.msra.mxu0 0
    %2947 = vmatprep.subr.bf16.mxu0 0
    %2948 = vmatpush2.bf16.msra.mxu0 0
    %2949 = vmatprep.subr.bf16.mxu0 0
    %2950 = vmatpush2.bf16.msra.mxu0 0
    %2951 = vmatprep.subr.bf16.mxu0 0
    %2952 = vmatpush2.bf16.msra.mxu0 0
    %2953 = vmatprep.subr.bf16.mxu0 0
    %2954 = vmatpush2.bf16.msra.mxu0 0
    %2955 = vmatprep.mubr.bf16.mxu0 0
    %2956 = vmatmul.mubr.bf16.gmra.mxu0 %v2881
    %v2957 = vpop.f32.mrf.mxu0
    %v2958 = vadd.f32 0.0, %v2957
    %v2959 = vpop.f32.mrf.mxu0
    %v2960 = vadd.f32 0.0, %v2959
    %v2961 = vpop.f32.mrf.mxu0
    %v2962 = vpop.f32.mrf.mxu0
    %2963 = vdwg.mxu0
    %v2964 = vadd.f32 %v2877, %v2917
    %v2965 = vadd.f32 %v2878, %v2919
    %v2966 = vadd.f32 %v2879, %v2958
    %v2967 = vadd.f32 %v2880, %v2960
    %v2968 = vxor.u32 %v2964, 2147483648
    %v2969 = vmul.f32 %v2968, 1.442695
    %v2970 = vpow.pop %v2969
    %v2971 = vadd.f32 %v2970, 1.0
    %v2972 = vrcp.pop %v2971
    %v2973 = vmul.f32 1.0, %v2972
    %v2974 = vxor.u32 %v2965, 2147483648
    %v2975 = vmul.f32 %v2974, 1.442695
    %v2976 = vpow.pop %v2975
    %v2977 = vadd.f32 %v2976, 1.0
    %v2978 = vrcp.pop %v2977
    %v2979 = vmul.f32 1.0, %v2978
    %v2980 = vtanh.pop %v2966
    %v2981 = vxor.u32 %v2967, 2147483648
    %v2982 = vmul.f32 %v2981, 1.442695
    %v2983 = vpow.pop %v2982
    %v2984 = vadd.f32 %v2983, 1.0
    %v2985 = vrcp.pop %v2984
    %v2986 = vmul.f32 1.0, %v2985
    %v2987 = vld [vmem:[#allocation5] sm:$0xff]
    %v2988 = vmul.f32 %v2979, %v2987
    %v2989 = vmul.f32 %v2973, %v2980
    %v2990 = vadd.f32 %v2988, %v2989
    %v2991 = vtanh.pop %v2990
    %v2992 = vmul.f32 %v2986, %v2991
    %v2993 = vpack.c.bf16 %v2992, %v2992
    %2994 = vst [vmem:[#allocation5] sm:$0xff] %v2990
    %2995 = vst [vmem:[#allocation4] sm:$0xf] %v2993
    %v2996 = vld [vmem:[%s1415] sm:$0xff]
    %v2997 = vld [vmem:[%s1415 + $0x8] sm:$0xff]
    %v2998 = vld [vmem:[%s1415 + $0x10] sm:$0xff]
    %v2999 = vld [vmem:[%s1415 + $0x18] sm:$0xff]
    %v3000 = vld [vmem:[#allocation4] sm:$0xf]
    %3001 = vmatprep.subr.bf16.mxu0 %v2252
    %3002 = vmatpush1.bf16.msra.mxu0 %v2251
    %3003 = vmatprep.subr.bf16.mxu0 %v2248
    %3004 = vmatpush1.bf16.msra.mxu0 %v2247
    %3005 = vmatprep.subr.bf16.mxu0 %v2244
    %3006 = vmatpush1.bf16.msra.mxu0 %v2243
    %3007 = vmatprep.subr.bf16.mxu0 %v2240
    %3008 = vmatpush1.bf16.msra.mxu0 %v2239
    %3009 = vmatprep.subr.bf16.mxu0 %v2236
    %3010 = vmatpush1.bf16.msra.mxu0 %v2235
    %3011 = vmatprep.subr.bf16.mxu0 %v2232
    %3012 = vmatpush1.bf16.msra.mxu0 %v2231
    %3013 = vmatprep.subr.bf16.mxu0 %v2228
    %3014 = vmatpush1.bf16.msra.mxu0 %v2227
    %3015 = vmatprep.subr.bf16.mxu0 %v2224
    %3016 = vmatpush1.bf16.msra.mxu0 %v2223
    %3017 = vmatprep.subr.bf16.mxu0 0
    %3018 = vmatpush2.bf16.msra.mxu0 0
    %3019 = vmatprep.subr.bf16.mxu0 0
    %3020 = vmatpush2.bf16.msra.mxu0 0
    %3021 = vmatprep.subr.bf16.mxu0 0
    %3022 = vmatpush2.bf16.msra.mxu0 0
    %3023 = vmatprep.subr.bf16.mxu0 0
    %3024 = vmatpush2.bf16.msra.mxu0 0
    %3025 = vmatprep.subr.bf16.mxu0 0
    %3026 = vmatpush2.bf16.msra.mxu0 0
    %3027 = vmatprep.subr.bf16.mxu0 0
    %3028 = vmatpush2.bf16.msra.mxu0 0
    %3029 = vmatprep.subr.bf16.mxu0 0
    %3030 = vmatpush2.bf16.msra.mxu0 0
    %3031 = vmatprep.subr.bf16.mxu0 0
    %3032 = vmatpush2.bf16.msra.mxu0 0
    %3033 = vmatprep.mubr.bf16.mxu0 0
    %3034 = vmatmul.mubr.bf16.gmra.mxu0 %v3000
    %v3035 = vpop.f32.mrf.mxu0
    %v3036 = vadd.f32 0.0, %v3035
    %v3037 = vpop.f32.mrf.mxu0
    %v3038 = vadd.f32 0.0, %v3037
    %v3039 = vpop.f32.mrf.mxu0
    %v3040 = vpop.f32.mrf.mxu0
    %3041 = vdwg.mxu0
    %3042 = vmatprep.subr.bf16.mxu0 %v2254
    %3043 = vmatpush1.bf16.msra.mxu0 %v2253
    %3044 = vmatprep.subr.bf16.mxu0 %v2250
    %3045 = vmatpush1.bf16.msra.mxu0 %v2249
    %3046 = vmatprep.subr.bf16.mxu0 %v2246
    %3047 = vmatpush1.bf16.msra.mxu0 %v2245
    %3048 = vmatprep.subr.bf16.mxu0 %v2242
    %3049 = vmatpush1.bf16.msra.mxu0 %v2241
    %3050 = vmatprep.subr.bf16.mxu0 %v2238
    %3051 = vmatpush1.bf16.msra.mxu0 %v2237
    %3052 = vmatprep.subr.bf16.mxu0 %v2234
    %3053 = vmatpush1.bf16.msra.mxu0 %v2233
    %3054 = vmatprep.subr.bf16.mxu0 %v2230
    %3055 = vmatpush1.bf16.msra.mxu0 %v2229
    %3056 = vmatprep.subr.bf16.mxu0 %v2226
    %3057 = vmatpush1.bf16.msra.mxu0 %v2225
    %3058 = vmatprep.subr.bf16.mxu0 0
    %3059 = vmatpush2.bf16.msra.mxu0 0
    %3060 = vmatprep.subr.bf16.mxu0 0
    %3061 = vmatpush2.bf16.msra.mxu0 0
    %3062 = vmatprep.subr.bf16.mxu0 0
    %3063 = vmatpush2.bf16.msra.mxu0 0
    %3064 = vmatprep.subr.bf16.mxu0 0
    %3065 = vmatpush2.bf16.msra.mxu0 0
    %3066 = vmatprep.subr.bf16.mxu0 0
    %3067 = vmatpush2.bf16.msra.mxu0 0
    %3068 = vmatprep.subr.bf16.mxu0 0
    %3069 = vmatpush2.bf16.msra.mxu0 0
    %3070 = vmatprep.subr.bf16.mxu0 0
    %3071 = vmatpush2.bf16.msra.mxu0 0
    %3072 = vmatprep.subr.bf16.mxu0 0
    %3073 = vmatpush2.bf16.msra.mxu0 0
    %3074 = vmatprep.mubr.bf16.mxu0 0
    %3075 = vmatmul.mubr.bf16.gmra.mxu0 %v3000
    %v3076 = vpop.f32.mrf.mxu0
    %v3077 = vadd.f32 0.0, %v3076
    %v3078 = vpop.f32.mrf.mxu0
    %v3079 = vadd.f32 0.0, %v3078
    %v3080 = vpop.f32.mrf.mxu0
    %v3081 = vpop.f32.mrf.mxu0
    %3082 = vdwg.mxu0
    %v3083 = vadd.f32 %v2996, %v3036
    %v3084 = vadd.f32 %v2997, %v3038
    %v3085 = vadd.f32 %v2998, %v3077
    %v3086 = vadd.f32 %v2999, %v3079
    %v3087 = vxor.u32 %v3083, 2147483648
    %v3088 = vmul.f32 %v3087, 1.442695
    %v3089 = vpow.pop %v3088
    %v3090 = vadd.f32 %v3089, 1.0
    %v3091 = vrcp.pop %v3090
    %v3092 = vmul.f32 1.0, %v3091
    %v3093 = vxor.u32 %v3084, 2147483648
    %v3094 = vmul.f32 %v3093, 1.442695
    %v3095 = vpow.pop %v3094
    %v3096 = vadd.f32 %v3095, 1.0
    %v3097 = vrcp.pop %v3096
    %v3098 = vmul.f32 1.0, %v3097
    %v3099 = vtanh.pop %v3085
    %v3100 = vxor.u32 %v3086, 2147483648
    %v3101 = vmul.f32 %v3100, 1.442695
    %v3102 = vpow.pop %v3101
    %v3103 = vadd.f32 %v3102, 1.0
    %v3104 = vrcp.pop %v3103
    %v3105 = vmul.f32 1.0, %v3104
    %v3106 = vld [vmem:[#allocation5] sm:$0xff]
    %v3107 = vmul.f32 %v3098, %v3106
    %v3108 = vmul.f32 %v3092, %v3099
    %v3109 = vadd.f32 %v3107, %v3108
    %v3110 = vtanh.pop %v3109
    %v3111 = vmul.f32 %v3105, %v3110
    %v3112 = vpack.c.bf16 %v3111, %v3111
    %3113 = vst [vmem:[#allocation5] sm:$0xff] %v3109
    %3114 = vst [vmem:[#allocation4] sm:$0xf] %v3112
    %v3115 = vld [vmem:[%s1539] sm:$0xff]
    %v3116 = vld [vmem:[%s1539 + $0x8] sm:$0xff]
    %v3117 = vld [vmem:[%s1539 + $0x10] sm:$0xff]
    %v3118 = vld [vmem:[%s1539 + $0x18] sm:$0xff]
    %v3119 = vld [vmem:[#allocation4] sm:$0xf]
    %3120 = vmatprep.subr.bf16.mxu0 %v2252
    %3121 = vmatpush1.bf16.msra.mxu0 %v2251
    %3122 = vmatprep.subr.bf16.mxu0 %v2248
    %3123 = vmatpush1.bf16.msra.mxu0 %v2247
    %3124 = vmatprep.subr.bf16.mxu0 %v2244
    %3125 = vmatpush1.bf16.msra.mxu0 %v2243
    %3126 = vmatprep.subr.bf16.mxu0 %v2240
    %3127 = vmatpush1.bf16.msra.mxu0 %v2239
    %3128 = vmatprep.subr.bf16.mxu0 %v2236
    %3129 = vmatpush1.bf16.msra.mxu0 %v2235
    %3130 = vmatprep.subr.bf16.mxu0 %v2232
    %3131 = vmatpush1.bf16.msra.mxu0 %v2231
    %3132 = vmatprep.subr.bf16.mxu0 %v2228
    %3133 = vmatpush1.bf16.msra.mxu0 %v2227
    %3134 = vmatprep.subr.bf16.mxu0 %v2224
    %3135 = vmatpush1.bf16.msra.mxu0 %v2223
    %3136 = vmatprep.subr.bf16.mxu0 0
    %3137 = vmatpush2.bf16.msra.mxu0 0
    %3138 = vmatprep.subr.bf16.mxu0 0
    %3139 = vmatpush2.bf16.msra.mxu0 0
    %3140 = vmatprep.subr.bf16.mxu0 0
    %3141 = vmatpush2.bf16.msra.mxu0 0
    %3142 = vmatprep.subr.bf16.mxu0 0
    %3143 = vmatpush2.bf16.msra.mxu0 0
    %3144 = vmatprep.subr.bf16.mxu0 0
    %3145 = vmatpush2.bf16.msra.mxu0 0
    %3146 = vmatprep.subr.bf16.mxu0 0
    %3147 = vmatpush2.bf16.msra.mxu0 0
    %3148 = vmatprep.subr.bf16.mxu0 0
    %3149 = vmatpush2.bf16.msra.mxu0 0
    %3150 = vmatprep.subr.bf16.mxu0 0
    %3151 = vmatpush2.bf16.msra.mxu0 0
    %3152 = vmatprep.mubr.bf16.mxu0 0
    %3153 = vmatmul.mubr.bf16.gmra.mxu0 %v3119
    %v3154 = vpop.f32.mrf.mxu0
    %v3155 = vadd.f32 0.0, %v3154
    %v3156 = vpop.f32.mrf.mxu0
    %v3157 = vadd.f32 0.0, %v3156
    %v3158 = vpop.f32.mrf.mxu0
    %v3159 = vpop.f32.mrf.mxu0
    %3160 = vdwg.mxu0
    %3161 = vmatprep.subr.bf16.mxu0 %v2254
    %3162 = vmatpush1.bf16.msra.mxu0 %v2253
    %3163 = vmatprep.subr.bf16.mxu0 %v2250
    %3164 = vmatpush1.bf16.msra.mxu0 %v2249
    %3165 = vmatprep.subr.bf16.mxu0 %v2246
    %3166 = vmatpush1.bf16.msra.mxu0 %v2245
    %3167 = vmatprep.subr.bf16.mxu0 %v2242
    %3168 = vmatpush1.bf16.msra.mxu0 %v2241
    %3169 = vmatprep.subr.bf16.mxu0 %v2238
    %3170 = vmatpush1.bf16.msra.mxu0 %v2237
    %3171 = vmatprep.subr.bf16.mxu0 %v2234
    %3172 = vmatpush1.bf16.msra.mxu0 %v2233
    %3173 = vmatprep.subr.bf16.mxu0 %v2230
    %3174 = vmatpush1.bf16.msra.mxu0 %v2229
    %3175 = vmatprep.subr.bf16.mxu0 %v2226
    %3176 = vmatpush1.bf16.msra.mxu0 %v2225
    %3177 = vmatprep.subr.bf16.mxu0 0
    %3178 = vmatpush2.bf16.msra.mxu0 0
    %3179 = vmatprep.subr.bf16.mxu0 0
    %3180 = vmatpush2.bf16.msra.mxu0 0
    %3181 = vmatprep.subr.bf16.mxu0 0
    %3182 = vmatpush2.bf16.msra.mxu0 0
    %3183 = vmatprep.subr.bf16.mxu0 0
    %3184 = vmatpush2.bf16.msra.mxu0 0
    %3185 = vmatprep.subr.bf16.mxu0 0
    %3186 = vmatpush2.bf16.msra.mxu0 0
    %3187 = vmatprep.subr.bf16.mxu0 0
    %3188 = vmatpush2.bf16.msra.mxu0 0
    %3189 = vmatprep.subr.bf16.mxu0 0
    %3190 = vmatpush2.bf16.msra.mxu0 0
    %3191 = vmatprep.subr.bf16.mxu0 0
    %3192 = vmatpush2.bf16.msra.mxu0 0
    %3193 = vmatprep.mubr.bf16.mxu0 0
    %3194 = vmatmul.mubr.bf16.gmra.mxu0 %v3119
    %v3195 = vpop.f32.mrf.mxu0
    %v3196 = vadd.f32 0.0, %v3195
    %v3197 = vpop.f32.mrf.mxu0
    %v3198 = vadd.f32 0.0, %v3197
    %v3199 = vpop.f32.mrf.mxu0
    %v3200 = vpop.f32.mrf.mxu0
    %3201 = vdwg.mxu0
    %v3202 = vadd.f32 %v3115, %v3155
    %v3203 = vadd.f32 %v3116, %v3157
    %v3204 = vadd.f32 %v3117, %v3196
    %v3205 = vadd.f32 %v3118, %v3198
    %v3206 = vxor.u32 %v3202, 2147483648
    %v3207 = vmul.f32 %v3206, 1.442695
    %v3208 = vpow.pop %v3207
    %v3209 = vadd.f32 %v3208, 1.0
    %v3210 = vrcp.pop %v3209
    %v3211 = vmul.f32 1.0, %v3210
    %v3212 = vxor.u32 %v3203, 2147483648
    %v3213 = vmul.f32 %v3212, 1.442695
    %v3214 = vpow.pop %v3213
    %v3215 = vadd.f32 %v3214, 1.0
    %v3216 = vrcp.pop %v3215
    %v3217 = vmul.f32 1.0, %v3216
    %v3218 = vtanh.pop %v3204
    %v3219 = vxor.u32 %v3205, 2147483648
    %v3220 = vmul.f32 %v3219, 1.442695
    %v3221 = vpow.pop %v3220
    %v3222 = vadd.f32 %v3221, 1.0
    %v3223 = vrcp.pop %v3222
    %v3224 = vmul.f32 1.0, %v3223
    %v3225 = vld [vmem:[#allocation5] sm:$0xff]
    %v3226 = vmul.f32 %v3217, %v3225
    %v3227 = vmul.f32 %v3211, %v3218
    %v3228 = vadd.f32 %v3226, %v3227
    %v3229 = vtanh.pop %v3228
    %v3230 = vmul.f32 %v3224, %v3229
    %v3231 = vpack.c.bf16 %v3230, %v3230
    %3232 = vst [vmem:[#allocation5] sm:$0xff] %v3228
    %3233 = vst [vmem:[#allocation4] sm:$0xf] %v3231
    %v3234 = vld [vmem:[#allocation4] sm:$0xf]
    %v3235 = vld [vmem:[%s4] sm:$0xf]
    %v3236 = vld [vmem:[%s4 + $0x4] sm:$0xf]
    %v3237 = vld [vmem:[%s4 + $0x8] sm:$0xf]
    %v3238 = vld [vmem:[%s4 + $0xc] sm:$0xf]
    %v3239 = vld [vmem:[%s4 + $0x10] sm:$0xf]
    %v3240 = vld [vmem:[%s4 + $0x14] sm:$0xf]
    %v3241 = vld [vmem:[%s4 + $0x18] sm:$0xf]
    %v3242 = vld [vmem:[%s4 + $0x1c] sm:$0xf]
    %v3243 = vld [vmem:[%s4 + $0x20] sm:$0xf]
    %v3244 = vld [vmem:[%s4 + $0x24] sm:$0xf]
    %v3245 = vld [vmem:[%s4 + $0x28] sm:$0xf]
    %v3246 = vld [vmem:[%s4 + $0x2c] sm:$0xf]
    %v3247 = vld [vmem:[%s4 + $0x30] sm:$0xf]
    %v3248 = vld [vmem:[%s4 + $0x34] sm:$0xf]
    %v3249 = vld [vmem:[%s4 + $0x38] sm:$0xf]
    %v3250 = vld [vmem:[%s4 + $0x3c] sm:$0xf]
    %v3251 = vld [vmem:[%s5] sm:$0x1]
    %v3253 = vlaneseq
    %v3254 = vshrl.u32 %v3253, 7
    %v3255 = vsub.s32 0, %v3254
    %v3256 = vrot.slane %v3251, %v3255
    %v3274 = vunpack.c.l.b16 %v3235
    %v3275 = vunpack.c.l.b16 %v3236
    %v3276 = vunpack.c.l.b16 %v3237
    %v3277 = vunpack.c.l.b16 %v3238
    %v3278 = vunpack.c.l.b16 %v3239
    %v3279 = vunpack.c.l.b16 %v3240
    %v3280 = vunpack.c.l.b16 %v3241
    %v3281 = vunpack.c.l.b16 %v3242
    %v3282 = vunpack.c.l.b16 %v3243
    %v3283 = vunpack.c.l.b16 %v3244
    %v3284 = vunpack.c.l.b16 %v3245
    %v3285 = vunpack.c.l.b16 %v3246
    %v3286 = vunpack.c.l.b16 %v3247
    %v3287 = vunpack.c.l.b16 %v3248
    %v3288 = vunpack.c.l.b16 %v3249
    %v3289 = vunpack.c.l.b16 %v3250
    %v3290 = vpack.c.b16 %v3275, %v3274
    %v3291 = vpack.c.b16 %v3277, %v3276
    %v3292 = vpack.c.b16 %v3279, %v3278
    %v3293 = vpack.c.b16 %v3281, %v3280
    %v3294 = vpack.c.b16 %v3283, %v3282
    %v3295 = vpack.c.b16 %v3285, %v3284
    %v3296 = vpack.c.b16 %v3287, %v3286
    %v3297 = vpack.c.b16 %v3289, %v3288
    %3306 = vmatprep.subr.bf16.mxu0 0
    %3307 = vmatpush1.bf16.msra.mxu0 %v3297
    %3308 = vmatprep.subr.bf16.mxu0 0
    %3309 = vmatpush1.bf16.msra.mxu0 %v3296
    %3310 = vmatprep.subr.bf16.mxu0 0
    %3311 = vmatpush1.bf16.msra.mxu0 %v3295
    %3312 = vmatprep.subr.bf16.mxu0 0
    %3313 = vmatpush1.bf16.msra.mxu0 %v3294
    %3314 = vmatprep.subr.bf16.mxu0 0
    %3315 = vmatpush1.bf16.msra.mxu0 %v3293
    %3316 = vmatprep.subr.bf16.mxu0 0
    %3317 = vmatpush1.bf16.msra.mxu0 %v3292
    %3318 = vmatprep.subr.bf16.mxu0 0
    %3319 = vmatpush1.bf16.msra.mxu0 %v3291
    %3320 = vmatprep.subr.bf16.mxu0 0
    %3321 = vmatpush1.bf16.msra.mxu0 %v3290
    %3322 = vmatprep.subr.bf16.mxu0 0
    %3323 = vmatpush2.bf16.msra.mxu0 0
    %3324 = vmatprep.subr.bf16.mxu0 0
    %3325 = vmatpush2.bf16.msra.mxu0 0
    %3326 = vmatprep.subr.bf16.mxu0 0
    %3327 = vmatpush2.bf16.msra.mxu0 0
    %3328 = vmatprep.subr.bf16.mxu0 0
    %3329 = vmatpush2.bf16.msra.mxu0 0
    %3330 = vmatprep.subr.bf16.mxu0 0
    %3331 = vmatpush2.bf16.msra.mxu0 0
    %3332 = vmatprep.subr.bf16.mxu0 0
    %3333 = vmatpush2.bf16.msra.mxu0 0
    %3334 = vmatprep.subr.bf16.mxu0 0
    %3335 = vmatpush2.bf16.msra.mxu0 0
    %3336 = vmatprep.subr.bf16.mxu0 0
    %3337 = vmatpush2.bf16.msra.mxu0 0
    %3338 = vmatprep.mubr.bf16.mxu0 0
    %3339 = vmatmul.mubr.bf16.gmra.mxu0 %v3234
    %v3340 = vpop.f32.mrf.mxu0
    %v3341 = vadd.f32 %v3256, %v3340
    %v3342 = vpop.f32.mrf.mxu0
    %v3343 = vpop.f32.mrf.mxu0
    %v3344 = vpop.f32.mrf.mxu0
    %3345 = vdwg.mxu0
    %3346 = vst [vmem:[%s6] sm:$0xff] %v3341
    // Predicated region
    $region34: #{lstm_model_forward.1} parent=1 // pred_check
      _
    $region35: #{lstm_model_forward.1} parent=1 // pred_check_branch
      %3348 = sbr.rel (0) target = $region37
    $region36: #{lstm_model_forward.1} parent=1 // pred_region
      _
    $region37: #{lstm_model_forward.1} parent=1 // pred_fallthru
      _
    // Predicated region
    $region38: #{lstm_model_forward.1} parent=1 // pred_check
      _
    $region39: #{lstm_model_forward.1} parent=1 // pred_check_branch
      %3350 = sbr.rel (0) target = $region41
    $region40: #{lstm_model_forward.1} parent=1 // pred_region
      _
    $region41: #{lstm_model_forward.1} parent=1 // pred_fallthru
      _
    %3351 = vsyncpa [#allocation7], 1
    %3352 = vsyncpa [#allocation9], 1

</llo_original>
